<compile_context>
chip_gen: v5e
topology: v5e:2x2
jax: 0.10.0
libtpu: 0.0.40
codegen_flags: <defaults>
</compile_context>

<pallas_src>
import jax
import jax.numpy as jnp
import numpy as np
from jax.experimental import pallas as pl
from jax.experimental.pallas import tpu as pltpu


# ----------------------------------------------------------------------------
# Fused SpeakerEncoder kernel (one batch row per grid step).
# Gate order (repacked at init): i, f, o, g ; bias = b_ih + b_hh (pre-fused).
# ----------------------------------------------------------------------------
def _speaker_encoder_kernel(x_ref, feat_hbm,
                            wih1_ref, whh1_ref, b1_ref,
                            win_ref, woutc_ref, wouth_ref,
                            wih2_ref, whh2_ref, b2_ref,
                            out_ref,
                            feat_vmem, feat_sem, gx_scr, ctx_scr):
    f32, bf16 = jnp.float32, jnp.bfloat16
    _, T, F = x_ref.shape
    S = feat_vmem.shape[1]
    H = whh1_ref.shape[0]

    # ---- Kick off the feature HBM->VMEM DMA for this batch row; it is waited
    # ---- on only after LSTM1, so the transfer hides behind the recurrence.
    b = pl.program_id(0)
    feat_copy = pltpu.make_async_copy(feat_hbm.at[b], feat_vmem, feat_sem)
    feat_copy.start()

    def run_lstm(whh_ref, write_h):
        """Recurrence over T steps; gx (input proj + bias) already in gx_scr."""
        whh = whh_ref[...]

        def body(t, carry):
            h, c = carry
            gates = (gx_scr[pl.ds(t, 1), :] +
                     jnp.dot(h.astype(bf16), whh, preferred_element_type=f32))
            sig = jax.nn.sigmoid(gates[:, :3 * H])      # [i | f | o] in one pass
            i = sig[:, 0:H]
            f = sig[:, H:2 * H]
            o = sig[:, 2 * H:3 * H]
            g = jnp.tanh(gates[:, 3 * H:])
            c = f * c + i * g
            h = o * jnp.tanh(c)
            write_h(t, h)
            return (h, c)

        init = (jnp.zeros((1, H), f32), jnp.zeros((1, H), f32))
        jax.lax.fori_loop(0, T, body, init, unroll=True)   # T is small & static

    # ---- LSTM 1: hoisted input projection (one big MXU matmul), recurrence.
    x = x_ref[0]                                                      # (T, F)
    gx_scr[...] = (jnp.dot(x.astype(bf16), wih1_ref[...],
                           preferred_element_type=f32) + b1_ref[...])

    def write_ctx(t, h):
        ctx_scr[pl.ds(t, 1), :] = h

    run_lstm(whh1_ref, write_ctx)

    # ---- SoftDotAttention (eval mode: no mask).  Feature is now needed.
    feat_copy.wait()
    ctx = ctx_scr[...]                                                # (T, H) f32
    ctx_b = ctx.astype(bf16)
    feat = feat_vmem[...]                                             # (T, S, F) bf16
    target = jnp.dot(ctx_b, win_ref[...], preferred_element_type=f32)  # (T, F)
    q = target.astype(bf16).reshape(T, 1, F)
    logits = jnp.einsum('bqd,bkd->bqk', q, feat,
                        preferred_element_type=f32)                   # (T, 1, S)
    m = jnp.max(logits, axis=-1, keepdims=True)
    e = jnp.exp(logits - m)
    attn = e * pl.reciprocal(jnp.sum(e, axis=-1, keepdims=True), approx=True)
    weighted = jnp.einsum('bqk,bkd->bqd', attn.astype(bf16), feat,
                          preferred_element_type=f32).reshape(T, F)   # (T, F)
    h_tilde = jnp.tanh(
        jnp.dot(weighted.astype(bf16), woutc_ref[...], preferred_element_type=f32)
        + jnp.dot(ctx_b, wouth_ref[...], preferred_element_type=f32))  # (T, H)

    # ---- post-LSTM: hoisted input projection, recurrence writes the output.
    gx_scr[...] = (jnp.dot(h_tilde.astype(bf16), wih2_ref[...],
                           preferred_element_type=f32) + b2_ref[...])

    def write_out(t, h):
        out_ref[0, pl.ds(t, 1), :] = h

    run_lstm(whh2_ref, write_out)


def speaker_encoder_forward(params, action_embeds, feature, lengths=None,
                            already_dropfeat=False):
    """action_embeds: (B,T,F) f32, feature: (B,T,S,F) f32 -> (B,T,H) f32."""
    del lengths, already_dropfeat  # unused, as in the PyTorch module (eval mode)
    B, T, F = action_embeds.shape
    S = feature.shape[2]
    H = params["hidden_size"]

    # Feature travels in bf16 (halves HBM bytes / VMEM).  In production it
    # should already be produced as bf16 upstream to avoid this extra cast.
    feature_bf16 = feature.astype(jnp.bfloat16)

    flops = int(2 * B * T * (F * 4 * H            # LSTM1 input projection
                             + H * 4 * H          # LSTM1 recurrence
                             + H * F              # attention linear_in
                             + 2 * S * F          # logits + weighted context
                             + F * H + H * H      # attention linear_out
                             + 2 * H * 4 * H))    # post-LSTM proj + recurrence
    transcendentals = int(B * T * (2 * 5 * H + S + H + 1))
    bytes_accessed = int(4 * B * T * F + 2 * B * T * S * F + 4 * B * T * H)

    grid_spec = pltpu.PrefetchScalarGridSpec(
        num_scalar_prefetch=0,
        grid=(B,),
        in_specs=[
            pl.BlockSpec((1, T, F), lambda b: (b, 0, 0)),   # action_embeds
            pl.BlockSpec(memory_space=pl.ANY),              # feature: manual DMA
            pl.BlockSpec((F, 4 * H), lambda b: (0, 0)),     # lstm W_ih^T
            pl.BlockSpec((H, 4 * H), lambda b: (0, 0)),     # lstm W_hh^T
            pl.BlockSpec((1, 4 * H), lambda b: (0, 0)),     # lstm bias
            pl.BlockSpec((H, F), lambda b: (0, 0)),         # attn linear_in^T
            pl.BlockSpec((F, H), lambda b: (0, 0)),         # attn linear_out (ctx part)^T
            pl.BlockSpec((H, H), lambda b: (0, 0)),         # attn linear_out (h part)^T
            pl.BlockSpec((H, 4 * H), lambda b: (0, 0)),     # post W_ih^T
            pl.BlockSpec((H, 4 * H), lambda b: (0, 0)),     # post W_hh^T
            pl.BlockSpec((1, 4 * H), lambda b: (0, 0)),     # post bias
        ],
        out_specs=pl.BlockSpec((1, T, H), lambda b: (b, 0, 0)),
        scratch_shapes=[
            pltpu.VMEM((T, S, F), jnp.bfloat16),   # feature tile (DMA target)
            pltpu.SemaphoreType.DMA,               # its completion semaphore
            pltpu.VMEM((T, 4 * H), jnp.float32),   # hoisted gate projections
            pltpu.VMEM((T, H), jnp.float32),       # ctx (LSTM1 hidden states)
        ],
    )

    return pl.pallas_call(
        _speaker_encoder_kernel,
        out_shape=jax.ShapeDtypeStruct((B, T, H), jnp.float32),
        grid_spec=grid_spec,
        compiler_params=pltpu.CompilerParams(
            dimension_semantics=("parallel",),      # shard batch across TCs (v7x)
            # Tiny footprint here; re-derive for production shapes per chip
            # (v5e/v6e: 128 MiB physical, v7x: 64 MiB).
            vmem_limit_bytes=32 * 1024 * 1024),
        cost_estimate=pl.CostEstimate(flops=flops,
                                      transcendentals=transcendentals,
                                      bytes_accessed=bytes_accessed),
    )(action_embeds, feature_bf16,
      params["lstm_wih_t"], params["lstm_whh_t"], params["lstm_b"],
      params["attn_win_t"], params["attn_woutc_t"], params["attn_wouth_t"],
      params["post_wih_t"], params["post_whh_t"], params["post_b"])


# ----------------------------------------------------------------------------
# Deterministic parameter init.  PyTorch parameter shapes, but LSTM gate rows
# are repacked [i,f,g,o] -> [i,f,o,g] and weights stored transposed in bf16
# for the MXU; biases stay f32 (b_ih + b_hh pre-fused).
# ----------------------------------------------------------------------------
def init_params(key, feature_size, hidden_size):
    F, H = feature_size, hidden_size
    ks = jax.random.split(key, 10)
    sc = 0.1

    def rnd(k, shape):
        return sc * jax.random.normal(k, shape, dtype=jnp.float32)

    def reorder(w):  # PyTorch row order [i, f, g, o] -> kernel order [i, f, o, g]
        i, f, g, o = jnp.split(w, 4, axis=0)
        return jnp.concatenate([i, f, o, g], axis=0)

    lstm_wih = rnd(ks[0], (4 * H, F))
    lstm_whh = rnd(ks[1], (4 * H, H))
    lstm_bih = rnd(ks[2], (4 * H,))
    lstm_bhh = rnd(ks[3], (4 * H,))
    post_wih = rnd(ks[4], (4 * H, H))
    post_whh = rnd(ks[5], (4 * H, H))
    post_bih = rnd(ks[6], (4 * H,))
    post_bhh = rnd(ks[7], (4 * H,))
    # SoftDotAttention(H, F): linear_in (F,H) no bias; linear_out (H, F+H) no bias
    attn_win = rnd(ks[8], (F, H))
    attn_wout = rnd(ks[9], (H, F + H))

    bf16 = jnp.bfloat16
    return {
        "hidden_size": H,
        "lstm_wih_t": reorder(lstm_wih).T.astype(bf16),            # (F, 4H)
        "lstm_whh_t": reorder(lstm_whh).T.astype(bf16),            # (H, 4H)
        "lstm_b": reorder(lstm_bih + lstm_bhh)[None, :],           # (1, 4H) f32
        "post_wih_t": reorder(post_wih).T.astype(bf16),            # (H, 4H)
        "post_whh_t": reorder(post_whh).T.astype(bf16),            # (H, 4H)
        "post_b": reorder(post_bih + post_bhh)[None, :],           # (1, 4H) f32
        "attn_win_t": attn_win.T.astype(bf16),                     # (H, F)
        "attn_woutc_t": attn_wout[:, :F].T.astype(bf16),           # (F, H) weighted part
        "attn_wouth_t": attn_wout[:, F:].T.astype(bf16),           # (H, H) h part
    }


# ----------------------------------------------------------------------------
# Pure-JAX reference (same bf16-operand / f32-accumulate and gate packing).
# ----------------------------------------------------------------------------
def _bdot(a, w):
    return jnp.dot(a.astype(jnp.bfloat16), w, preferred_element_type=jnp.float32)


def _ref_lstm(x, wih_t, whh_t, b):
    B, T, Fin = x.shape
    H = whh_t.shape[0]
    gx = (_bdot(x.reshape(B * T, Fin), wih_t) + b).reshape(B, T, 4 * H)

    def step(carry, gx_t):
        h, c = carry
        gates = gx_t + _bdot(h, whh_t)
        sig = jax.nn.sigmoid(gates[:, :3 * H])
        i, f, o = sig[:, 0:H], sig[:, H:2 * H], sig[:, 2 * H:3 * H]
        g = jnp.tanh(gates[:, 3 * H:])
        c = f * c + i * g
        h = o * jnp.tanh(c)
        return (h, c), h

    init = (jnp.zeros((B, H), jnp.float32), jnp.zeros((B, H), jnp.float32))
    _, hs = jax.lax.scan(step, init, jnp.transpose(gx, (1, 0, 2)))
    return jnp.transpose(hs, (1, 0, 2))


def _ref_forward(params, action_embeds, feature):
    B, T, F = action_embeds.shape
    H = params["hidden_size"]
    feat = feature.astype(jnp.bfloat16).reshape(B * T, -1, F)
    ctx = _ref_lstm(action_embeds, params["lstm_wih_t"], params["lstm_whh_t"],
                    params["lstm_b"])
    h = ctx.reshape(B * T, H)
    target = _bdot(h, params["attn_win_t"])
    logits = jnp.einsum("nsf,nf->ns", feat, target.astype(jnp.bfloat16),
                        preferred_element_type=jnp.float32)
    attn = jax.nn.softmax(logits, axis=-1)
    weighted = jnp.einsum("ns,nsf->nf", attn.astype(jnp.bfloat16), feat,
                          preferred_element_type=jnp.float32)
    h_tilde = jnp.tanh(_bdot(weighted, params["attn_woutc_t"])
                       + _bdot(h, params["attn_wouth_t"]))
    x = h_tilde.reshape(B, T, H)
    return _ref_lstm(x, params["post_wih_t"], params["post_whh_t"], params["post_b"])


# ----------------------------------------------------------------------------
if __name__ == "__main__":
    # Small synthetic shapes consistent with the module's forward():
    #   action_embeds: (B, T, feature_size), feature: (B, T, views, feature_size)
    B, T, S = 2, 8, 8
    feature_size, hidden_size = 128, 64   # bidirectional=False

    key = jax.random.PRNGKey(0)
    k_p, k_a, k_f = jax.random.split(key, 3)
    params = init_params(k_p, feature_size, hidden_size)

    action_embeds = jax.random.normal(k_a, (B, T, feature_size), dtype=jnp.float32)
    feature = jax.random.normal(k_f, (B, T, S, feature_size), dtype=jnp.float32)
    lengths = jnp.full((B,), T, dtype=jnp.int32)  # unused, as in PyTorch forward

    out = speaker_encoder_forward(params, action_embeds, feature, lengths)
    out = jax.block_until_ready(out)

    ref = jax.block_until_ready(_ref_forward(params, action_embeds, feature))
    assert out.shape == (B, T, hidden_size)
    # Tolerance covers bf16 MXU operands / bf16 feature (identically quantized
    # in both paths) plus the approximate-reciprocal softmax normalization.
    np.testing.assert_allclose(np.asarray(out), np.asarray(ref), rtol=2e-3, atol=2e-3)

    print("KERNEL_OK")
</pallas_src>

<mosaic_0001>
module attributes {stable_mosaic.version = 11 : i64} {
  func.func @_speaker_encoder_kernel(%arg0: i32, %arg1: memref<1x8x128xf32, #tpu.memory_space<vmem>>, %arg2: memref<2x8x8x128xbf16, #tpu.memory_space<any>>, %arg3: memref<128x256xbf16, #tpu.memory_space<vmem>>, %arg4: memref<64x256xbf16, #tpu.memory_space<vmem>>, %arg5: memref<1x256xf32, #tpu.memory_space<vmem>>, %arg6: memref<64x128xbf16, #tpu.memory_space<vmem>>, %arg7: memref<128x64xbf16, #tpu.memory_space<vmem>>, %arg8: memref<64x64xbf16, #tpu.memory_space<vmem>>, %arg9: memref<64x256xbf16, #tpu.memory_space<vmem>>, %arg10: memref<64x256xbf16, #tpu.memory_space<vmem>>, %arg11: memref<1x256xf32, #tpu.memory_space<vmem>>, %arg12: memref<1x8x64xf32, #tpu.memory_space<vmem>>, %arg13: memref<8x8x128xbf16, #tpu.memory_space<vmem>>, %arg14: memref<!tpu.dma_semaphore, #tpu.memory_space<semaphore_mem>>, %arg15: memref<8x256xf32, #tpu.memory_space<vmem>>, %arg16: memref<8x64xf32, #tpu.memory_space<vmem>>) attributes {dimension_semantics = [#tpu.dimension_semantics<parallel>], iteration_bounds = array<i64: 2>, scalar_prefetch = 0 : i64, scratch_operands = 4 : i64, tpu.core_type = #tpu.core_type<tc>, window_params = [{transform_indices = @transform_0, window_bounds = array<i64: 1, 8, 128>}, {}, {pipeline_mode = #tpu.pipeline_mode<synchronous>, transform_indices = @transform_2, window_bounds = array<i64: 128, 256>}, {pipeline_mode = #tpu.pipeline_mode<synchronous>, transform_indices = @transform_3, window_bounds = array<i64: 64, 256>}, {pipeline_mode = #tpu.pipeline_mode<synchronous>, transform_indices = @transform_4, window_bounds = array<i64: 1, 256>}, {pipeline_mode = #tpu.pipeline_mode<synchronous>, transform_indices = @transform_5, window_bounds = array<i64: 64, 128>}, {pipeline_mode = #tpu.pipeline_mode<synchronous>, transform_indices = @transform_6, window_bounds = array<i64: 128, 64>}, {pipeline_mode = #tpu.pipeline_mode<synchronous>, transform_indices = @transform_7, window_bounds = array<i64: 64, 64>}, {pipeline_mode = #tpu.pipeline_mode<synchronous>, transform_indices = @transform_8, window_bounds = array<i64: 64, 256>}, {pipeline_mode = #tpu.pipeline_mode<synchronous>, transform_indices = @transform_9, window_bounds = array<i64: 64, 256>}, {pipeline_mode = #tpu.pipeline_mode<synchronous>, transform_indices = @transform_10, window_bounds = array<i64: 1, 256>}, {transform_indices = @transform_11, window_bounds = array<i64: 1, 8, 64>}]} {
    %c0_i32 = arith.constant 0 : i32
    %c0_i32_0 = arith.constant 0 : i32
    %c0_i32_1 = arith.constant 0 : i32
    %0 = tpu.memref_slice %arg2[%arg0, %c0_i32, %c0_i32_0, %c0_i32_1] : memref<2x8x8x128xbf16, #tpu.memory_space<any>> -> memref<1x8x8x128xbf16, #tpu.memory_space<any>>
    %1 = tpu.memref_squeeze %0 : memref<1x8x8x128xbf16, #tpu.memory_space<any>> -> memref<8x8x128xbf16, #tpu.memory_space<any>>
    tpu.enqueue_dma source(%1 : memref<8x8x128xbf16, #tpu.memory_space<any>>) target(%arg13 : memref<8x8x128xbf16, #tpu.memory_space<vmem>>) target_semaphore(%arg14 : memref<!tpu.dma_semaphore, #tpu.memory_space<semaphore_mem>>)
    %c0 = arith.constant 0 : index
    %c0_2 = arith.constant 0 : index
    %c0_3 = arith.constant 0 : index
    %2 = vector.load %arg1[%c0, %c0_2, %c0_3] : memref<1x8x128xf32, #tpu.memory_space<vmem>>, vector<1x8x128xf32>
    %3 = vector.shape_cast %2 : vector<1x8x128xf32> to vector<8x128xf32>
    %4 = arith.truncf %3 : vector<8x128xf32> to vector<8x128xbf16>
    %c0_4 = arith.constant 0 : index
    %c0_5 = arith.constant 0 : index
    %5 = vector.load %arg3[%c0_4, %c0_5] : memref<128x256xbf16, #tpu.memory_space<vmem>>, vector<128x256xbf16>
    %cst = arith.constant dense<0.000000e+00> : vector<8x256xf32>
    %6 = tpu.matmul %4, %5, %cst {dimension_numbers = #tpu.dot_dimension_numbers<[1], [0], [0], [1], [0, 0, 1, 1], [], []>} : vector<8x128xbf16>, vector<128x256xbf16>, vector<8x256xf32> -> vector<8x256xf32>
    %c0_6 = arith.constant 0 : index
    %c0_7 = arith.constant 0 : index
    %7 = vector.load %arg5[%c0_6, %c0_7] : memref<1x256xf32, #tpu.memory_space<vmem>>, vector<1x256xf32>
    %8 = vector.broadcast %7 : vector<1x256xf32> to vector<8x256xf32>
    %9 = arith.addf %6, %8 : vector<8x256xf32>
    %c0_8 = arith.constant 0 : index
    %c0_9 = arith.constant 0 : index
    %10 = vector.load %arg15[%c0_8, %c0_9] : memref<8x256xf32, #tpu.memory_space<vmem>>, vector<8x256xf32>
    tpu.vector_store %arg15[%c0_8, %c0_9], %9 {strides = array<i32>} : memref<8x256xf32, #tpu.memory_space<vmem>>, vector<8x256xf32>,
    %c0_10 = arith.constant 0 : index
    %c0_11 = arith.constant 0 : index
    %11 = vector.load %arg4[%c0_10, %c0_11] : memref<64x256xbf16, #tpu.memory_space<vmem>>, vector<64x256xbf16>
    %cst_12 = arith.constant 0.000000e+00 : f32
    %12 = vector.broadcast %cst_12 : f32 to vector<1x64xf32>
    %cst_13 = arith.constant 0.000000e+00 : f32
    %13 = vector.broadcast %cst_13 : f32 to vector<1x64xf32>
    %c0_i32_14 = arith.constant 0 : i32
    %14 = arith.index_cast %c0_i32_14 : i32 to index
    %c0_15 = arith.constant 0 : index
    %15 = vector.load %arg15[%14, %c0_15] : memref<8x256xf32, #tpu.memory_space<vmem>>, vector<1x256xf32>
    %16 = arith.truncf %12 : vector<1x64xf32> to vector<1x64xbf16>
    %cst_16 = arith.constant dense<0.000000e+00> : vector<1x256xf32>
    %17 = tpu.matmul %16, %11, %cst_16 {dimension_numbers = #tpu.dot_dimension_numbers<[1], [0], [0], [1], [0, 0, 1, 1], [], []>} : vector<1x64xbf16>, vector<64x256xbf16>, vector<1x256xf32> -> vector<1x256xf32>
    %18 = arith.addf %15, %17 : vector<1x256xf32>
    %19 = vector.extract_strided_slice %18 {offsets = [0, 0], sizes = [1, 192], strides = [1, 1]} : vector<1x256xf32> to vector<1x192xf32>
    %20 = arith.negf %19 : vector<1x192xf32>
    %21 = math.exp %20 : vector<1x192xf32>
    %cst_17 = arith.constant 1.000000e+00 : f32
    %22 = vector.broadcast %cst_17 : f32 to vector<1x192xf32>
    %23 = arith.addf %22, %21 : vector<1x192xf32>
    %24 = arith.divf %22, %23 : vector<1x192xf32>
    %25 = vector.extract_strided_slice %24 {offsets = [0, 0], sizes = [1, 64], strides = [1, 1]} : vector<1x192xf32> to vector<1x64xf32>
    %26 = vector.extract_strided_slice %24 {offsets = [0, 64], sizes = [1, 64], strides = [1, 1]} : vector<1x192xf32> to vector<1x64xf32>
    %27 = vector.extract_strided_slice %24 {offsets = [0, 128], sizes = [1, 64], strides = [1, 1]} : vector<1x192xf32> to vector<1x64xf32>
    %28 = vector.extract_strided_slice %18 {offsets = [0, 192], sizes = [1, 64], strides = [1, 1]} : vector<1x256xf32> to vector<1x64xf32>
    %29 = math.tanh %28 : vector<1x64xf32>
    %30 = arith.mulf %26, %13 : vector<1x64xf32>
    %31 = arith.mulf %25, %29 : vector<1x64xf32>
    %32 = arith.addf %30, %31 : vector<1x64xf32>
    %33 = math.tanh %32 : vector<1x64xf32>
    %34 = arith.mulf %27, %33 : vector<1x64xf32>
    %35 = arith.index_cast %c0_i32_14 : i32 to index
    %c0_18 = arith.constant 0 : index
    %36 = vector.load %arg16[%35, %c0_18] : memref<8x64xf32, #tpu.memory_space<vmem>>, vector<1x64xf32>
    tpu.vector_store %arg16[%35, %c0_18], %34 {strides = array<i32>} : memref<8x64xf32, #tpu.memory_space<vmem>>, vector<1x64xf32>,
    %c1_i32 = arith.constant 1 : i32
    %37 = arith.index_cast %c1_i32 : i32 to index
    %c0_19 = arith.constant 0 : index
    %38 = vector.load %arg15[%37, %c0_19] : memref<8x256xf32, #tpu.memory_space<vmem>>, vector<1x256xf32>
    %39 = arith.truncf %34 : vector<1x64xf32> to vector<1x64xbf16>
    %cst_20 = arith.constant dense<0.000000e+00> : vector<1x256xf32>
    %40 = tpu.matmul %39, %11, %cst_20 {dimension_numbers = #tpu.dot_dimension_numbers<[1], [0], [0], [1], [0, 0, 1, 1], [], []>} : vector<1x64xbf16>, vector<64x256xbf16>, vector<1x256xf32> -> vector<1x256xf32>
    %41 = arith.addf %38, %40 : vector<1x256xf32>
    %42 = vector.extract_strided_slice %41 {offsets = [0, 0], sizes = [1, 192], strides = [1, 1]} : vector<1x256xf32> to vector<1x192xf32>
    %43 = arith.negf %42 : vector<1x192xf32>
    %44 = math.exp %43 : vector<1x192xf32>
    %cst_21 = arith.constant 1.000000e+00 : f32
    %45 = vector.broadcast %cst_21 : f32 to vector<1x192xf32>
    %46 = arith.addf %45, %44 : vector<1x192xf32>
    %47 = arith.divf %45, %46 : vector<1x192xf32>
    %48 = vector.extract_strided_slice %47 {offsets = [0, 0], sizes = [1, 64], strides = [1, 1]} : vector<1x192xf32> to vector<1x64xf32>
    %49 = vector.extract_strided_slice %47 {offsets = [0, 64], sizes = [1, 64], strides = [1, 1]} : vector<1x192xf32> to vector<1x64xf32>
    %50 = vector.extract_strided_slice %47 {offsets = [0, 128], sizes = [1, 64], strides = [1, 1]} : vector<1x192xf32> to vector<1x64xf32>
    %51 = vector.extract_strided_slice %41 {offsets = [0, 192], sizes = [1, 64], strides = [1, 1]} : vector<1x256xf32> to vector<1x64xf32>
    %52 = math.tanh %51 : vector<1x64xf32>
    %53 = arith.mulf %49, %32 : vector<1x64xf32>
    %54 = arith.mulf %48, %52 : vector<1x64xf32>
    %55 = arith.addf %53, %54 : vector<1x64xf32>
    %56 = math.tanh %55 : vector<1x64xf32>
    %57 = arith.mulf %50, %56 : vector<1x64xf32>
    %58 = arith.index_cast %c1_i32 : i32 to index
    %c0_22 = arith.constant 0 : index
    %59 = vector.load %arg16[%58, %c0_22] : memref<8x64xf32, #tpu.memory_space<vmem>>, vector<1x64xf32>
    tpu.vector_store %arg16[%58, %c0_22], %57 {strides = array<i32>} : memref<8x64xf32, #tpu.memory_space<vmem>>, vector<1x64xf32>,
    %c2_i32 = arith.constant 2 : i32
    %60 = arith.index_cast %c2_i32 : i32 to index
    %c0_23 = arith.constant 0 : index
    %61 = vector.load %arg15[%60, %c0_23] : memref<8x256xf32, #tpu.memory_space<vmem>>, vector<1x256xf32>
    %62 = arith.truncf %57 : vector<1x64xf32> to vector<1x64xbf16>
    %cst_24 = arith.constant dense<0.000000e+00> : vector<1x256xf32>
    %63 = tpu.matmul %62, %11, %cst_24 {dimension_numbers = #tpu.dot_dimension_numbers<[1], [0], [0], [1], [0, 0, 1, 1], [], []>} : vector<1x64xbf16>, vector<64x256xbf16>, vector<1x256xf32> -> vector<1x256xf32>
    %64 = arith.addf %61, %63 : vector<1x256xf32>
    %65 = vector.extract_strided_slice %64 {offsets = [0, 0], sizes = [1, 192], strides = [1, 1]} : vector<1x256xf32> to vector<1x192xf32>
    %66 = arith.negf %65 : vector<1x192xf32>
    %67 = math.exp %66 : vector<1x192xf32>
    %cst_25 = arith.constant 1.000000e+00 : f32
    %68 = vector.broadcast %cst_25 : f32 to vector<1x192xf32>
    %69 = arith.addf %68, %67 : vector<1x192xf32>
    %70 = arith.divf %68, %69 : vector<1x192xf32>
    %71 = vector.extract_strided_slice %70 {offsets = [0, 0], sizes = [1, 64], strides = [1, 1]} : vector<1x192xf32> to vector<1x64xf32>
    %72 = vector.extract_strided_slice %70 {offsets = [0, 64], sizes = [1, 64], strides = [1, 1]} : vector<1x192xf32> to vector<1x64xf32>
    %73 = vector.extract_strided_slice %70 {offsets = [0, 128], sizes = [1, 64], strides = [1, 1]} : vector<1x192xf32> to vector<1x64xf32>
    %74 = vector.extract_strided_slice %64 {offsets = [0, 192], sizes = [1, 64], strides = [1, 1]} : vector<1x256xf32> to vector<1x64xf32>
    %75 = math.tanh %74 : vector<1x64xf32>
    %76 = arith.mulf %72, %55 : vector<1x64xf32>
    %77 = arith.mulf %71, %75 : vector<1x64xf32>
    %78 = arith.addf %76, %77 : vector<1x64xf32>
    %79 = math.tanh %78 : vector<1x64xf32>
    %80 = arith.mulf %73, %79 : vector<1x64xf32>
    %81 = arith.index_cast %c2_i32 : i32 to index
    %c0_26 = arith.constant 0 : index
    %82 = vector.load %arg16[%81, %c0_26] : memref<8x64xf32, #tpu.memory_space<vmem>>, vector<1x64xf32>
    tpu.vector_store %arg16[%81, %c0_26], %80 {strides = array<i32>} : memref<8x64xf32, #tpu.memory_space<vmem>>, vector<1x64xf32>,
    %c3_i32 = arith.constant 3 : i32
    %83 = arith.index_cast %c3_i32 : i32 to index
    %c0_27 = arith.constant 0 : index
    %84 = vector.load %arg15[%83, %c0_27] : memref<8x256xf32, #tpu.memory_space<vmem>>, vector<1x256xf32>
    %85 = arith.truncf %80 : vector<1x64xf32> to vector<1x64xbf16>
    %cst_28 = arith.constant dense<0.000000e+00> : vector<1x256xf32>
    %86 = tpu.matmul %85, %11, %cst_28 {dimension_numbers = #tpu.dot_dimension_numbers<[1], [0], [0], [1], [0, 0, 1, 1], [], []>} : vector<1x64xbf16>, vector<64x256xbf16>, vector<1x256xf32> -> vector<1x256xf32>
    %87 = arith.addf %84, %86 : vector<1x256xf32>
    %88 = vector.extract_strided_slice %87 {offsets = [0, 0], sizes = [1, 192], strides = [1, 1]} : vector<1x256xf32> to vector<1x192xf32>
    %89 = arith.negf %88 : vector<1x192xf32>
    %90 = math.exp %89 : vector<1x192xf32>
    %cst_29 = arith.constant 1.000000e+00 : f32
    %91 = vector.broadcast %cst_29 : f32 to vector<1x192xf32>
    %92 = arith.addf %91, %90 : vector<1x192xf32>
    %93 = arith.divf %91, %92 : vector<1x192xf32>
    %94 = vector.extract_strided_slice %93 {offsets = [0, 0], sizes = [1, 64], strides = [1, 1]} : vector<1x192xf32> to vector<1x64xf32>
    %95 = vector.extract_strided_slice %93 {offsets = [0, 64], sizes = [1, 64], strides = [1, 1]} : vector<1x192xf32> to vector<1x64xf32>
    %96 = vector.extract_strided_slice %93 {offsets = [0, 128], sizes = [1, 64], strides = [1, 1]} : vector<1x192xf32> to vector<1x64xf32>
    %97 = vector.extract_strided_slice %87 {offsets = [0, 192], sizes = [1, 64], strides = [1, 1]} : vector<1x256xf32> to vector<1x64xf32>
    %98 = math.tanh %97 : vector<1x64xf32>
    %99 = arith.mulf %95, %78 : vector<1x64xf32>
    %100 = arith.mulf %94, %98 : vector<1x64xf32>
    %101 = arith.addf %99, %100 : vector<1x64xf32>
    %102 = math.tanh %101 : vector<1x64xf32>
    %103 = arith.mulf %96, %102 : vector<1x64xf32>
    %104 = arith.index_cast %c3_i32 : i32 to index
    %c0_30 = arith.constant 0 : index
    %105 = vector.load %arg16[%104, %c0_30] : memref<8x64xf32, #tpu.memory_space<vmem>>, vector<1x64xf32>
    tpu.vector_store %arg16[%104, %c0_30], %103 {strides = array<i32>} : memref<8x64xf32, #tpu.memory_space<vmem>>, vector<1x64xf32>,
    %c4_i32 = arith.constant 4 : i32
    %106 = arith.index_cast %c4_i32 : i32 to index
    %c0_31 = arith.constant 0 : index
    %107 = vector.load %arg15[%106, %c0_31] : memref<8x256xf32, #tpu.memory_space<vmem>>, vector<1x256xf32>
    %108 = arith.truncf %103 : vector<1x64xf32> to vector<1x64xbf16>
    %cst_32 = arith.constant dense<0.000000e+00> : vector<1x256xf32>
    %109 = tpu.matmul %108, %11, %cst_32 {dimension_numbers = #tpu.dot_dimension_numbers<[1], [0], [0], [1], [0, 0, 1, 1], [], []>} : vector<1x64xbf16>, vector<64x256xbf16>, vector<1x256xf32> -> vector<1x256xf32>
    %110 = arith.addf %107, %109 : vector<1x256xf32>
    %111 = vector.extract_strided_slice %110 {offsets = [0, 0], sizes = [1, 192], strides = [1, 1]} : vector<1x256xf32> to vector<1x192xf32>
    %112 = arith.negf %111 : vector<1x192xf32>
    %113 = math.exp %112 : vector<1x192xf32>
    %cst_33 = arith.constant 1.000000e+00 : f32
    %114 = vector.broadcast %cst_33 : f32 to vector<1x192xf32>
    %115 = arith.addf %114, %113 : vector<1x192xf32>
    %116 = arith.divf %114, %115 : vector<1x192xf32>
    %117 = vector.extract_strided_slice %116 {offsets = [0, 0], sizes = [1, 64], strides = [1, 1]} : vector<1x192xf32> to vector<1x64xf32>
    %118 = vector.extract_strided_slice %116 {offsets = [0, 64], sizes = [1, 64], strides = [1, 1]} : vector<1x192xf32> to vector<1x64xf32>
    %119 = vector.extract_strided_slice %116 {offsets = [0, 128], sizes = [1, 64], strides = [1, 1]} : vector<1x192xf32> to vector<1x64xf32>
    %120 = vector.extract_strided_slice %110 {offsets = [0, 192], sizes = [1, 64], strides = [1, 1]} : vector<1x256xf32> to vector<1x64xf32>
    %121 = math.tanh %120 : vector<1x64xf32>
    %122 = arith.mulf %118, %101 : vector<1x64xf32>
    %123 = arith.mulf %117, %121 : vector<1x64xf32>
    %124 = arith.addf %122, %123 : vector<1x64xf32>
    %125 = math.tanh %124 : vector<1x64xf32>
    %126 = arith.mulf %119, %125 : vector<1x64xf32>
    %127 = arith.index_cast %c4_i32 : i32 to index
    %c0_34 = arith.constant 0 : index
    %128 = vector.load %arg16[%127, %c0_34] : memref<8x64xf32, #tpu.memory_space<vmem>>, vector<1x64xf32>
    tpu.vector_store %arg16[%127, %c0_34], %126 {strides = array<i32>} : memref<8x64xf32, #tpu.memory_space<vmem>>, vector<1x64xf32>,
    %c5_i32 = arith.constant 5 : i32
    %129 = arith.index_cast %c5_i32 : i32 to index
    %c0_35 = arith.constant 0 : index
    %130 = vector.load %arg15[%129, %c0_35] : memref<8x256xf32, #tpu.memory_space<vmem>>, vector<1x256xf32>
    %131 = arith.truncf %126 : vector<1x64xf32> to vector<1x64xbf16>
    %cst_36 = arith.constant dense<0.000000e+00> : vector<1x256xf32>
    %132 = tpu.matmul %131, %11, %cst_36 {dimension_numbers = #tpu.dot_dimension_numbers<[1], [0], [0], [1], [0, 0, 1, 1], [], []>} : vector<1x64xbf16>, vector<64x256xbf16>, vector<1x256xf32> -> vector<1x256xf32>
    %133 = arith.addf %130, %132 : vector<1x256xf32>
    %134 = vector.extract_strided_slice %133 {offsets = [0, 0], sizes = [1, 192], strides = [1, 1]} : vector<1x256xf32> to vector<1x192xf32>
    %135 = arith.negf %134 : vector<1x192xf32>
    %136 = math.exp %135 : vector<1x192xf32>
    %cst_37 = arith.constant 1.000000e+00 : f32
    %137 = vector.broadcast %cst_37 : f32 to vector<1x192xf32>
    %138 = arith.addf %137, %136 : vector<1x192xf32>
    %139 = arith.divf %137, %138 : vector<1x192xf32>
    %140 = vector.extract_strided_slice %139 {offsets = [0, 0], sizes = [1, 64], strides = [1, 1]} : vector<1x192xf32> to vector<1x64xf32>
    %141 = vector.extract_strided_slice %139 {offsets = [0, 64], sizes = [1, 64], strides = [1, 1]} : vector<1x192xf32> to vector<1x64xf32>
    %142 = vector.extract_strided_slice %139 {offsets = [0, 128], sizes = [1, 64], strides = [1, 1]} : vector<1x192xf32> to vector<1x64xf32>
    %143 = vector.extract_strided_slice %133 {offsets = [0, 192], sizes = [1, 64], strides = [1, 1]} : vector<1x256xf32> to vector<1x64xf32>
    %144 = math.tanh %143 : vector<1x64xf32>
    %145 = arith.mulf %141, %124 : vector<1x64xf32>
    %146 = arith.mulf %140, %144 : vector<1x64xf32>
    %147 = arith.addf %145, %146 : vector<1x64xf32>
    %148 = math.tanh %147 : vector<1x64xf32>
    %149 = arith.mulf %142, %148 : vector<1x64xf32>
    %150 = arith.index_cast %c5_i32 : i32 to index
    %c0_38 = arith.constant 0 : index
    %151 = vector.load %arg16[%150, %c0_38] : memref<8x64xf32, #tpu.memory_space<vmem>>, vector<1x64xf32>
    tpu.vector_store %arg16[%150, %c0_38], %149 {strides = array<i32>} : memref<8x64xf32, #tpu.memory_space<vmem>>, vector<1x64xf32>,
    %c6_i32 = arith.constant 6 : i32
    %152 = arith.index_cast %c6_i32 : i32 to index
    %c0_39 = arith.constant 0 : index
    %153 = vector.load %arg15[%152, %c0_39] : memref<8x256xf32, #tpu.memory_space<vmem>>, vector<1x256xf32>
    %154 = arith.truncf %149 : vector<1x64xf32> to vector<1x64xbf16>
    %cst_40 = arith.constant dense<0.000000e+00> : vector<1x256xf32>
    %155 = tpu.matmul %154, %11, %cst_40 {dimension_numbers = #tpu.dot_dimension_numbers<[1], [0], [0], [1], [0, 0, 1, 1], [], []>} : vector<1x64xbf16>, vector<64x256xbf16>, vector<1x256xf32> -> vector<1x256xf32>
    %156 = arith.addf %153, %155 : vector<1x256xf32>
    %157 = vector.extract_strided_slice %156 {offsets = [0, 0], sizes = [1, 192], strides = [1, 1]} : vector<1x256xf32> to vector<1x192xf32>
    %158 = arith.negf %157 : vector<1x192xf32>
    %159 = math.exp %158 : vector<1x192xf32>
    %cst_41 = arith.constant 1.000000e+00 : f32
    %160 = vector.broadcast %cst_41 : f32 to vector<1x192xf32>
    %161 = arith.addf %160, %159 : vector<1x192xf32>
    %162 = arith.divf %160, %161 : vector<1x192xf32>
    %163 = vector.extract_strided_slice %162 {offsets = [0, 0], sizes = [1, 64], strides = [1, 1]} : vector<1x192xf32> to vector<1x64xf32>
    %164 = vector.extract_strided_slice %162 {offsets = [0, 64], sizes = [1, 64], strides = [1, 1]} : vector<1x192xf32> to vector<1x64xf32>
    %165 = vector.extract_strided_slice %162 {offsets = [0, 128], sizes = [1, 64], strides = [1, 1]} : vector<1x192xf32> to vector<1x64xf32>
    %166 = vector.extract_strided_slice %156 {offsets = [0, 192], sizes = [1, 64], strides = [1, 1]} : vector<1x256xf32> to vector<1x64xf32>
    %167 = math.tanh %166 : vector<1x64xf32>
    %168 = arith.mulf %164, %147 : vector<1x64xf32>
    %169 = arith.mulf %163, %167 : vector<1x64xf32>
    %170 = arith.addf %168, %169 : vector<1x64xf32>
    %171 = math.tanh %170 : vector<1x64xf32>
    %172 = arith.mulf %165, %171 : vector<1x64xf32>
    %173 = arith.index_cast %c6_i32 : i32 to index
    %c0_42 = arith.constant 0 : index
    %174 = vector.load %arg16[%173, %c0_42] : memref<8x64xf32, #tpu.memory_space<vmem>>, vector<1x64xf32>
    tpu.vector_store %arg16[%173, %c0_42], %172 {strides = array<i32>} : memref<8x64xf32, #tpu.memory_space<vmem>>, vector<1x64xf32>,
    %c7_i32 = arith.constant 7 : i32
    %175 = arith.index_cast %c7_i32 : i32 to index
    %c0_43 = arith.constant 0 : index
    %176 = vector.load %arg15[%175, %c0_43] : memref<8x256xf32, #tpu.memory_space<vmem>>, vector<1x256xf32>
    %177 = arith.truncf %172 : vector<1x64xf32> to vector<1x64xbf16>
    %cst_44 = arith.constant dense<0.000000e+00> : vector<1x256xf32>
    %178 = tpu.matmul %177, %11, %cst_44 {dimension_numbers = #tpu.dot_dimension_numbers<[1], [0], [0], [1], [0, 0, 1, 1], [], []>} : vector<1x64xbf16>, vector<64x256xbf16>, vector<1x256xf32> -> vector<1x256xf32>
    %179 = arith.addf %176, %178 : vector<1x256xf32>
    %180 = vector.extract_strided_slice %179 {offsets = [0, 0], sizes = [1, 192], strides = [1, 1]} : vector<1x256xf32> to vector<1x192xf32>
    %181 = arith.negf %180 : vector<1x192xf32>
    %182 = math.exp %181 : vector<1x192xf32>
    %cst_45 = arith.constant 1.000000e+00 : f32
    %183 = vector.broadcast %cst_45 : f32 to vector<1x192xf32>
    %184 = arith.addf %183, %182 : vector<1x192xf32>
    %185 = arith.divf %183, %184 : vector<1x192xf32>
    %186 = vector.extract_strided_slice %185 {offsets = [0, 0], sizes = [1, 64], strides = [1, 1]} : vector<1x192xf32> to vector<1x64xf32>
    %187 = vector.extract_strided_slice %185 {offsets = [0, 64], sizes = [1, 64], strides = [1, 1]} : vector<1x192xf32> to vector<1x64xf32>
    %188 = vector.extract_strided_slice %185 {offsets = [0, 128], sizes = [1, 64], strides = [1, 1]} : vector<1x192xf32> to vector<1x64xf32>
    %189 = vector.extract_strided_slice %179 {offsets = [0, 192], sizes = [1, 64], strides = [1, 1]} : vector<1x256xf32> to vector<1x64xf32>
    %190 = math.tanh %189 : vector<1x64xf32>
    %191 = arith.mulf %187, %170 : vector<1x64xf32>
    %192 = arith.mulf %186, %190 : vector<1x64xf32>
    %193 = arith.addf %191, %192 : vector<1x64xf32>
    %194 = math.tanh %193 : vector<1x64xf32>
    %195 = arith.mulf %188, %194 : vector<1x64xf32>
    %196 = arith.index_cast %c7_i32 : i32 to index
    %c0_46 = arith.constant 0 : index
    %197 = vector.load %arg16[%196, %c0_46] : memref<8x64xf32, #tpu.memory_space<vmem>>, vector<1x64xf32>
    tpu.vector_store %arg16[%196, %c0_46], %195 {strides = array<i32>} : memref<8x64xf32, #tpu.memory_space<vmem>>, vector<1x64xf32>,
    %c8_i32 = arith.constant 8 : i32
    %c0_i32_47 = arith.constant 0 : i32
    %c0_i32_48 = arith.constant 0 : i32
    %c0_i32_49 = arith.constant 0 : i32
    %198 = tpu.memref_slice %arg2[%arg0, %c0_i32_47, %c0_i32_48, %c0_i32_49] : memref<2x8x8x128xbf16, #tpu.memory_space<any>> -> memref<1x8x8x128xbf16, #tpu.memory_space<any>>
    %199 = tpu.memref_squeeze %198 : memref<1x8x8x128xbf16, #tpu.memory_space<any>> -> memref<8x8x128xbf16, #tpu.memory_space<any>>
    tpu.wait_dma2 semaphore(%arg14 : memref<!tpu.dma_semaphore, #tpu.memory_space<semaphore_mem>>) src(%199 : memref<8x8x128xbf16, #tpu.memory_space<any>>) dst(%arg13 : memref<8x8x128xbf16, #tpu.memory_space<vmem>>)
    %c0_50 = arith.constant 0 : index
    %c0_51 = arith.constant 0 : index
    %200 = vector.load %arg16[%c0_50, %c0_51] : memref<8x64xf32, #tpu.memory_space<vmem>>, vector<8x64xf32>
    %201 = arith.truncf %200 : vector<8x64xf32> to vector<8x64xbf16>
    %c0_52 = arith.constant 0 : index
    %c0_53 = arith.constant 0 : index
    %c0_54 = arith.constant 0 : index
    %202 = vector.load %arg13[%c0_52, %c0_53, %c0_54] : memref<8x8x128xbf16, #tpu.memory_space<vmem>>, vector<8x8x128xbf16>
    %c0_55 = arith.constant 0 : index
    %c0_56 = arith.constant 0 : index
    %203 = vector.load %arg6[%c0_55, %c0_56] : memref<64x128xbf16, #tpu.memory_space<vmem>>, vector<64x128xbf16>
    %cst_57 = arith.constant dense<0.000000e+00> : vector<8x128xf32>
    %204 = tpu.matmul %201, %203, %cst_57 {dimension_numbers = #tpu.dot_dimension_numbers<[1], [0], [0], [1], [0, 0, 1, 1], [], []>} : vector<8x64xbf16>, vector<64x128xbf16>, vector<8x128xf32> -> vector<8x128xf32>
    %205 = arith.truncf %204 : vector<8x128xf32> to vector<8x128xbf16>
    %206 = vector.shape_cast %205 : vector<8x128xbf16> to vector<8x1x128xbf16>
    "tpu.trace_start"() <{level = 10 : i32, message = "bqd,bkd->bqk"}> : () -> ()
    %cst_58 = arith.constant dense<0.000000e+00> : vector<8x1x8xf32>
    %207 = tpu.matmul %206, %202, %cst_58 {dimension_numbers = #tpu.dot_dimension_numbers<[2], [2], [1], [1], [0, 0, 0, 1, 1, 1], [0], [0]>} : vector<8x1x128xbf16>, vector<8x8x128xbf16>, vector<8x1x8xf32> -> vector<8x1x8xf32>
    "tpu.trace_stop"() : () -> ()
    %cst_59 = arith.constant dense<0xFF800000> : vector<8x1xf32>
    %208 = vector.multi_reduction <maximumf>, %207, %cst_59 [2] : vector<8x1x8xf32> to vector<8x1xf32>
    %209 = vector.shape_cast %208 : vector<8x1xf32> to vector<8x1x1xf32>
    %210 = vector.broadcast %209 : vector<8x1x1xf32> to vector<8x1x8xf32>
    %211 = arith.subf %207, %210 : vector<8x1x8xf32>
    %212 = math.exp %211 : vector<8x1x8xf32>
    %cst_60 = arith.constant dense<0.000000e+00> : vector<8x1xf32>
    %213 = vector.multi_reduction <add>, %212, %cst_60 [2] : vector<8x1x8xf32> to vector<8x1xf32>
    %214 = vector.shape_cast %213 : vector<8x1xf32> to vector<8x1x1xf32>
    %215 = tpu.reciprocal %214 {approx = true} : vector<8x1x1xf32> -> vector<8x1x1xf32>
    %216 = vector.broadcast %215 : vector<8x1x1xf32> to vector<8x1x8xf32>
    %217 = arith.mulf %212, %216 : vector<8x1x8xf32>
    %218 = arith.truncf %217 : vector<8x1x8xf32> to vector<8x1x8xbf16>
    "tpu.trace_start"() <{level = 10 : i32, message = "bqk,bkd->bqd"}> : () -> ()
    %cst_61 = arith.constant dense<0.000000e+00> : vector<8x1x128xf32>
    %219 = tpu.matmul %218, %202, %cst_61 {dimension_numbers = #tpu.dot_dimension_numbers<[2], [1], [1], [2], [0, 0, 0, 1, 1, 2], [0], [0]>} : vector<8x1x8xbf16>, vector<8x8x128xbf16>, vector<8x1x128xf32> -> vector<8x1x128xf32>
    "tpu.trace_stop"() : () -> ()
    %220 = vector.shape_cast %219 : vector<8x1x128xf32> to vector<8x128xf32>
    %221 = arith.truncf %220 : vector<8x128xf32> to vector<8x128xbf16>
    %c0_62 = arith.constant 0 : index
    %c0_63 = arith.constant 0 : index
    %222 = vector.load %arg7[%c0_62, %c0_63] : memref<128x64xbf16, #tpu.memory_space<vmem>>, vector<128x64xbf16>
    %cst_64 = arith.constant dense<0.000000e+00> : vector<8x64xf32>
    %223 = tpu.matmul %221, %222, %cst_64 {dimension_numbers = #tpu.dot_dimension_numbers<[1], [0], [0], [1], [0, 0, 1, 1], [], []>} : vector<8x128xbf16>, vector<128x64xbf16>, vector<8x64xf32> -> vector<8x64xf32>
    %c0_65 = arith.constant 0 : index
    %c0_66 = arith.constant 0 : index
    %224 = vector.load %arg8[%c0_65, %c0_66] : memref<64x64xbf16, #tpu.memory_space<vmem>>, vector<64x64xbf16>
    %cst_67 = arith.constant dense<0.000000e+00> : vector<8x64xf32>
    %225 = tpu.matmul %201, %224, %cst_67 {dimension_numbers = #tpu.dot_dimension_numbers<[1], [0], [0], [1], [0, 0, 1, 1], [], []>} : vector<8x64xbf16>, vector<64x64xbf16>, vector<8x64xf32> -> vector<8x64xf32>
    %226 = arith.addf %223, %225 : vector<8x64xf32>
    %227 = math.tanh %226 : vector<8x64xf32>
    %228 = arith.truncf %227 : vector<8x64xf32> to vector<8x64xbf16>
    %c0_68 = arith.constant 0 : index
    %c0_69 = arith.constant 0 : index
    %229 = vector.load %arg9[%c0_68, %c0_69] : memref<64x256xbf16, #tpu.memory_space<vmem>>, vector<64x256xbf16>
    %cst_70 = arith.constant dense<0.000000e+00> : vector<8x256xf32>
    %230 = tpu.matmul %228, %229, %cst_70 {dimension_numbers = #tpu.dot_dimension_numbers<[1], [0], [0], [1], [0, 0, 1, 1], [], []>} : vector<8x64xbf16>, vector<64x256xbf16>, vector<8x256xf32> -> vector<8x256xf32>
    %c0_71 = arith.constant 0 : index
    %c0_72 = arith.constant 0 : index
    %231 = vector.load %arg11[%c0_71, %c0_72] : memref<1x256xf32, #tpu.memory_space<vmem>>, vector<1x256xf32>
    %232 = vector.broadcast %231 : vector<1x256xf32> to vector<8x256xf32>
    %233 = arith.addf %230, %232 : vector<8x256xf32>
    %c0_73 = arith.constant 0 : index
    %c0_74 = arith.constant 0 : index
    %234 = vector.load %arg15[%c0_73, %c0_74] : memref<8x256xf32, #tpu.memory_space<vmem>>, vector<8x256xf32>
    tpu.vector_store %arg15[%c0_73, %c0_74], %233 {strides = array<i32>} : memref<8x256xf32, #tpu.memory_space<vmem>>, vector<8x256xf32>,
    %c0_75 = arith.constant 0 : index
    %c0_76 = arith.constant 0 : index
    %235 = vector.load %arg10[%c0_75, %c0_76] : memref<64x256xbf16, #tpu.memory_space<vmem>>, vector<64x256xbf16>
    %cst_77 = arith.constant 0.000000e+00 : f32
    %236 = vector.broadcast %cst_77 : f32 to vector<1x64xf32>
    %cst_78 = arith.constant 0.000000e+00 : f32
    %237 = vector.broadcast %cst_78 : f32 to vector<1x64xf32>
    %c0_i32_79 = arith.constant 0 : i32
    %238 = arith.index_cast %c0_i32_79 : i32 to index
    %c0_80 = arith.constant 0 : index
    %239 = vector.load %arg15[%238, %c0_80] : memref<8x256xf32, #tpu.memory_space<vmem>>, vector<1x256xf32>
    %240 = arith.truncf %236 : vector<1x64xf32> to vector<1x64xbf16>
    %cst_81 = arith.constant dense<0.000000e+00> : vector<1x256xf32>
    %241 = tpu.matmul %240, %235, %cst_81 {dimension_numbers = #tpu.dot_dimension_numbers<[1], [0], [0], [1], [0, 0, 1, 1], [], []>} : vector<1x64xbf16>, vector<64x256xbf16>, vector<1x256xf32> -> vector<1x256xf32>
    %242 = arith.addf %239, %241 : vector<1x256xf32>
    %243 = vector.extract_strided_slice %242 {offsets = [0, 0], sizes = [1, 192], strides = [1, 1]} : vector<1x256xf32> to vector<1x192xf32>
    %244 = arith.negf %243 : vector<1x192xf32>
    %245 = math.exp %244 : vector<1x192xf32>
    %cst_82 = arith.constant 1.000000e+00 : f32
    %246 = vector.broadcast %cst_82 : f32 to vector<1x192xf32>
    %247 = arith.addf %246, %245 : vector<1x192xf32>
    %248 = arith.divf %246, %247 : vector<1x192xf32>
    %249 = vector.extract_strided_slice %248 {offsets = [0, 0], sizes = [1, 64], strides = [1, 1]} : vector<1x192xf32> to vector<1x64xf32>
    %250 = vector.extract_strided_slice %248 {offsets = [0, 64], sizes = [1, 64], strides = [1, 1]} : vector<1x192xf32> to vector<1x64xf32>
    %251 = vector.extract_strided_slice %248 {offsets = [0, 128], sizes = [1, 64], strides = [1, 1]} : vector<1x192xf32> to vector<1x64xf32>
    %252 = vector.extract_strided_slice %242 {offsets = [0, 192], sizes = [1, 64], strides = [1, 1]} : vector<1x256xf32> to vector<1x64xf32>
    %253 = math.tanh %252 : vector<1x64xf32>
    %254 = arith.mulf %250, %237 : vector<1x64xf32>
    %255 = arith.mulf %249, %253 : vector<1x64xf32>
    %256 = arith.addf %254, %255 : vector<1x64xf32>
    %257 = math.tanh %256 : vector<1x64xf32>
    %258 = arith.mulf %251, %257 : vector<1x64xf32>
    %c0_83 = arith.constant 0 : index
    %259 = arith.index_cast %c0_i32_79 : i32 to index
    %c0_84 = arith.constant 0 : index
    %260 = vector.load %arg12[%c0_83, %259, %c0_84] : memref<1x8x64xf32, #tpu.memory_space<vmem>>, vector<1x1x64xf32>
    %261 = vector.shape_cast %260 : vector<1x1x64xf32> to vector<1x64xf32>
    %262 = vector.shape_cast %258 : vector<1x64xf32> to vector<1x1x64xf32>
    tpu.vector_store %arg12[%c0_83, %259, %c0_84], %262 {strides = array<i32>} : memref<1x8x64xf32, #tpu.memory_space<vmem>>, vector<1x1x64xf32>,
    %c1_i32_85 = arith.constant 1 : i32
    %263 = arith.index_cast %c1_i32_85 : i32 to index
    %c0_86 = arith.constant 0 : index
    %264 = vector.load %arg15[%263, %c0_86] : memref<8x256xf32, #tpu.memory_space<vmem>>, vector<1x256xf32>
    %265 = arith.truncf %258 : vector<1x64xf32> to vector<1x64xbf16>
    %cst_87 = arith.constant dense<0.000000e+00> : vector<1x256xf32>
    %266 = tpu.matmul %265, %235, %cst_87 {dimension_numbers = #tpu.dot_dimension_numbers<[1], [0], [0], [1], [0, 0, 1, 1], [], []>} : vector<1x64xbf16>, vector<64x256xbf16>, vector<1x256xf32> -> vector<1x256xf32>
    %267 = arith.addf %264, %266 : vector<1x256xf32>
    %268 = vector.extract_strided_slice %267 {offsets = [0, 0], sizes = [1, 192], strides = [1, 1]} : vector<1x256xf32> to vector<1x192xf32>
    %269 = arith.negf %268 : vector<1x192xf32>
    %270 = math.exp %269 : vector<1x192xf32>
    %cst_88 = arith.constant 1.000000e+00 : f32
    %271 = vector.broadcast %cst_88 : f32 to vector<1x192xf32>
    %272 = arith.addf %271, %270 : vector<1x192xf32>
    %273 = arith.divf %271, %272 : vector<1x192xf32>
    %274 = vector.extract_strided_slice %273 {offsets = [0, 0], sizes = [1, 64], strides = [1, 1]} : vector<1x192xf32> to vector<1x64xf32>
    %275 = vector.extract_strided_slice %273 {offsets = [0, 64], sizes = [1, 64], strides = [1, 1]} : vector<1x192xf32> to vector<1x64xf32>
    %276 = vector.extract_strided_slice %273 {offsets = [0, 128], sizes = [1, 64], strides = [1, 1]} : vector<1x192xf32> to vector<1x64xf32>
    %277 = vector.extract_strided_slice %267 {offsets = [0, 192], sizes = [1, 64], strides = [1, 1]} : vector<1x256xf32> to vector<1x64xf32>
    %278 = math.tanh %277 : vector<1x64xf32>
    %279 = arith.mulf %275, %256 : vector<1x64xf32>
    %280 = arith.mulf %274, %278 : vector<1x64xf32>
    %281 = arith.addf %279, %280 : vector<1x64xf32>
    %282 = math.tanh %281 : vector<1x64xf32>
    %283 = arith.mulf %276, %282 : vector<1x64xf32>
    %c0_89 = arith.constant 0 : index
    %284 = arith.index_cast %c1_i32_85 : i32 to index
    %c0_90 = arith.constant 0 : index
    %285 = vector.load %arg12[%c0_89, %284, %c0_90] : memref<1x8x64xf32, #tpu.memory_space<vmem>>, vector<1x1x64xf32>
    %286 = vector.shape_cast %285 : vector<1x1x64xf32> to vector<1x64xf32>
    %287 = vector.shape_cast %283 : vector<1x64xf32> to vector<1x1x64xf32>
    tpu.vector_store %arg12[%c0_89, %284, %c0_90], %287 {strides = array<i32>} : memref<1x8x64xf32, #tpu.memory_space<vmem>>, vector<1x1x64xf32>,
    %c2_i32_91 = arith.constant 2 : i32
    %288 = arith.index_cast %c2_i32_91 : i32 to index
    %c0_92 = arith.constant 0 : index
    %289 = vector.load %arg15[%288, %c0_92] : memref<8x256xf32, #tpu.memory_space<vmem>>, vector<1x256xf32>
    %290 = arith.truncf %283 : vector<1x64xf32> to vector<1x64xbf16>
    %cst_93 = arith.constant dense<0.000000e+00> : vector<1x256xf32>
    %291 = tpu.matmul %290, %235, %cst_93 {dimension_numbers = #tpu.dot_dimension_numbers<[1], [0], [0], [1], [0, 0, 1, 1], [], []>} : vector<1x64xbf16>, vector<64x256xbf16>, vector<1x256xf32> -> vector<1x256xf32>
    %292 = arith.addf %289, %291 : vector<1x256xf32>
    %293 = vector.extract_strided_slice %292 {offsets = [0, 0], sizes = [1, 192], strides = [1, 1]} : vector<1x256xf32> to vector<1x192xf32>
    %294 = arith.negf %293 : vector<1x192xf32>
    %295 = math.exp %294 : vector<1x192xf32>
    %cst_94 = arith.constant 1.000000e+00 : f32
    %296 = vector.broadcast %cst_94 : f32 to vector<1x192xf32>
    %297 = arith.addf %296, %295 : vector<1x192xf32>
    %298 = arith.divf %296, %297 : vector<1x192xf32>
    %299 = vector.extract_strided_slice %298 {offsets = [0, 0], sizes = [1, 64], strides = [1, 1]} : vector<1x192xf32> to vector<1x64xf32>
    %300 = vector.extract_strided_slice %298 {offsets = [0, 64], sizes = [1, 64], strides = [1, 1]} : vector<1x192xf32> to vector<1x64xf32>
    %301 = vector.extract_strided_slice %298 {offsets = [0, 128], sizes = [1, 64], strides = [1, 1]} : vector<1x192xf32> to vector<1x64xf32>
    %302 = vector.extract_strided_slice %292 {offsets = [0, 192], sizes = [1, 64], strides = [1, 1]} : vector<1x256xf32> to vector<1x64xf32>
    %303 = math.tanh %302 : vector<1x64xf32>
    %304 = arith.mulf %300, %281 : vector<1x64xf32>
    %305 = arith.mulf %299, %303 : vector<1x64xf32>
    %306 = arith.addf %304, %305 : vector<1x64xf32>
    %307 = math.tanh %306 : vector<1x64xf32>
    %308 = arith.mulf %301, %307 : vector<1x64xf32>
    %c0_95 = arith.constant 0 : index
    %309 = arith.index_cast %c2_i32_91 : i32 to index
    %c0_96 = arith.constant 0 : index
    %310 = vector.load %arg12[%c0_95, %309, %c0_96] : memref<1x8x64xf32, #tpu.memory_space<vmem>>, vector<1x1x64xf32>
    %311 = vector.shape_cast %310 : vector<1x1x64xf32> to vector<1x64xf32>
    %312 = vector.shape_cast %308 : vector<1x64xf32> to vector<1x1x64xf32>
    tpu.vector_store %arg12[%c0_95, %309, %c0_96], %312 {strides = array<i32>} : memref<1x8x64xf32, #tpu.memory_space<vmem>>, vector<1x1x64xf32>,
    %c3_i32_97 = arith.constant 3 : i32
    %313 = arith.index_cast %c3_i32_97 : i32 to index
    %c0_98 = arith.constant 0 : index
    %314 = vector.load %arg15[%313, %c0_98] : memref<8x256xf32, #tpu.memory_space<vmem>>, vector<1x256xf32>
    %315 = arith.truncf %308 : vector<1x64xf32> to vector<1x64xbf16>
    %cst_99 = arith.constant dense<0.000000e+00> : vector<1x256xf32>
    %316 = tpu.matmul %315, %235, %cst_99 {dimension_numbers = #tpu.dot_dimension_numbers<[1], [0], [0], [1], [0, 0, 1, 1], [], []>} : vector<1x64xbf16>, vector<64x256xbf16>, vector<1x256xf32> -> vector<1x256xf32>
    %317 = arith.addf %314, %316 : vector<1x256xf32>
    %318 = vector.extract_strided_slice %317 {offsets = [0, 0], sizes = [1, 192], strides = [1, 1]} : vector<1x256xf32> to vector<1x192xf32>
    %319 = arith.negf %318 : vector<1x192xf32>
    %320 = math.exp %319 : vector<1x192xf32>
    %cst_100 = arith.constant 1.000000e+00 : f32
    %321 = vector.broadcast %cst_100 : f32 to vector<1x192xf32>
    %322 = arith.addf %321, %320 : vector<1x192xf32>
    %323 = arith.divf %321, %322 : vector<1x192xf32>
    %324 = vector.extract_strided_slice %323 {offsets = [0, 0], sizes = [1, 64], strides = [1, 1]} : vector<1x192xf32> to vector<1x64xf32>
    %325 = vector.extract_strided_slice %323 {offsets = [0, 64], sizes = [1, 64], strides = [1, 1]} : vector<1x192xf32> to vector<1x64xf32>
    %326 = vector.extract_strided_slice %323 {offsets = [0, 128], sizes = [1, 64], strides = [1, 1]} : vector<1x192xf32> to vector<1x64xf32>
    %327 = vector.extract_strided_slice %317 {offsets = [0, 192], sizes = [1, 64], strides = [1, 1]} : vector<1x256xf32> to vector<1x64xf32>
    %328 = math.tanh %327 : vector<1x64xf32>
    %329 = arith.mulf %325, %306 : vector<1x64xf32>
    %330 = arith.mulf %324, %328 : vector<1x64xf32>
    %331 = arith.addf %329, %330 : vector<1x64xf32>
    %332 = math.tanh %331 : vector<1x64xf32>
    %333 = arith.mulf %326, %332 : vector<1x64xf32>
    %c0_101 = arith.constant 0 : index
    %334 = arith.index_cast %c3_i32_97 : i32 to index
    %c0_102 = arith.constant 0 : index
    %335 = vector.load %arg12[%c0_101, %334, %c0_102] : memref<1x8x64xf32, #tpu.memory_space<vmem>>, vector<1x1x64xf32>
    %336 = vector.shape_cast %335 : vector<1x1x64xf32> to vector<1x64xf32>
    %337 = vector.shape_cast %333 : vector<1x64xf32> to vector<1x1x64xf32>
    tpu.vector_store %arg12[%c0_101, %334, %c0_102], %337 {strides = array<i32>} : memref<1x8x64xf32, #tpu.memory_space<vmem>>, vector<1x1x64xf32>,
    %c4_i32_103 = arith.constant 4 : i32
    %338 = arith.index_cast %c4_i32_103 : i32 to index
    %c0_104 = arith.constant 0 : index
    %339 = vector.load %arg15[%338, %c0_104] : memref<8x256xf32, #tpu.memory_space<vmem>>, vector<1x256xf32>
    %340 = arith.truncf %333 : vector<1x64xf32> to vector<1x64xbf16>
    %cst_105 = arith.constant dense<0.000000e+00> : vector<1x256xf32>
    %341 = tpu.matmul %340, %235, %cst_105 {dimension_numbers = #tpu.dot_dimension_numbers<[1], [0], [0], [1], [0, 0, 1, 1], [], []>} : vector<1x64xbf16>, vector<64x256xbf16>, vector<1x256xf32> -> vector<1x256xf32>
    %342 = arith.addf %339, %341 : vector<1x256xf32>
    %343 = vector.extract_strided_slice %342 {offsets = [0, 0], sizes = [1, 192], strides = [1, 1]} : vector<1x256xf32> to vector<1x192xf32>
    %344 = arith.negf %343 : vector<1x192xf32>
    %345 = math.exp %344 : vector<1x192xf32>
    %cst_106 = arith.constant 1.000000e+00 : f32
    %346 = vector.broadcast %cst_106 : f32 to vector<1x192xf32>
    %347 = arith.addf %346, %345 : vector<1x192xf32>
    %348 = arith.divf %346, %347 : vector<1x192xf32>
    %349 = vector.extract_strided_slice %348 {offsets = [0, 0], sizes = [1, 64], strides = [1, 1]} : vector<1x192xf32> to vector<1x64xf32>
    %350 = vector.extract_strided_slice %348 {offsets = [0, 64], sizes = [1, 64], strides = [1, 1]} : vector<1x192xf32> to vector<1x64xf32>
    %351 = vector.extract_strided_slice %348 {offsets = [0, 128], sizes = [1, 64], strides = [1, 1]} : vector<1x192xf32> to vector<1x64xf32>
    %352 = vector.extract_strided_slice %342 {offsets = [0, 192], sizes = [1, 64], strides = [1, 1]} : vector<1x256xf32> to vector<1x64xf32>
    %353 = math.tanh %352 : vector<1x64xf32>
    %354 = arith.mulf %350, %331 : vector<1x64xf32>
    %355 = arith.mulf %349, %353 : vector<1x64xf32>
    %356 = arith.addf %354, %355 : vector<1x64xf32>
    %357 = math.tanh %356 : vector<1x64xf32>
    %358 = arith.mulf %351, %357 : vector<1x64xf32>
    %c0_107 = arith.constant 0 : index
    %359 = arith.index_cast %c4_i32_103 : i32 to index
    %c0_108 = arith.constant 0 : index
    %360 = vector.load %arg12[%c0_107, %359, %c0_108] : memref<1x8x64xf32, #tpu.memory_space<vmem>>, vector<1x1x64xf32>
    %361 = vector.shape_cast %360 : vector<1x1x64xf32> to vector<1x64xf32>
    %362 = vector.shape_cast %358 : vector<1x64xf32> to vector<1x1x64xf32>
    tpu.vector_store %arg12[%c0_107, %359, %c0_108], %362 {strides = array<i32>} : memref<1x8x64xf32, #tpu.memory_space<vmem>>, vector<1x1x64xf32>,
    %c5_i32_109 = arith.constant 5 : i32
    %363 = arith.index_cast %c5_i32_109 : i32 to index
    %c0_110 = arith.constant 0 : index
    %364 = vector.load %arg15[%363, %c0_110] : memref<8x256xf32, #tpu.memory_space<vmem>>, vector<1x256xf32>
    %365 = arith.truncf %358 : vector<1x64xf32> to vector<1x64xbf16>
    %cst_111 = arith.constant dense<0.000000e+00> : vector<1x256xf32>
    %366 = tpu.matmul %365, %235, %cst_111 {dimension_numbers = #tpu.dot_dimension_numbers<[1], [0], [0], [1], [0, 0, 1, 1], [], []>} : vector<1x64xbf16>, vector<64x256xbf16>, vector<1x256xf32> -> vector<1x256xf32>
    %367 = arith.addf %364, %366 : vector<1x256xf32>
    %368 = vector.extract_strided_slice %367 {offsets = [0, 0], sizes = [1, 192], strides = [1, 1]} : vector<1x256xf32> to vector<1x192xf32>
    %369 = arith.negf %368 : vector<1x192xf32>
    %370 = math.exp %369 : vector<1x192xf32>
    %cst_112 = arith.constant 1.000000e+00 : f32
    %371 = vector.broadcast %cst_112 : f32 to vector<1x192xf32>
    %372 = arith.addf %371, %370 : vector<1x192xf32>
    %373 = arith.divf %371, %372 : vector<1x192xf32>
    %374 = vector.extract_strided_slice %373 {offsets = [0, 0], sizes = [1, 64], strides = [1, 1]} : vector<1x192xf32> to vector<1x64xf32>
    %375 = vector.extract_strided_slice %373 {offsets = [0, 64], sizes = [1, 64], strides = [1, 1]} : vector<1x192xf32> to vector<1x64xf32>
    %376 = vector.extract_strided_slice %373 {offsets = [0, 128], sizes = [1, 64], strides = [1, 1]} : vector<1x192xf32> to vector<1x64xf32>
    %377 = vector.extract_strided_slice %367 {offsets = [0, 192], sizes = [1, 64], strides = [1, 1]} : vector<1x256xf32> to vector<1x64xf32>
    %378 = math.tanh %377 : vector<1x64xf32>
    %379 = arith.mulf %375, %356 : vector<1x64xf32>
    %380 = arith.mulf %374, %378 : vector<1x64xf32>
    %381 = arith.addf %379, %380 : vector<1x64xf32>
    %382 = math.tanh %381 : vector<1x64xf32>
    %383 = arith.mulf %376, %382 : vector<1x64xf32>
    %c0_113 = arith.constant 0 : index
    %384 = arith.index_cast %c5_i32_109 : i32 to index
    %c0_114 = arith.constant 0 : index
    %385 = vector.load %arg12[%c0_113, %384, %c0_114] : memref<1x8x64xf32, #tpu.memory_space<vmem>>, vector<1x1x64xf32>
    %386 = vector.shape_cast %385 : vector<1x1x64xf32> to vector<1x64xf32>
    %387 = vector.shape_cast %383 : vector<1x64xf32> to vector<1x1x64xf32>
    tpu.vector_store %arg12[%c0_113, %384, %c0_114], %387 {strides = array<i32>} : memref<1x8x64xf32, #tpu.memory_space<vmem>>, vector<1x1x64xf32>,
    %c6_i32_115 = arith.constant 6 : i32
    %388 = arith.index_cast %c6_i32_115 : i32 to index
    %c0_116 = arith.constant 0 : index
    %389 = vector.load %arg15[%388, %c0_116] : memref<8x256xf32, #tpu.memory_space<vmem>>, vector<1x256xf32>
    %390 = arith.truncf %383 : vector<1x64xf32> to vector<1x64xbf16>
    %cst_117 = arith.constant dense<0.000000e+00> : vector<1x256xf32>
    %391 = tpu.matmul %390, %235, %cst_117 {dimension_numbers = #tpu.dot_dimension_numbers<[1], [0], [0], [1], [0, 0, 1, 1], [], []>} : vector<1x64xbf16>, vector<64x256xbf16>, vector<1x256xf32> -> vector<1x256xf32>
    %392 = arith.addf %389, %391 : vector<1x256xf32>
    %393 = vector.extract_strided_slice %392 {offsets = [0, 0], sizes = [1, 192], strides = [1, 1]} : vector<1x256xf32> to vector<1x192xf32>
    %394 = arith.negf %393 : vector<1x192xf32>
    %395 = math.exp %394 : vector<1x192xf32>
    %cst_118 = arith.constant 1.000000e+00 : f32
    %396 = vector.broadcast %cst_118 : f32 to vector<1x192xf32>
    %397 = arith.addf %396, %395 : vector<1x192xf32>
    %398 = arith.divf %396, %397 : vector<1x192xf32>
    %399 = vector.extract_strided_slice %398 {offsets = [0, 0], sizes = [1, 64], strides = [1, 1]} : vector<1x192xf32> to vector<1x64xf32>
    %400 = vector.extract_strided_slice %398 {offsets = [0, 64], sizes = [1, 64], strides = [1, 1]} : vector<1x192xf32> to vector<1x64xf32>
    %401 = vector.extract_strided_slice %398 {offsets = [0, 128], sizes = [1, 64], strides = [1, 1]} : vector<1x192xf32> to vector<1x64xf32>
    %402 = vector.extract_strided_slice %392 {offsets = [0, 192], sizes = [1, 64], strides = [1, 1]} : vector<1x256xf32> to vector<1x64xf32>
    %403 = math.tanh %402 : vector<1x64xf32>
    %404 = arith.mulf %400, %381 : vector<1x64xf32>
    %405 = arith.mulf %399, %403 : vector<1x64xf32>
    %406 = arith.addf %404, %405 : vector<1x64xf32>
    %407 = math.tanh %406 : vector<1x64xf32>
    %408 = arith.mulf %401, %407 : vector<1x64xf32>
    %c0_119 = arith.constant 0 : index
    %409 = arith.index_cast %c6_i32_115 : i32 to index
    %c0_120 = arith.constant 0 : index
    %410 = vector.load %arg12[%c0_119, %409, %c0_120] : memref<1x8x64xf32, #tpu.memory_space<vmem>>, vector<1x1x64xf32>
    %411 = vector.shape_cast %410 : vector<1x1x64xf32> to vector<1x64xf32>
    %412 = vector.shape_cast %408 : vector<1x64xf32> to vector<1x1x64xf32>
    tpu.vector_store %arg12[%c0_119, %409, %c0_120], %412 {strides = array<i32>} : memref<1x8x64xf32, #tpu.memory_space<vmem>>, vector<1x1x64xf32>,
    %c7_i32_121 = arith.constant 7 : i32
    %413 = arith.index_cast %c7_i32_121 : i32 to index
    %c0_122 = arith.constant 0 : index
    %414 = vector.load %arg15[%413, %c0_122] : memref<8x256xf32, #tpu.memory_space<vmem>>, vector<1x256xf32>
    %415 = arith.truncf %408 : vector<1x64xf32> to vector<1x64xbf16>
    %cst_123 = arith.constant dense<0.000000e+00> : vector<1x256xf32>
    %416 = tpu.matmul %415, %235, %cst_123 {dimension_numbers = #tpu.dot_dimension_numbers<[1], [0], [0], [1], [0, 0, 1, 1], [], []>} : vector<1x64xbf16>, vector<64x256xbf16>, vector<1x256xf32> -> vector<1x256xf32>
    %417 = arith.addf %414, %416 : vector<1x256xf32>
    %418 = vector.extract_strided_slice %417 {offsets = [0, 0], sizes = [1, 192], strides = [1, 1]} : vector<1x256xf32> to vector<1x192xf32>
    %419 = arith.negf %418 : vector<1x192xf32>
    %420 = math.exp %419 : vector<1x192xf32>
    %cst_124 = arith.constant 1.000000e+00 : f32
    %421 = vector.broadcast %cst_124 : f32 to vector<1x192xf32>
    %422 = arith.addf %421, %420 : vector<1x192xf32>
    %423 = arith.divf %421, %422 : vector<1x192xf32>
    %424 = vector.extract_strided_slice %423 {offsets = [0, 0], sizes = [1, 64], strides = [1, 1]} : vector<1x192xf32> to vector<1x64xf32>
    %425 = vector.extract_strided_slice %423 {offsets = [0, 64], sizes = [1, 64], strides = [1, 1]} : vector<1x192xf32> to vector<1x64xf32>
    %426 = vector.extract_strided_slice %423 {offsets = [0, 128], sizes = [1, 64], strides = [1, 1]} : vector<1x192xf32> to vector<1x64xf32>
    %427 = vector.extract_strided_slice %417 {offsets = [0, 192], sizes = [1, 64], strides = [1, 1]} : vector<1x256xf32> to vector<1x64xf32>
    %428 = math.tanh %427 : vector<1x64xf32>
    %429 = arith.mulf %425, %406 : vector<1x64xf32>
    %430 = arith.mulf %424, %428 : vector<1x64xf32>
    %431 = arith.addf %429, %430 : vector<1x64xf32>
    %432 = math.tanh %431 : vector<1x64xf32>
    %433 = arith.mulf %426, %432 : vector<1x64xf32>
    %c0_125 = arith.constant 0 : index
    %434 = arith.index_cast %c7_i32_121 : i32 to index
    %c0_126 = arith.constant 0 : index
    %435 = vector.load %arg12[%c0_125, %434, %c0_126] : memref<1x8x64xf32, #tpu.memory_space<vmem>>, vector<1x1x64xf32>
    %436 = vector.shape_cast %435 : vector<1x1x64xf32> to vector<1x64xf32>
    %437 = vector.shape_cast %433 : vector<1x64xf32> to vector<1x1x64xf32>
    tpu.vector_store %arg12[%c0_125, %434, %c0_126], %437 {strides = array<i32>} : memref<1x8x64xf32, #tpu.memory_space<vmem>>, vector<1x1x64xf32>,
    %c8_i32_127 = arith.constant 8 : i32
    return
  }
  func.func @transform_0(%arg0: i32) -> (i32, i32, i32) {
    %c0_i32 = arith.constant 0 : i32
    %c0_i32_0 = arith.constant 0 : i32
    %c0_i32_1 = arith.constant 0 : i32
    return %arg0, %c0_i32, %c0_i32_0 : i32, i32, i32
  }
  func.func @transform_2(%arg0: i32) -> (i32, i32) {
    %c0_i32 = arith.constant 0 : i32
    %c0_i32_0 = arith.constant 0 : i32
    %c0_i32_1 = arith.constant 0 : i32
    return %c0_i32, %c0_i32_0 : i32, i32
  }
  func.func @transform_3(%arg0: i32) -> (i32, i32) {
    %c0_i32 = arith.constant 0 : i32
    %c0_i32_0 = arith.constant 0 : i32
    %c0_i32_1 = arith.constant 0 : i32
    return %c0_i32, %c0_i32_0 : i32, i32
  }
  func.func @transform_4(%arg0: i32) -> (i32, i32) {
    %c0_i32 = arith.constant 0 : i32
    %c0_i32_0 = arith.constant 0 : i32
    %c0_i32_1 = arith.constant 0 : i32
    return %c0_i32, %c0_i32_0 : i32, i32
  }
  func.func @transform_5(%arg0: i32) -> (i32, i32) {
    %c0_i32 = arith.constant 0 : i32
    %c0_i32_0 = arith.constant 0 : i32
    %c0_i32_1 = arith.constant 0 : i32
    return %c0_i32, %c0_i32_0 : i32, i32
  }
  func.func @transform_6(%arg0: i32) -> (i32, i32) {
    %c0_i32 = arith.constant 0 : i32
    %c0_i32_0 = arith.constant 0 : i32
    %c0_i32_1 = arith.constant 0 : i32
    return %c0_i32, %c0_i32_0 : i32, i32
  }
  func.func @transform_7(%arg0: i32) -> (i32, i32) {
    %c0_i32 = arith.constant 0 : i32
    %c0_i32_0 = arith.constant 0 : i32
    %c0_i32_1 = arith.constant 0 : i32
    return %c0_i32, %c0_i32_0 : i32, i32
  }
  func.func @transform_8(%arg0: i32) -> (i32, i32) {
    %c0_i32 = arith.constant 0 : i32
    %c0_i32_0 = arith.constant 0 : i32
    %c0_i32_1 = arith.constant 0 : i32
    return %c0_i32, %c0_i32_0 : i32, i32
  }
  func.func @transform_9(%arg0: i32) -> (i32, i32) {
    %c0_i32 = arith.constant 0 : i32
    %c0_i32_0 = arith.constant 0 : i32
    %c0_i32_1 = arith.constant 0 : i32
    return %c0_i32, %c0_i32_0 : i32, i32
  }
  func.func @transform_10(%arg0: i32) -> (i32, i32) {
    %c0_i32 = arith.constant 0 : i32
    %c0_i32_0 = arith.constant 0 : i32
    %c0_i32_1 = arith.constant 0 : i32
    return %c0_i32, %c0_i32_0 : i32, i32
  }
  func.func @transform_11(%arg0: i32) -> (i32, i32, i32) {
    %c0_i32 = arith.constant 0 : i32
    %c0_i32_0 = arith.constant 0 : i32
    %c0_i32_1 = arith.constant 0 : i32
    return %arg0, %c0_i32, %c0_i32_0 : i32, i32, i32
  }
}

</mosaic_0001>

<llo_original>
// kernel: tpu_custom_call.1
$region0: #{tpu_custom_call.1}
  #allocation0 [shape = 'u32[]', space=smem, size = 0x4, offset = 0x4, fixed_abs, tag = 'smem constant byte address 0x4 - core index']
  #allocation1 [shape = 'u32[72,128]{1,0:T(1,128)}', space=vmem, size = 0x9000, scoped, tag = 'internal scratch']
  #allocation2 [shape = 'bf16[8,8,128]{2,1,0:T(8,128)(2,1)}', space=vmem, size = 0x4000, scoped, tag = 'scratch operand']
  #allocation3 [shape = 's32[1]{0}', space=sflag, size = 0x4, scoped, tag = 'scratch operand']
  #allocation4 [shape = 'f32[8,256]{1,0:T(8,128)}', space=vmem, size = 0x2000, scoped, tag = 'scratch operand']
  #allocation5 [shape = 'f32[8,64]{1,0:T(8,128)}', space=vmem, size = 0x1000, scoped, tag = 'scratch operand']
  #allocation18 [shape = 's32[]', space=sflag, size = 0x4, offset = 0, fixed_abs, tag = 'sflag constant byte address 0x0 - dummy sync flag']
  %s0 = inlined_call_operand.hbm [shape: f32[2,8,128], index: 0, kind: input, shape index: {}]
  %s1 = inlined_call_operand.vmem [shape: bf16[2,8,8,128], index: 1, kind: input, shape index: {}]
  %s2 = inlined_call_operand.hbm [shape: bf16[128,256], index: 2, kind: input, shape index: {}]
  %s3 = inlined_call_operand.hbm [shape: bf16[64,256], index: 3, kind: input, shape index: {}]
  %s4 = inlined_call_operand.vmem [shape: f32[1,256], index: 4, kind: input, shape index: {}]
  %s5 = inlined_call_operand.vmem [shape: bf16[64,128], index: 5, kind: input, shape index: {}]
  %s6 = inlined_call_operand.vmem [shape: bf16[128,64], index: 6, kind: input, shape index: {}]
  %s7 = inlined_call_operand.hbm [shape: bf16[64,64], index: 7, kind: input, shape index: {}]
  %s8 = inlined_call_operand.hbm [shape: bf16[64,256], index: 8, kind: input, shape index: {}]
  %s9 = inlined_call_operand.hbm [shape: bf16[64,256], index: 9, kind: input, shape index: {}]
  %s10 = inlined_call_operand.vmem [shape: f32[1,256], index: 10, kind: input, shape index: {}]
  %s11 = inlined_call_operand.hbm [shape: f32[2,8,64], index: 11, kind: output, shape index: {}]
  %s12 = sld [smem:[#allocation0]]
  $region116: #{tpu_custom_call.1} parent=0
    _
  %s14 = ssub.s32 1, %s12
  %s15 = scalar_select 0, %s14, %s12
  $region1: #{tpu_custom_call.1} parent=0
    #allocation6 [shape = 'u8[8192]{0}', space=vmem, size = 0x2000, scoped, tag = 'input window, operand 0']
    #allocation7 [shape = 's32[2]{0}', space=sflag, size = 0x8, scoped, tag = 'scoped memory for tpu_custom_call.1']
    #allocation8 [shape = 's32[2]{0}', space=sflag, size = 0x8, scoped, tag = 'scoped memory for tpu_custom_call.1']
    #allocation9 [shape = 'u8[65536]{0}', space=vmem, size = 0x10000, scoped, tag = 'input window, operand 2, single buffered']
    #allocation10 [shape = 's32[1]{0}', space=sflag, size = 0x4, scoped, tag = 'scoped memory for tpu_custom_call.1']
    #allocation11 [shape = 'u8[32768]{0}', space=vmem, size = 0x8000, scoped, tag = 'input window, operand 3, single buffered']
    #allocation12 [shape = 'u8[16384]{0}', space=vmem, size = 0x4000, scoped, tag = 'input window, operand 7, single buffered']
    #allocation13 [shape = 's32[1]{0}', space=sflag, size = 0x4, scoped, tag = 'scoped memory for tpu_custom_call.1']
    #allocation14 [shape = 'u8[32768]{0}', space=vmem, size = 0x8000, scoped, tag = 'input window, operand 8, single buffered']
    #allocation15 [shape = 'u8[32768]{0}', space=vmem, size = 0x8000, scoped, tag = 'input window, operand 9, single buffered']
    #allocation16 [shape = 's32[1]{0}', space=sflag, size = 0x4, scoped, tag = 'scoped memory for tpu_custom_call.1']
    #allocation17 [shape = 'u8[8192]{0}', space=vmem, size = 0x2000, scoped, tag = 'output window, operand 0']
    %16 = vsyncpa [#allocation7], 0
    %s17 = scalar_lea.sflag [#allocation7], 1
    %18 = vsyncpa %s17, 0
    %19 = vsyncpa [#allocation10], 0
    %20 = vsyncpa [#allocation13], 0
    %21 = vsyncpa [#allocation16], 0
    %22 = vsyncpa [#allocation8], 0
    %s23 = scalar_lea.sflag [#allocation8], 1
    %24 = vsyncpa %s23, 0
    loop: start=0, step=1, limit=4
    $region2: #{tpu_custom_call.1} parent=1 // loop_pre_header
      _
    $region3: #{tpu_custom_call.1} parent=1 // loop_header
      %s26 = sphi 0, %s30
      %p27 = scmp.ge.s32.totalorder %s26, 4
      %s36 = sphi 0, %s38
      %s39 = sphi 0, %s36
      %s40 = sphi 0, %s39
      %s56 = sphi 0, %s40
      %s60 = sphi 0, %s60
      %s62 = sphi 0, %s60
      %s63 = sphi 0, %s62
      %s77 = sphi 0, %s63
      %s81 = sphi 0, %s81
      %s83 = sphi 0, %s81
      %s84 = sphi 0, %s83
      %s98 = sphi 0, %s84
      %s102 = sphi 0, %s102
      %s104 = sphi 0, %s102
      %s105 = sphi 0, %s104
      %s119 = sphi 0, %s105
      %s123 = sphi 0, %s123
      %s125 = sphi 0, %s123
      %s126 = sphi 0, %s125
      %s140 = sphi 0, %s126
      %s144 = sphi 0, %s144
      %s146 = sphi 0, %s144
      %s147 = sphi 0, %s146
      %s161 = sphi 0, %s147
      %s165 = sphi 0, %s165
      %s167 = sphi 0, %s165
      %s168 = sphi 0, %s167
      %s182 = sphi 0, %s168
      %s186 = sphi 0, %s186
      %s188 = sphi 0, %s186
      %s189 = sphi 0, %s188
      %s203 = sphi 0, %s189
      %s207 = sphi 0, %s207
      %s209 = sphi 0, %s207
      %s210 = sphi 0, %s209
      %s224 = sphi 0, %s210
      %s228 = sphi 0, %s228
      %s230 = sphi 0, %s228
      %s231 = sphi 0, %s230
      %s245 = sphi 0, %s231
      %s251 = sphi 0, %s253
      %s254 = sphi 0, %s251
      %s255 = sphi 0, %s254
      %s271 = sphi 0, %s255
    $region4: #{tpu_custom_call.1} parent=1 // loop_header_branch
      %29 = sbr.rel (%p27) target = $region8
    $region5: #{tpu_custom_call.1} parent=1 // loop_body
      %s31 = ssub.s32 %s26, 1
      %s32 = ssub.s32 %s26, 2
      %s33 = sadd.s32 %s26, 1
      %s34 = ssub.s32 %s26, %s33
      %p35 = scmp.eq.s32.totalorder %s34, 0
      %s37 = sadd.s32 %s36, 1
      %s38 = scalar_select %p35, %s36, %s37
      %p41 = pneg %p35
      %p42 = scmp.eq.s32.totalorder %s26, 1
      %p43 = por %p41, %p42
      %p44 = scmp.ne.s32.totalorder %s36, %s39
      %p45 = scmp.eq.s32.totalorder %s26, 0
      %p46 = por %p44, %p45
      %p47 = scmp.ne.s32.totalorder %s36, %s39
      %p48 = scmp.eq.s32.totalorder %s31, 1
      %p49 = por %p47, %p48
      %p50 = scmp.ne.s32.totalorder %s39, %s40
      %p51 = scmp.eq.s32.totalorder %s31, 0
      %p52 = por %p50, %p51
      %p53 = scmp.ne.s32.totalorder %s39, %s40
      %p54 = scmp.eq.s32.totalorder %s32, 1
      %p55 = por %p53, %p54
      %p57 = scmp.ne.s32.totalorder %s40, %s56
      %p58 = scmp.eq.s32.totalorder %s32, 0
      %p59 = por %p57, %p58
      %s61 = sadd.s32 %s60, 1
      %p64 = scmp.eq.s32.totalorder %s26, 1
      %p65 = scmp.ne.s32.totalorder %s60, %s62
      %p66 = scmp.eq.s32.totalorder %s26, 0
      %p67 = por %p65, %p66
      %p68 = scmp.ne.s32.totalorder %s60, %s62
      %p69 = scmp.eq.s32.totalorder %s31, 1
      %p70 = por %p68, %p69
      %p71 = scmp.ne.s32.totalorder %s62, %s63
      %p72 = scmp.eq.s32.totalorder %s31, 0
      %p73 = por %p71, %p72
      %p74 = scmp.ne.s32.totalorder %s62, %s63
      %p75 = scmp.eq.s32.totalorder %s32, 1
      %p76 = por %p74, %p75
      %p78 = scmp.ne.s32.totalorder %s63, %s77
      %p79 = scmp.eq.s32.totalorder %s32, 0
      %p80 = por %p78, %p79
      %s82 = sadd.s32 %s81, 1
      %p85 = scmp.eq.s32.totalorder %s26, 1
      %p86 = scmp.ne.s32.totalorder %s81, %s83
      %p87 = scmp.eq.s32.totalorder %s26, 0
      %p88 = por %p86, %p87
      %p89 = scmp.ne.s32.totalorder %s81, %s83
      %p90 = scmp.eq.s32.totalorder %s31, 1
      %p91 = por %p89, %p90
      %p92 = scmp.ne.s32.totalorder %s83, %s84
      %p93 = scmp.eq.s32.totalorder %s31, 0
      %p94 = por %p92, %p93
      %p95 = scmp.ne.s32.totalorder %s83, %s84
      %p96 = scmp.eq.s32.totalorder %s32, 1
      %p97 = por %p95, %p96
      %p99 = scmp.ne.s32.totalorder %s84, %s98
      %p100 = scmp.eq.s32.totalorder %s32, 0
      %p101 = por %p99, %p100
      %s103 = sadd.s32 %s102, 1
      %p106 = scmp.eq.s32.totalorder %s26, 1
      %p107 = scmp.ne.s32.totalorder %s102, %s104
      %p108 = scmp.eq.s32.totalorder %s26, 0
      %p109 = por %p107, %p108
      %p110 = scmp.ne.s32.totalorder %s102, %s104
      %p111 = scmp.eq.s32.totalorder %s31, 1
      %p112 = por %p110, %p111
      %p113 = scmp.ne.s32.totalorder %s104, %s105
      %p114 = scmp.eq.s32.totalorder %s31, 0
      %p115 = por %p113, %p114
      %p116 = scmp.ne.s32.totalorder %s104, %s105
      %p117 = scmp.eq.s32.totalorder %s32, 1
      %p118 = por %p116, %p117
      %p120 = scmp.ne.s32.totalorder %s105, %s119
      %p121 = scmp.eq.s32.totalorder %s32, 0
      %p122 = por %p120, %p121
      %s124 = sadd.s32 %s123, 1
      %p127 = scmp.eq.s32.totalorder %s26, 1
      %p128 = scmp.ne.s32.totalorder %s123, %s125
      %p129 = scmp.eq.s32.totalorder %s26, 0
      %p130 = por %p128, %p129
      %p131 = scmp.ne.s32.totalorder %s123, %s125
      %p132 = scmp.eq.s32.totalorder %s31, 1
      %p133 = por %p131, %p132
      %p134 = scmp.ne.s32.totalorder %s125, %s126
      %p135 = scmp.eq.s32.totalorder %s31, 0
      %p136 = por %p134, %p135
      %p137 = scmp.ne.s32.totalorder %s125, %s126
      %p138 = scmp.eq.s32.totalorder %s32, 1
      %p139 = por %p137, %p138
      %p141 = scmp.ne.s32.totalorder %s126, %s140
      %p142 = scmp.eq.s32.totalorder %s32, 0
      %p143 = por %p141, %p142
      %s145 = sadd.s32 %s144, 1
      %p148 = scmp.eq.s32.totalorder %s26, 1
      %p149 = scmp.ne.s32.totalorder %s144, %s146
      %p150 = scmp.eq.s32.totalorder %s26, 0
      %p151 = por %p149, %p150
      %p152 = scmp.ne.s32.totalorder %s144, %s146
      %p153 = scmp.eq.s32.totalorder %s31, 1
      %p154 = por %p152, %p153
      %p155 = scmp.ne.s32.totalorder %s146, %s147
      %p156 = scmp.eq.s32.totalorder %s31, 0
      %p157 = por %p155, %p156
      %p158 = scmp.ne.s32.totalorder %s146, %s147
      %p159 = scmp.eq.s32.totalorder %s32, 1
      %p160 = por %p158, %p159
      %p162 = scmp.ne.s32.totalorder %s147, %s161
      %p163 = scmp.eq.s32.totalorder %s32, 0
      %p164 = por %p162, %p163
      %s166 = sadd.s32 %s165, 1
      %p169 = scmp.eq.s32.totalorder %s26, 1
      %p170 = scmp.ne.s32.totalorder %s165, %s167
      %p171 = scmp.eq.s32.totalorder %s26, 0
      %p172 = por %p170, %p171
      %p173 = scmp.ne.s32.totalorder %s165, %s167
      %p174 = scmp.eq.s32.totalorder %s31, 1
      %p175 = por %p173, %p174
      %p176 = scmp.ne.s32.totalorder %s167, %s168
      %p177 = scmp.eq.s32.totalorder %s31, 0
      %p178 = por %p176, %p177
      %p179 = scmp.ne.s32.totalorder %s167, %s168
      %p180 = scmp.eq.s32.totalorder %s32, 1
      %p181 = por %p179, %p180
      %p183 = scmp.ne.s32.totalorder %s168, %s182
      %p184 = scmp.eq.s32.totalorder %s32, 0
      %p185 = por %p183, %p184
      %s187 = sadd.s32 %s186, 1
      %p190 = scmp.eq.s32.totalorder %s26, 1
      %p191 = scmp.ne.s32.totalorder %s186, %s188
      %p192 = scmp.eq.s32.totalorder %s26, 0
      %p193 = por %p191, %p192
      %p194 = scmp.ne.s32.totalorder %s186, %s188
      %p195 = scmp.eq.s32.totalorder %s31, 1
      %p196 = por %p194, %p195
      %p197 = scmp.ne.s32.totalorder %s188, %s189
      %p198 = scmp.eq.s32.totalorder %s31, 0
      %p199 = por %p197, %p198
      %p200 = scmp.ne.s32.totalorder %s188, %s189
      %p201 = scmp.eq.s32.totalorder %s32, 1
      %p202 = por %p200, %p201
      %p204 = scmp.ne.s32.totalorder %s189, %s203
      %p205 = scmp.eq.s32.totalorder %s32, 0
      %p206 = por %p204, %p205
      %s208 = sadd.s32 %s207, 1
      %p211 = scmp.eq.s32.totalorder %s26, 1
      %p212 = scmp.ne.s32.totalorder %s207, %s209
      %p213 = scmp.eq.s32.totalorder %s26, 0
      %p214 = por %p212, %p213
      %p215 = scmp.ne.s32.totalorder %s207, %s209
      %p216 = scmp.eq.s32.totalorder %s31, 1
      %p217 = por %p215, %p216
      %p218 = scmp.ne.s32.totalorder %s209, %s210
      %p219 = scmp.eq.s32.totalorder %s31, 0
      %p220 = por %p218, %p219
      %p221 = scmp.ne.s32.totalorder %s209, %s210
      %p222 = scmp.eq.s32.totalorder %s32, 1
      %p223 = por %p221, %p222
      %p225 = scmp.ne.s32.totalorder %s210, %s224
      %p226 = scmp.eq.s32.totalorder %s32, 0
      %p227 = por %p225, %p226
      %s229 = sadd.s32 %s228, 1
      %p232 = scmp.eq.s32.totalorder %s26, 1
      %p233 = scmp.ne.s32.totalorder %s228, %s230
      %p234 = scmp.eq.s32.totalorder %s26, 0
      %p235 = por %p233, %p234
      %p236 = scmp.ne.s32.totalorder %s228, %s230
      %p237 = scmp.eq.s32.totalorder %s31, 1
      %p238 = por %p236, %p237
      %p239 = scmp.ne.s32.totalorder %s230, %s231
      %p240 = scmp.eq.s32.totalorder %s31, 0
      %p241 = por %p239, %p240
      %p242 = scmp.ne.s32.totalorder %s230, %s231
      %p243 = scmp.eq.s32.totalorder %s32, 1
      %p244 = por %p242, %p243
      %p246 = scmp.ne.s32.totalorder %s231, %s245
      %p247 = scmp.eq.s32.totalorder %s32, 0
      %p248 = por %p246, %p247
      %s249 = ssub.s32 %s26, %s33
      %p250 = scmp.eq.s32.totalorder %s249, 0
      %s252 = sadd.s32 %s251, 1
      %s253 = scalar_select %p250, %s251, %s252
      %p256 = pneg %p250
      %p257 = scmp.eq.s32.totalorder %s26, 1
      %p258 = por %p256, %p257
      %p259 = scmp.ne.s32.totalorder %s251, %s254
      %p260 = scmp.eq.s32.totalorder %s26, 0
      %p261 = por %p259, %p260
      %p262 = scmp.ne.s32.totalorder %s251, %s254
      %p263 = scmp.eq.s32.totalorder %s31, 1
      %p264 = por %p262, %p263
      %p265 = scmp.ne.s32.totalorder %s254, %s255
      %p266 = scmp.eq.s32.totalorder %s31, 0
      %p267 = por %p265, %p266
      %p268 = scmp.ne.s32.totalorder %s254, %s255
      %p269 = scmp.eq.s32.totalorder %s32, 1
      %p270 = por %p268, %p269
      %p272 = scmp.ne.s32.totalorder %s255, %s271
      %p273 = scmp.eq.s32.totalorder %s32, 0
      %p274 = por %p272, %p273
      %p275 = scmp.le.s32.totalorder 1, %s26
      %p276 = scmp.lt.s32.totalorder %s26, 3
      %p277 = pnand %p275, %p276
      %p278 = pneg %p277
      // Predicated region
      $region9: #{tpu_custom_call.1} parent=5 // pred_check
        _
      $region10: #{tpu_custom_call.1} parent=5 // pred_check_branch
        %280 = sbr.rel (%p277) target = $region12
      $region11: #{tpu_custom_call.1} parent=5 // pred_region
        %s281 = ssub.s32 %s26, 1
        // Predicated region
        $region13: #{tpu_custom_call.1} parent=11 // pred_check
          %p282 = pneg %p73
        $region14: #{tpu_custom_call.1} parent=11 // pred_check_branch
          %284 = sbr.rel (%p282) target = $region16
        $region15: #{tpu_custom_call.1} parent=11 // pred_region
          %286 = vsyncadd [#allocation10], 0
          %s287 = sshll.u32 %s2, 4
          %s288 = int_to_ptr.hbm [resolvable:$true] %s287
          %s289 = sshll.u32 [#allocation9], 4
          %s290 = int_to_ptr.vmem [resolvable:$true] %s289
          %295 = dma.hbm_to_vmem [thread:$0]  %s288, 2048, %s290, [#allocation10], 128, 128, 8
        $region16: #{tpu_custom_call.1} parent=11 // pred_fallthru
          _
        // Predicated region
        $region17: #{tpu_custom_call.1} parent=11 // pred_check
          %p296 = pneg %p94
        $region18: #{tpu_custom_call.1} parent=11 // pred_check_branch
          %298 = sbr.rel (%p296) target = $region20
        $region19: #{tpu_custom_call.1} parent=11 // pred_region
          %300 = vsyncadd [#allocation10], 0
          %s301 = sshll.u32 %s3, 4
          %s302 = int_to_ptr.hbm [resolvable:$true] %s301
          %s303 = sshll.u32 [#allocation11], 4
          %s304 = int_to_ptr.vmem [resolvable:$true] %s303
          %309 = dma.hbm_to_vmem [thread:$0]  %s302, 1024, %s304, [#allocation10], 128, 128, 8
        $region20: #{tpu_custom_call.1} parent=11 // pred_fallthru
          _
        // Predicated region
        $region21: #{tpu_custom_call.1} parent=11 // pred_check
          %p310 = pneg %p115
        $region22: #{tpu_custom_call.1} parent=11 // pred_check_branch
          %312 = sbr.rel (%p310) target = $region24
        $region23: #{tpu_custom_call.1} parent=11 // pred_region
          _
        $region24: #{tpu_custom_call.1} parent=11 // pred_fallthru
          _
        // Predicated region
        $region25: #{tpu_custom_call.1} parent=11 // pred_check
          %p313 = pneg %p136
        $region26: #{tpu_custom_call.1} parent=11 // pred_check_branch
          %315 = sbr.rel (%p313) target = $region28
        $region27: #{tpu_custom_call.1} parent=11 // pred_region
          _
        $region28: #{tpu_custom_call.1} parent=11 // pred_fallthru
          _
        // Predicated region
        $region29: #{tpu_custom_call.1} parent=11 // pred_check
          %p316 = pneg %p157
        $region30: #{tpu_custom_call.1} parent=11 // pred_check_branch
          %318 = sbr.rel (%p316) target = $region32
        $region31: #{tpu_custom_call.1} parent=11 // pred_region
          _
        $region32: #{tpu_custom_call.1} parent=11 // pred_fallthru
          _
        // Predicated region
        $region33: #{tpu_custom_call.1} parent=11 // pred_check
          %p319 = pneg %p178
        $region34: #{tpu_custom_call.1} parent=11 // pred_check_branch
          %321 = sbr.rel (%p319) target = $region36
        $region35: #{tpu_custom_call.1} parent=11 // pred_region
          %323 = vsyncadd [#allocation13], 0
          %s324 = sshll.u32 %s7, 4
          %s325 = int_to_ptr.hbm [resolvable:$true] %s324
          %s326 = sshll.u32 [#allocation12], 4
          %s327 = int_to_ptr.vmem [resolvable:$true] %s326
          %332 = dma.hbm_to_vmem [thread:$0]  %s325, 512, %s327, [#allocation13], 64, 64, 4
        $region36: #{tpu_custom_call.1} parent=11 // pred_fallthru
          _
        // Predicated region
        $region37: #{tpu_custom_call.1} parent=11 // pred_check
          %p333 = pneg %p199
        $region38: #{tpu_custom_call.1} parent=11 // pred_check_branch
          %335 = sbr.rel (%p333) target = $region40
        $region39: #{tpu_custom_call.1} parent=11 // pred_region
          %337 = vsyncadd [#allocation13], 0
          %s338 = sshll.u32 %s8, 4
          %s339 = int_to_ptr.hbm [resolvable:$true] %s338
          %s340 = sshll.u32 [#allocation14], 4
          %s341 = int_to_ptr.vmem [resolvable:$true] %s340
          %346 = dma.hbm_to_vmem [thread:$0]  %s339, 1024, %s341, [#allocation13], 128, 128, 8
        $region40: #{tpu_custom_call.1} parent=11 // pred_fallthru
          _
        // Predicated region
        $region41: #{tpu_custom_call.1} parent=11 // pred_check
          %p347 = pneg %p220
        $region42: #{tpu_custom_call.1} parent=11 // pred_check_branch
          %349 = sbr.rel (%p347) target = $region44
        $region43: #{tpu_custom_call.1} parent=11 // pred_region
          %351 = vsyncadd [#allocation16], 0
          %s352 = sshll.u32 %s9, 4
          %s353 = int_to_ptr.hbm [resolvable:$true] %s352
          %s354 = sshll.u32 [#allocation15], 4
          %s355 = int_to_ptr.vmem [resolvable:$true] %s354
          %360 = dma.hbm_to_vmem [thread:$0]  %s353, 1024, %s355, [#allocation16], 128, 128, 8
        $region44: #{tpu_custom_call.1} parent=11 // pred_fallthru
          _
        // Predicated region
        $region45: #{tpu_custom_call.1} parent=11 // pred_check
          %p361 = pneg %p241
        $region46: #{tpu_custom_call.1} parent=11 // pred_check_branch
          %363 = sbr.rel (%p361) target = $region48
        $region47: #{tpu_custom_call.1} parent=11 // pred_region
          _
        $region48: #{tpu_custom_call.1} parent=11 // pred_fallthru
          _
      $region12: #{tpu_custom_call.1} parent=5 // pred_fallthru
        _
      %p364 = scmp.lt.s32.totalorder %s26, 2
      // Predicated region
      $region49: #{tpu_custom_call.1} parent=5 // pred_check
        %p365 = pneg %p364
      $region50: #{tpu_custom_call.1} parent=5 // pred_check_branch
        %367 = sbr.rel (%p365) target = $region52
      $region51: #{tpu_custom_call.1} parent=5 // pred_region
        // Predicated region
        $region53: #{tpu_custom_call.1} parent=51 // pred_check
          %p368 = pneg %p46
        $region54: #{tpu_custom_call.1} parent=51 // pred_check_branch
          %370 = sbr.rel (%p368) target = $region56
        $region55: #{tpu_custom_call.1} parent=51 // pred_region
          %s371 = sand.u32 %s36, 1
          %s372 = scalar_lea.sflag [#allocation7], %s371
          %s373 = sand.u32 %s36, 1
          %s374 = smul.addr %s373, 8
          %s375 = scalar_lea.vmem [#allocation6], %s374
          %377 = vsyncadd %s372, 0
          %s378 = smul.addr %s26, 8
          %s379 = scalar_lea.hbm %s0, %s378
          %s381 = sshll.u32 %s379, 4
          %s382 = int_to_ptr.hbm [resolvable:$true] %s381
          %s383 = sshll.u32 %s375, 4
          %s384 = int_to_ptr.vmem [resolvable:$true] %s383
          %386 = dma.hbm_to_vmem [thread:$0]  %s382, 128, %s384, %s372
        $region56: #{tpu_custom_call.1} parent=51 // pred_fallthru
          _
      $region52: #{tpu_custom_call.1} parent=5 // pred_fallthru
        _
      %p387 = scmp.le.s32.totalorder 1, %s26
      %p388 = scmp.lt.s32.totalorder %s26, 3
      %p389 = pnand %p387, %p388
      %p390 = pneg %p389
      // Predicated region
      $region57: #{tpu_custom_call.1} parent=5 // pred_check
        _
      $region58: #{tpu_custom_call.1} parent=5 // pred_check_branch
        %392 = sbr.rel (%p389) target = $region60
      $region59: #{tpu_custom_call.1} parent=5 // pred_region
        %s393 = ssub.s32 %s26, 1
        %s394 = sand.u32 %s39, 1
        %s395 = scalar_lea.sflag [#allocation7], %s394
        %s396 = sand.u32 %s39, 1
        %s397 = smul.addr %s396, 8
        %s398 = scalar_lea.vmem [#allocation6], %s397
        // Predicated region
        $region61: #{tpu_custom_call.1} parent=59 // pred_check
          %p399 = pneg %p52
        $region62: #{tpu_custom_call.1} parent=59 // pred_check_branch
          %401 = sbr.rel (%p399) target = $region64
        $region63: #{tpu_custom_call.1} parent=59 // pred_region
          %403 = dma.done %s395, 128
        $region64: #{tpu_custom_call.1} parent=59 // pred_fallthru
          _
        // Predicated region
        $region65: #{tpu_custom_call.1} parent=59 // pred_check
          %p404 = pneg %p73
        $region66: #{tpu_custom_call.1} parent=59 // pred_check_branch
          %406 = sbr.rel (%p404) target = $region68
        $region67: #{tpu_custom_call.1} parent=59 // pred_region
          %408 = dma.done [#allocation10], 2048
        $region68: #{tpu_custom_call.1} parent=59 // pred_fallthru
          _
        // Predicated region
        $region69: #{tpu_custom_call.1} parent=59 // pred_check
          %p409 = pneg %p94
        $region70: #{tpu_custom_call.1} parent=59 // pred_check_branch
          %411 = sbr.rel (%p409) target = $region72
        $region71: #{tpu_custom_call.1} parent=59 // pred_region
          %413 = dma.done [#allocation10], 1024
        $region72: #{tpu_custom_call.1} parent=59 // pred_fallthru
          _
        // Predicated region
        $region73: #{tpu_custom_call.1} parent=59 // pred_check
          %p414 = pneg %p178
        $region74: #{tpu_custom_call.1} parent=59 // pred_check_branch
          %416 = sbr.rel (%p414) target = $region76
        $region75: #{tpu_custom_call.1} parent=59 // pred_region
          %418 = dma.done [#allocation13], 512
        $region76: #{tpu_custom_call.1} parent=59 // pred_fallthru
          _
        // Predicated region
        $region77: #{tpu_custom_call.1} parent=59 // pred_check
          %p419 = pneg %p199
        $region78: #{tpu_custom_call.1} parent=59 // pred_check_branch
          %421 = sbr.rel (%p419) target = $region80
        $region79: #{tpu_custom_call.1} parent=59 // pred_region
          %423 = dma.done [#allocation13], 1024
        $region80: #{tpu_custom_call.1} parent=59 // pred_fallthru
          _
        // Predicated region
        $region81: #{tpu_custom_call.1} parent=59 // pred_check
          %p424 = pneg %p220
        $region82: #{tpu_custom_call.1} parent=59 // pred_check_branch
          %426 = sbr.rel (%p424) target = $region84
        $region83: #{tpu_custom_call.1} parent=59 // pred_region
          %428 = dma.done [#allocation16], 1024
        $region84: #{tpu_custom_call.1} parent=59 // pred_fallthru
          _
        %s429 = sand.u32 %s39, 1
        %s430 = scalar_lea.sflag [#allocation7], %s429
        %s431 = sand.u32 %s39, 1
        %s432 = smul.addr %s431, 8
        %s433 = scalar_lea.vmem [#allocation6], %s432
        %p434 = pneg %p52
        %p435 = pneg %p49
        %p436 = pneg %p73
        %p437 = pneg %p70
        %p438 = pneg %p94
        %p439 = pneg %p91
        %p440 = pneg %p115
        %p441 = pneg %p112
        %p442 = pneg %p136
        %p443 = pneg %p133
        %p444 = pneg %p157
        %p445 = pneg %p154
        %p446 = pneg %p178
        %p447 = pneg %p175
        %p448 = pneg %p199
        %p449 = pneg %p196
        %p450 = pneg %p220
        %p451 = pneg %p217
        %p452 = pneg %p241
        %p453 = pneg %p238
        %p454 = pneg %p267
        %p455 = pneg %p264
        %s456 = sand.u32 %s254, 1
        %s457 = scalar_lea.sflag [#allocation8], %s456
        %s458 = sand.u32 %s254, 1
        %s459 = smul.addr %s458, 8
        %s460 = scalar_lea.vmem [#allocation17], %s459
        %s462 = smul.u32 %s31, 8
        %s463 = smul.addr %s462, 4
        %s464 = scalar_lea.vmem %s1, %s463
        // Predicated region
        $region85: #{tpu_custom_call.1} parent=59 // pred_check
          _
        $region86: #{tpu_custom_call.1} parent=59 // pred_check_branch
          %466 = sbr.rel (0) target = $region88
        $region87: #{tpu_custom_call.1} parent=59 // pred_region
          loop: start=0, step=1, limit=1
          $region89: #{tpu_custom_call.1} parent=87 // loop_pre_header
            _
          $region90: #{tpu_custom_call.1} parent=87 // loop_header
            %s468 = sphi 0, %s472
            %p469 = scmp.ge.s32.totalorder %s468, 1
            %s473 = sphi %s464, %s464
            %s474 = sphi [#allocation2], [#allocation2]
          $region91: #{tpu_custom_call.1} parent=87 // loop_header_branch
            %471 = sbr.rel (%p469) target = $region95
          $region92: #{tpu_custom_call.1} parent=87 // loop_body
            %v475 = vld [vmem:[%s473] sm:$0xff]
            %476 = vst [vmem:[%s474] sm:$0xff] %v475
            %v477 = vld [vmem:[%s473 + $0x8] sm:$0xff]
            %478 = vst [vmem:[%s474 + $0x8] sm:$0xff] %v477
            %v479 = vld [vmem:[%s473 + $0x10] sm:$0xff]
            %480 = vst [vmem:[%s474 + $0x10] sm:$0xff] %v479
            %v481 = vld [vmem:[%s473 + $0x18] sm:$0xff]
            %482 = vst [vmem:[%s474 + $0x18] sm:$0xff] %v481
          $region93: #{tpu_custom_call.1} parent=87 // loop_footer
            %s472 = sadd.s32 1, %s468
          $region94: #{tpu_custom_call.1} parent=87 // loop_footer_branch
            %467 = sbr.rel target = $region90
          $region95: #{tpu_custom_call.1} parent=87 // loop_exit
            _
        $region88: #{tpu_custom_call.1} parent=59 // pred_fallthru
          _
        // Predicated region
        $region96: #{tpu_custom_call.1} parent=59 // pred_check
          _
        $region97: #{tpu_custom_call.1} parent=59 // pred_check_branch
          %484 = sbr.rel target = $region99
        $region98: #{tpu_custom_call.1} parent=59 // pred_region
          _
        $region99: #{tpu_custom_call.1} parent=59 // pred_fallthru
          _
        // Predicated region
        $region100: #{tpu_custom_call.1} parent=59 // pred_check
          _
        $region101: #{tpu_custom_call.1} parent=59 // pred_check_branch
          %487 = sbr.rel (0) target = $region103
        $region102: #{tpu_custom_call.1} parent=59 // pred_region
          %488 = vsyncadd [#allocation3], 512
        $region103: #{tpu_custom_call.1} parent=59 // pred_fallthru
          _
        %v489 = vld [vmem:[%s398] sm:$0xff]
        %v490 = vpack.c.bf16 %v489, %v489
        %v491 = vld [vmem:[#allocation9] sm:$0xff]
        %v492 = vld [vmem:[#allocation9 + $0x8] sm:$0xff]
        %v493 = vld [vmem:[#allocation9 + $0x10] sm:$0xff]
        %v494 = vld [vmem:[#allocation9 + $0x18] sm:$0xff]
        %v495 = vld [vmem:[#allocation9 + $0x20] sm:$0xff]
        %v496 = vld [vmem:[#allocation9 + $0x28] sm:$0xff]
        %v497 = vld [vmem:[#allocation9 + $0x30] sm:$0xff]
        %v498 = vld [vmem:[#allocation9 + $0x38] sm:$0xff]
        %v499 = vld [vmem:[#allocation9 + $0x40] sm:$0xff]
        %v500 = vld [vmem:[#allocation9 + $0x48] sm:$0xff]
        %v501 = vld [vmem:[#allocation9 + $0x50] sm:$0xff]
        %v502 = vld [vmem:[#allocation9 + $0x58] sm:$0xff]
        %v503 = vld [vmem:[#allocation9 + $0x60] sm:$0xff]
        %v504 = vld [vmem:[#allocation9 + $0x68] sm:$0xff]
        %v505 = vld [vmem:[#allocation9 + $0x70] sm:$0xff]
        %v506 = vld [vmem:[#allocation9 + $0x78] sm:$0xff]
        %v507 = vld [vmem:[%s4] sm:$0x3]
        %v509 = vperm.slane %v507, 0
        %v510 = vperm.slane %v507, 1
        %v529 = vunpack.c.l.b16 %v491
        %v530 = vunpack.c.h.b16 %v491
        %v531 = vunpack.c.l.b16 %v492
        %v532 = vunpack.c.h.b16 %v492
        %v533 = vunpack.c.l.b16 %v493
        %v534 = vunpack.c.h.b16 %v493
        %v535 = vunpack.c.l.b16 %v494
        %v536 = vunpack.c.h.b16 %v494
        %v537 = vunpack.c.l.b16 %v495
        %v538 = vunpack.c.h.b16 %v495
        %v539 = vunpack.c.l.b16 %v496
        %v540 = vunpack.c.h.b16 %v496
        %v541 = vunpack.c.l.b16 %v497
        %v542 = vunpack.c.h.b16 %v497
        %v543 = vunpack.c.l.b16 %v498
        %v544 = vunpack.c.h.b16 %v498
        %v545 = vunpack.c.l.b16 %v499
        %v546 = vunpack.c.h.b16 %v499
        %v547 = vunpack.c.l.b16 %v500
        %v548 = vunpack.c.h.b16 %v500
        %v549 = vunpack.c.l.b16 %v501
        %v550 = vunpack.c.h.b16 %v501
        %v551 = vunpack.c.l.b16 %v502
        %v552 = vunpack.c.h.b16 %v502
        %v553 = vunpack.c.l.b16 %v503
        %v554 = vunpack.c.h.b16 %v503
        %v555 = vunpack.c.l.b16 %v504
        %v556 = vunpack.c.h.b16 %v504
        %v557 = vunpack.c.l.b16 %v505
        %v558 = vunpack.c.h.b16 %v505
        %v559 = vunpack.c.l.b16 %v506
        %v560 = vunpack.c.h.b16 %v506
        %v561 = vpack.c.b16 %v531, %v529
        %v562 = vpack.c.b16 %v532, %v530
        %v563 = vpack.c.b16 %v535, %v533
        %v564 = vpack.c.b16 %v536, %v534
        %v565 = vpack.c.b16 %v539, %v537
        %v566 = vpack.c.b16 %v540, %v538
        %v567 = vpack.c.b16 %v543, %v541
        %v568 = vpack.c.b16 %v544, %v542
        %v569 = vpack.c.b16 %v547, %v545
        %v570 = vpack.c.b16 %v548, %v546
        %v571 = vpack.c.b16 %v551, %v549
        %v572 = vpack.c.b16 %v552, %v550
        %v573 = vpack.c.b16 %v555, %v553
        %v574 = vpack.c.b16 %v556, %v554
        %v575 = vpack.c.b16 %v559, %v557
        %v576 = vpack.c.b16 %v560, %v558
        %593 = vmatpush.bf16.msra.mxu0 %v575
        %594 = vmatpush.bf16.msra.mxu0 %v573
        %595 = vmatpush.bf16.msra.mxu0 %v571
        %596 = vmatpush.bf16.msra.mxu0 %v569
        %597 = vmatpush.bf16.msra.mxu0 %v567
        %598 = vmatpush.bf16.msra.mxu0 %v565
        %599 = vmatpush.bf16.msra.mxu0 %v563
        %600 = vmatpush.bf16.msra.mxu0 %v561
        %601 = vmatmul.bf16.gmra.mxu0 %v490
        %v602 = vpop.f32.mrf.mxu0
        %v603 = vadd.f32 %v509, %v602
        %v604 = vpop.f32.mrf.mxu0
        %605 = vdwg.mxu0
        %606 = vmatpush.bf16.msra.mxu0 %v576
        %607 = vmatpush.bf16.msra.mxu0 %v574
        %608 = vmatpush.bf16.msra.mxu0 %v572
        %609 = vmatpush.bf16.msra.mxu0 %v570
        %610 = vmatpush.bf16.msra.mxu0 %v568
        %611 = vmatpush.bf16.msra.mxu0 %v566
        %612 = vmatpush.bf16.msra.mxu0 %v564
        %613 = vmatpush.bf16.msra.mxu0 %v562
        %614 = vmatmul.bf16.gmra.mxu0 %v490
        %v615 = vpop.f32.mrf.mxu0
        %v616 = vadd.f32 %v510, %v615
        %v617 = vpop.f32.mrf.mxu0
        %618 = vdwg.mxu0
        %619 = vst [vmem:[#allocation4] sm:$0xff] %v603
        %620 = vst [vmem:[#allocation4 + $0x8] sm:$0xff] %v616
        %v621 = vld [vmem:[#allocation11] sm:$0xff]
        %v622 = vld [vmem:[#allocation11 + $0x8] sm:$0xff]
        %v623 = vld [vmem:[#allocation11 + $0x10] sm:$0xff]
        %v624 = vld [vmem:[#allocation11 + $0x18] sm:$0xff]
        %v625 = vld [vmem:[#allocation11 + $0x20] sm:$0xff]
        %v626 = vld [vmem:[#allocation11 + $0x28] sm:$0xff]
        %v627 = vld [vmem:[#allocation11 + $0x30] sm:$0xff]
        %v628 = vld [vmem:[#allocation11 + $0x38] sm:$0xff]
        %v629 = vld [vmem:[#allocation4] ss:$8 sm:$0x3]
        %v638 = vunpack.c.l.b16 %v621
        %v639 = vunpack.c.h.b16 %v621
        %v640 = vunpack.c.l.b16 %v622
        %v641 = vunpack.c.h.b16 %v622
        %v642 = vunpack.c.l.b16 %v623
        %v643 = vunpack.c.h.b16 %v623
        %v644 = vunpack.c.l.b16 %v624
        %v645 = vunpack.c.h.b16 %v624
        %v646 = vunpack.c.l.b16 %v625
        %v647 = vunpack.c.h.b16 %v625
        %v648 = vunpack.c.l.b16 %v626
        %v649 = vunpack.c.h.b16 %v626
        %v650 = vunpack.c.l.b16 %v627
        %v651 = vunpack.c.h.b16 %v627
        %v652 = vunpack.c.l.b16 %v628
        %v653 = vunpack.c.h.b16 %v628
        %v654 = vpack.c.b16 %v640, %v638
        %v655 = vpack.c.b16 %v641, %v639
        %v656 = vpack.c.b16 %v644, %v642
        %v657 = vpack.c.b16 %v645, %v643
        %v658 = vpack.c.b16 %v648, %v646
        %v659 = vpack.c.b16 %v649, %v647
        %v660 = vpack.c.b16 %v652, %v650
        %v661 = vpack.c.b16 %v653, %v651
        %vm670 = vcmask 523264
        %v672 = vsel %vm670, 0, 0
        %674 = vmatpush.bf16.msra.mxu0 0
        %675 = vmatpush.bf16.msra.mxu0 0
        %676 = vmatpush.bf16.msra.mxu0 0
        %677 = vmatpush.bf16.msra.mxu0 0
        %678 = vmatpush.bf16.msra.mxu0 %v660
        %679 = vmatpush.bf16.msra.mxu0 %v658
        %680 = vmatpush.bf16.msra.mxu0 %v656
        %681 = vmatpush.bf16.msra.mxu0 %v654
        %682 = vmatmul.bf16.gmra.mxu0 %v672
        %v683 = vpop.f32.mrf.mxu0
        %v684 = vadd.f32 0.0, %v683
        %v685 = vpop.f32.mrf.mxu0
        %686 = vdwg.mxu0
        %687 = vmatpush.bf16.msra.mxu0 0
        %688 = vmatpush.bf16.msra.mxu0 0
        %689 = vmatpush.bf16.msra.mxu0 0
        %690 = vmatpush.bf16.msra.mxu0 0
        %691 = vmatpush.bf16.msra.mxu0 %v661
        %692 = vmatpush.bf16.msra.mxu0 %v659
        %693 = vmatpush.bf16.msra.mxu0 %v657
        %694 = vmatpush.bf16.msra.mxu0 %v655
        %695 = vmatmul.bf16.gmra.mxu0 %v672
        %v696 = vpop.f32.mrf.mxu0
        %v697 = vadd.f32 0.0, %v696
        %v698 = vpop.f32.mrf.mxu0
        %699 = vdwg.mxu0
        %v702 = vrot.slane %v697, 7
        %vm703 = vcmask 1040384
        %v704 = vsel %vm703, %v684, %v702
        %v706 = vadd.f32 %v629, %v704
        %v707 = vxor.u32 %v706, 2147483648
        %v708 = vmul.f32 %v707, 1.442695
        %v709 = vpow.pop %v708
        %v710 = vadd.f32 %v709, 1.0
        %v711 = vrcp.pop %v710
        %v712 = vmul.f32 %v710, %v711
        %v713 = vsub.f32 1.0, %v712
        %v714 = vmul.f32 %v711, %v713
        %v715 = vadd.f32 %v711, %v714
        %vm716 = vweird.f32 %v710
        %vm717 = vweird.f32 %v711
        %vm718 = vmor %vm716, %vm717
        %v719 = vsel %vm718, %v711, %v715
        %v720 = vand.u32 2147483647, %v710
        %vm721 = vcmp.eq.f32.partialorder %v720, 8.507059e+37
        %v722 = vand.u32 %v710, 2147483648
        %v723 = vor.u32 1.1754944e-38, %v722
        %v724 = vsel %vm721, %v723, %v719
        %v725 = vmul.f32 1.0, %v724
        %727 = vrot.lane.b32.xlu0 %v706, 64
        %v728 = vpop.permute.xlu0 %727
        %v729 = vrot.slane %v728, 1
        %v731 = vtanh.pop %v729
        %v732 = vmul.f32 %v725, 0.0
        %v733 = vmul.f32 %v725, %v731
        %735 = vrot.lane.b32.xlu0 %v733, 64
        %v736 = vpop.permute.xlu0 %735
        %v738 = vadd.f32 %v732, %v736
        %v739 = vtanh.pop %v738
        %v741 = vrot.slane %v725, 1
        %744 = vrot.lane.b32.xlu0 %v739, 64
        %v745 = vpop.permute.xlu0 %744
        %v747 = vmul.f32 %v741, %v745
        %vm748 = vcmask 516096
        %749 = vst.msk [vmem:[#allocation5] sm:$0x1] %vm748, %v747
        %s750 = scalar_lea.vmem [#allocation4], 1
        %v751 = vld [vmem:[%s750] ss:$8 sm:$0x3]
        %v752 = vpack.c.bf16 %v747, %v747
        %v754 = vsel %vm670, %v752, 0
        %756 = vmatpush.bf16.msra.mxu0 0
        %757 = vmatpush.bf16.msra.mxu0 0
        %758 = vmatpush.bf16.msra.mxu0 0
        %759 = vmatpush.bf16.msra.mxu0 0
        %760 = vmatpush.bf16.msra.mxu0 %v660
        %761 = vmatpush.bf16.msra.mxu0 %v658
        %762 = vmatpush.bf16.msra.mxu0 %v656
        %763 = vmatpush.bf16.msra.mxu0 %v654
        %764 = vmatmul.bf16.gmra.mxu0 %v754
        %v765 = vpop.f32.mrf.mxu0
        %v766 = vadd.f32 0.0, %v765
        %v767 = vpop.f32.mrf.mxu0
        %768 = vdwg.mxu0
        %769 = vmatpush.bf16.msra.mxu0 0
        %770 = vmatpush.bf16.msra.mxu0 0
        %771 = vmatpush.bf16.msra.mxu0 0
        %772 = vmatpush.bf16.msra.mxu0 0
        %773 = vmatpush.bf16.msra.mxu0 %v661
        %774 = vmatpush.bf16.msra.mxu0 %v659
        %775 = vmatpush.bf16.msra.mxu0 %v657
        %776 = vmatpush.bf16.msra.mxu0 %v655
        %777 = vmatmul.bf16.gmra.mxu0 %v754
        %v778 = vpop.f32.mrf.mxu0
        %v779 = vadd.f32 0.0, %v778
        %v780 = vpop.f32.mrf.mxu0
        %781 = vdwg.mxu0
        %v784 = vrot.slane %v779, 7
        %v785 = vsel %vm703, %v766, %v784
        %v787 = vadd.f32 %v751, %v785
        %v788 = vxor.u32 %v787, 2147483648
        %v789 = vmul.f32 %v788, 1.442695
        %v790 = vpow.pop %v789
        %v791 = vadd.f32 %v790, 1.0
        %v792 = vrcp.pop %v791
        %v793 = vmul.f32 %v791, %v792
        %v794 = vsub.f32 1.0, %v793
        %v795 = vmul.f32 %v792, %v794
        %v796 = vadd.f32 %v792, %v795
        %vm797 = vweird.f32 %v791
        %vm798 = vweird.f32 %v792
        %vm799 = vmor %vm797, %vm798
        %v800 = vsel %vm799, %v792, %v796
        %v801 = vand.u32 2147483647, %v791
        %vm802 = vcmp.eq.f32.partialorder %v801, 8.507059e+37
        %v803 = vand.u32 %v791, 2147483648
        %v804 = vor.u32 1.1754944e-38, %v803
        %v805 = vsel %vm802, %v804, %v800
        %v806 = vmul.f32 1.0, %v805
        %808 = vrot.lane.b32.xlu0 %v787, 64
        %v809 = vpop.permute.xlu0 %808
        %v810 = vrot.slane %v809, 1
        %v812 = vtanh.pop %v810
        %v813 = vmul.f32 %v806, %v738
        %v814 = vmul.f32 %v806, %v812
        %816 = vrot.lane.b32.xlu0 %v814, 64
        %v817 = vpop.permute.xlu0 %816
        %v819 = vadd.f32 %v813, %v817
        %v820 = vtanh.pop %v819
        %v822 = vrot.slane %v806, 1
        %825 = vrot.lane.b32.xlu0 %v820, 64
        %v826 = vpop.permute.xlu0 %825
        %v828 = vmul.f32 %v822, %v826
        %829 = vst.msk [vmem:[#allocation5 + $0x1] sm:$0x1] %vm748, %v828
        %s830 = scalar_lea.vmem [#allocation4], 2
        %v831 = vld [vmem:[%s830] ss:$8 sm:$0x3]
        %v832 = vpack.c.bf16 %v828, %v828
        %v834 = vsel %vm670, %v832, 0
        %836 = vmatpush.bf16.msra.mxu0 0
        %837 = vmatpush.bf16.msra.mxu0 0
        %838 = vmatpush.bf16.msra.mxu0 0
        %839 = vmatpush.bf16.msra.mxu0 0
        %840 = vmatpush.bf16.msra.mxu0 %v660
        %841 = vmatpush.bf16.msra.mxu0 %v658
        %842 = vmatpush.bf16.msra.mxu0 %v656
        %843 = vmatpush.bf16.msra.mxu0 %v654
        %844 = vmatmul.bf16.gmra.mxu0 %v834
        %v845 = vpop.f32.mrf.mxu0
        %v846 = vadd.f32 0.0, %v845
        %v847 = vpop.f32.mrf.mxu0
        %848 = vdwg.mxu0
        %849 = vmatpush.bf16.msra.mxu0 0
        %850 = vmatpush.bf16.msra.mxu0 0
        %851 = vmatpush.bf16.msra.mxu0 0
        %852 = vmatpush.bf16.msra.mxu0 0
        %853 = vmatpush.bf16.msra.mxu0 %v661
        %854 = vmatpush.bf16.msra.mxu0 %v659
        %855 = vmatpush.bf16.msra.mxu0 %v657
        %856 = vmatpush.bf16.msra.mxu0 %v655
        %857 = vmatmul.bf16.gmra.mxu0 %v834
        %v858 = vpop.f32.mrf.mxu0
        %v859 = vadd.f32 0.0, %v858
        %v860 = vpop.f32.mrf.mxu0
        %861 = vdwg.mxu0
        %v864 = vrot.slane %v859, 7
        %v865 = vsel %vm703, %v846, %v864
        %v867 = vadd.f32 %v831, %v865
        %v868 = vxor.u32 %v867, 2147483648
        %v869 = vmul.f32 %v868, 1.442695
        %v870 = vpow.pop %v869
        %v871 = vadd.f32 %v870, 1.0
        %v872 = vrcp.pop %v871
        %v873 = vmul.f32 %v871, %v872
        %v874 = vsub.f32 1.0, %v873
        %v875 = vmul.f32 %v872, %v874
        %v876 = vadd.f32 %v872, %v875
        %vm877 = vweird.f32 %v871
        %vm878 = vweird.f32 %v872
        %vm879 = vmor %vm877, %vm878
        %v880 = vsel %vm879, %v872, %v876
        %v881 = vand.u32 2147483647, %v871
        %vm882 = vcmp.eq.f32.partialorder %v881, 8.507059e+37
        %v883 = vand.u32 %v871, 2147483648
        %v884 = vor.u32 1.1754944e-38, %v883
        %v885 = vsel %vm882, %v884, %v880
        %v886 = vmul.f32 1.0, %v885
        %888 = vrot.lane.b32.xlu0 %v867, 64
        %v889 = vpop.permute.xlu0 %888
        %v890 = vrot.slane %v889, 1
        %v892 = vtanh.pop %v890
        %v893 = vmul.f32 %v886, %v819
        %v894 = vmul.f32 %v886, %v892
        %896 = vrot.lane.b32.xlu0 %v894, 64
        %v897 = vpop.permute.xlu0 %896
        %v899 = vadd.f32 %v893, %v897
        %v900 = vtanh.pop %v899
        %v902 = vrot.slane %v886, 1
        %905 = vrot.lane.b32.xlu0 %v900, 64
        %v906 = vpop.permute.xlu0 %905
        %v908 = vmul.f32 %v902, %v906
        %909 = vst.msk [vmem:[#allocation5 + $0x2] sm:$0x1] %vm748, %v908
        %s910 = scalar_lea.vmem [#allocation4], 3
        %v911 = vld [vmem:[%s910] ss:$8 sm:$0x3]
        %v912 = vpack.c.bf16 %v908, %v908
        %v914 = vsel %vm670, %v912, 0
        %916 = vmatpush.bf16.msra.mxu0 0
        %917 = vmatpush.bf16.msra.mxu0 0
        %918 = vmatpush.bf16.msra.mxu0 0
        %919 = vmatpush.bf16.msra.mxu0 0
        %920 = vmatpush.bf16.msra.mxu0 %v660
        %921 = vmatpush.bf16.msra.mxu0 %v658
        %922 = vmatpush.bf16.msra.mxu0 %v656
        %923 = vmatpush.bf16.msra.mxu0 %v654
        %924 = vmatmul.bf16.gmra.mxu0 %v914
        %v925 = vpop.f32.mrf.mxu0
        %v926 = vadd.f32 0.0, %v925
        %v927 = vpop.f32.mrf.mxu0
        %928 = vdwg.mxu0
        %929 = vmatpush.bf16.msra.mxu0 0
        %930 = vmatpush.bf16.msra.mxu0 0
        %931 = vmatpush.bf16.msra.mxu0 0
        %932 = vmatpush.bf16.msra.mxu0 0
        %933 = vmatpush.bf16.msra.mxu0 %v661
        %934 = vmatpush.bf16.msra.mxu0 %v659
        %935 = vmatpush.bf16.msra.mxu0 %v657
        %936 = vmatpush.bf16.msra.mxu0 %v655
        %937 = vmatmul.bf16.gmra.mxu0 %v914
        %v938 = vpop.f32.mrf.mxu0
        %v939 = vadd.f32 0.0, %v938
        %v940 = vpop.f32.mrf.mxu0
        %941 = vdwg.mxu0
        %v944 = vrot.slane %v939, 7
        %v945 = vsel %vm703, %v926, %v944
        %v947 = vadd.f32 %v911, %v945
        %v948 = vxor.u32 %v947, 2147483648
        %v949 = vmul.f32 %v948, 1.442695
        %v950 = vpow.pop %v949
        %v951 = vadd.f32 %v950, 1.0
        %v952 = vrcp.pop %v951
        %v953 = vmul.f32 %v951, %v952
        %v954 = vsub.f32 1.0, %v953
        %v955 = vmul.f32 %v952, %v954
        %v956 = vadd.f32 %v952, %v955
        %vm957 = vweird.f32 %v951
        %vm958 = vweird.f32 %v952
        %vm959 = vmor %vm957, %vm958
        %v960 = vsel %vm959, %v952, %v956
        %v961 = vand.u32 2147483647, %v951
        %vm962 = vcmp.eq.f32.partialorder %v961, 8.507059e+37
        %v963 = vand.u32 %v951, 2147483648
        %v964 = vor.u32 1.1754944e-38, %v963
        %v965 = vsel %vm962, %v964, %v960
        %v966 = vmul.f32 1.0, %v965
        %968 = vrot.lane.b32.xlu0 %v947, 64
        %v969 = vpop.permute.xlu0 %968
        %v970 = vrot.slane %v969, 1
        %v972 = vtanh.pop %v970
        %v973 = vmul.f32 %v966, %v899
        %v974 = vmul.f32 %v966, %v972
        %976 = vrot.lane.b32.xlu0 %v974, 64
        %v977 = vpop.permute.xlu0 %976
        %v979 = vadd.f32 %v973, %v977
        %v980 = vtanh.pop %v979
        %v982 = vrot.slane %v966, 1
        %985 = vrot.lane.b32.xlu0 %v980, 64
        %v986 = vpop.permute.xlu0 %985
        %v988 = vmul.f32 %v982, %v986
        %989 = vst.msk [vmem:[#allocation5 + $0x3] sm:$0x1] %vm748, %v988
        %s990 = scalar_lea.vmem [#allocation4], 4
        %v991 = vld [vmem:[%s990] ss:$8 sm:$0x3]
        %v992 = vpack.c.bf16 %v988, %v988
        %v994 = vsel %vm670, %v992, 0
        %996 = vmatpush.bf16.msra.mxu0 0
        %997 = vmatpush.bf16.msra.mxu0 0
        %998 = vmatpush.bf16.msra.mxu0 0
        %999 = vmatpush.bf16.msra.mxu0 0
        %1000 = vmatpush.bf16.msra.mxu0 %v660
        %1001 = vmatpush.bf16.msra.mxu0 %v658
        %1002 = vmatpush.bf16.msra.mxu0 %v656
        %1003 = vmatpush.bf16.msra.mxu0 %v654
        %1004 = vmatmul.bf16.gmra.mxu0 %v994
        %v1005 = vpop.f32.mrf.mxu0
        %v1006 = vadd.f32 0.0, %v1005
        %v1007 = vpop.f32.mrf.mxu0
        %1008 = vdwg.mxu0
        %1009 = vmatpush.bf16.msra.mxu0 0
        %1010 = vmatpush.bf16.msra.mxu0 0
        %1011 = vmatpush.bf16.msra.mxu0 0
        %1012 = vmatpush.bf16.msra.mxu0 0
        %1013 = vmatpush.bf16.msra.mxu0 %v661
        %1014 = vmatpush.bf16.msra.mxu0 %v659
        %1015 = vmatpush.bf16.msra.mxu0 %v657
        %1016 = vmatpush.bf16.msra.mxu0 %v655
        %1017 = vmatmul.bf16.gmra.mxu0 %v994
        %v1018 = vpop.f32.mrf.mxu0
        %v1019 = vadd.f32 0.0, %v1018
        %v1020 = vpop.f32.mrf.mxu0
        %1021 = vdwg.mxu0
        %v1024 = vrot.slane %v1019, 7
        %v1025 = vsel %vm703, %v1006, %v1024
        %v1027 = vadd.f32 %v991, %v1025
        %v1028 = vxor.u32 %v1027, 2147483648
        %v1029 = vmul.f32 %v1028, 1.442695
        %v1030 = vpow.pop %v1029
        %v1031 = vadd.f32 %v1030, 1.0
        %v1032 = vrcp.pop %v1031
        %v1033 = vmul.f32 %v1031, %v1032
        %v1034 = vsub.f32 1.0, %v1033
        %v1035 = vmul.f32 %v1032, %v1034
        %v1036 = vadd.f32 %v1032, %v1035
        %vm1037 = vweird.f32 %v1031
        %vm1038 = vweird.f32 %v1032
        %vm1039 = vmor %vm1037, %vm1038
        %v1040 = vsel %vm1039, %v1032, %v1036
        %v1041 = vand.u32 2147483647, %v1031
        %vm1042 = vcmp.eq.f32.partialorder %v1041, 8.507059e+37
        %v1043 = vand.u32 %v1031, 2147483648
        %v1044 = vor.u32 1.1754944e-38, %v1043
        %v1045 = vsel %vm1042, %v1044, %v1040
        %v1046 = vmul.f32 1.0, %v1045
        %1048 = vrot.lane.b32.xlu0 %v1027, 64
        %v1049 = vpop.permute.xlu0 %1048
        %v1050 = vrot.slane %v1049, 1
        %v1052 = vtanh.pop %v1050
        %v1053 = vmul.f32 %v1046, %v979
        %v1054 = vmul.f32 %v1046, %v1052
        %1056 = vrot.lane.b32.xlu0 %v1054, 64
        %v1057 = vpop.permute.xlu0 %1056
        %v1059 = vadd.f32 %v1053, %v1057
        %v1060 = vtanh.pop %v1059
        %v1062 = vrot.slane %v1046, 1
        %1065 = vrot.lane.b32.xlu0 %v1060, 64
        %v1066 = vpop.permute.xlu0 %1065
        %v1068 = vmul.f32 %v1062, %v1066
        %1069 = vst.msk [vmem:[#allocation5 + $0x4] sm:$0x1] %vm748, %v1068
        %s1070 = scalar_lea.vmem [#allocation4], 5
        %v1071 = vld [vmem:[%s1070] ss:$8 sm:$0x3]
        %v1072 = vpack.c.bf16 %v1068, %v1068
        %v1074 = vsel %vm670, %v1072, 0
        %1076 = vmatpush.bf16.msra.mxu0 0
        %1077 = vmatpush.bf16.msra.mxu0 0
        %1078 = vmatpush.bf16.msra.mxu0 0
        %1079 = vmatpush.bf16.msra.mxu0 0
        %1080 = vmatpush.bf16.msra.mxu0 %v660
        %1081 = vmatpush.bf16.msra.mxu0 %v658
        %1082 = vmatpush.bf16.msra.mxu0 %v656
        %1083 = vmatpush.bf16.msra.mxu0 %v654
        %1084 = vmatmul.bf16.gmra.mxu0 %v1074
        %v1085 = vpop.f32.mrf.mxu0
        %v1086 = vadd.f32 0.0, %v1085
        %v1087 = vpop.f32.mrf.mxu0
        %1088 = vdwg.mxu0
        %1089 = vmatpush.bf16.msra.mxu0 0
        %1090 = vmatpush.bf16.msra.mxu0 0
        %1091 = vmatpush.bf16.msra.mxu0 0
        %1092 = vmatpush.bf16.msra.mxu0 0
        %1093 = vmatpush.bf16.msra.mxu0 %v661
        %1094 = vmatpush.bf16.msra.mxu0 %v659
        %1095 = vmatpush.bf16.msra.mxu0 %v657
        %1096 = vmatpush.bf16.msra.mxu0 %v655
        %1097 = vmatmul.bf16.gmra.mxu0 %v1074
        %v1098 = vpop.f32.mrf.mxu0
        %v1099 = vadd.f32 0.0, %v1098
        %v1100 = vpop.f32.mrf.mxu0
        %1101 = vdwg.mxu0
        %v1104 = vrot.slane %v1099, 7
        %v1105 = vsel %vm703, %v1086, %v1104
        %v1107 = vadd.f32 %v1071, %v1105
        %v1108 = vxor.u32 %v1107, 2147483648
        %v1109 = vmul.f32 %v1108, 1.442695
        %v1110 = vpow.pop %v1109
        %v1111 = vadd.f32 %v1110, 1.0
        %v1112 = vrcp.pop %v1111
        %v1113 = vmul.f32 %v1111, %v1112
        %v1114 = vsub.f32 1.0, %v1113
        %v1115 = vmul.f32 %v1112, %v1114
        %v1116 = vadd.f32 %v1112, %v1115
        %vm1117 = vweird.f32 %v1111
        %vm1118 = vweird.f32 %v1112
        %vm1119 = vmor %vm1117, %vm1118
        %v1120 = vsel %vm1119, %v1112, %v1116
        %v1121 = vand.u32 2147483647, %v1111
        %vm1122 = vcmp.eq.f32.partialorder %v1121, 8.507059e+37
        %v1123 = vand.u32 %v1111, 2147483648
        %v1124 = vor.u32 1.1754944e-38, %v1123
        %v1125 = vsel %vm1122, %v1124, %v1120
        %v1126 = vmul.f32 1.0, %v1125
        %1128 = vrot.lane.b32.xlu0 %v1107, 64
        %v1129 = vpop.permute.xlu0 %1128
        %v1130 = vrot.slane %v1129, 1
        %v1132 = vtanh.pop %v1130
        %v1133 = vmul.f32 %v1126, %v1059
        %v1134 = vmul.f32 %v1126, %v1132
        %1136 = vrot.lane.b32.xlu0 %v1134, 64
        %v1137 = vpop.permute.xlu0 %1136
        %v1139 = vadd.f32 %v1133, %v1137
        %v1140 = vtanh.pop %v1139
        %v1142 = vrot.slane %v1126, 1
        %1145 = vrot.lane.b32.xlu0 %v1140, 64
        %v1146 = vpop.permute.xlu0 %1145
        %v1148 = vmul.f32 %v1142, %v1146
        %1149 = vst.msk [vmem:[#allocation5 + $0x5] sm:$0x1] %vm748, %v1148
        %s1150 = scalar_lea.vmem [#allocation4], 6
        %v1151 = vld [vmem:[%s1150] ss:$8 sm:$0x3]
        %v1152 = vpack.c.bf16 %v1148, %v1148
        %v1154 = vsel %vm670, %v1152, 0
        %1156 = vmatpush.bf16.msra.mxu0 0
        %1157 = vmatpush.bf16.msra.mxu0 0
        %1158 = vmatpush.bf16.msra.mxu0 0
        %1159 = vmatpush.bf16.msra.mxu0 0
        %1160 = vmatpush.bf16.msra.mxu0 %v660
        %1161 = vmatpush.bf16.msra.mxu0 %v658
        %1162 = vmatpush.bf16.msra.mxu0 %v656
        %1163 = vmatpush.bf16.msra.mxu0 %v654
        %1164 = vmatmul.bf16.gmra.mxu0 %v1154
        %v1165 = vpop.f32.mrf.mxu0
        %v1166 = vadd.f32 0.0, %v1165
        %v1167 = vpop.f32.mrf.mxu0
        %1168 = vdwg.mxu0
        %1169 = vmatpush.bf16.msra.mxu0 0
        %1170 = vmatpush.bf16.msra.mxu0 0
        %1171 = vmatpush.bf16.msra.mxu0 0
        %1172 = vmatpush.bf16.msra.mxu0 0
        %1173 = vmatpush.bf16.msra.mxu0 %v661
        %1174 = vmatpush.bf16.msra.mxu0 %v659
        %1175 = vmatpush.bf16.msra.mxu0 %v657
        %1176 = vmatpush.bf16.msra.mxu0 %v655
        %1177 = vmatmul.bf16.gmra.mxu0 %v1154
        %v1178 = vpop.f32.mrf.mxu0
        %v1179 = vadd.f32 0.0, %v1178
        %v1180 = vpop.f32.mrf.mxu0
        %1181 = vdwg.mxu0
        %v1184 = vrot.slane %v1179, 7
        %v1185 = vsel %vm703, %v1166, %v1184
        %v1187 = vadd.f32 %v1151, %v1185
        %v1188 = vxor.u32 %v1187, 2147483648
        %v1189 = vmul.f32 %v1188, 1.442695
        %v1190 = vpow.pop %v1189
        %v1191 = vadd.f32 %v1190, 1.0
        %v1192 = vrcp.pop %v1191
        %v1193 = vmul.f32 %v1191, %v1192
        %v1194 = vsub.f32 1.0, %v1193
        %v1195 = vmul.f32 %v1192, %v1194
        %v1196 = vadd.f32 %v1192, %v1195
        %vm1197 = vweird.f32 %v1191
        %vm1198 = vweird.f32 %v1192
        %vm1199 = vmor %vm1197, %vm1198
        %v1200 = vsel %vm1199, %v1192, %v1196
        %v1201 = vand.u32 2147483647, %v1191
        %vm1202 = vcmp.eq.f32.partialorder %v1201, 8.507059e+37
        %v1203 = vand.u32 %v1191, 2147483648
        %v1204 = vor.u32 1.1754944e-38, %v1203
        %v1205 = vsel %vm1202, %v1204, %v1200
        %v1206 = vmul.f32 1.0, %v1205
        %1208 = vrot.lane.b32.xlu0 %v1187, 64
        %v1209 = vpop.permute.xlu0 %1208
        %v1210 = vrot.slane %v1209, 1
        %v1212 = vtanh.pop %v1210
        %v1213 = vmul.f32 %v1206, %v1139
        %v1214 = vmul.f32 %v1206, %v1212
        %1216 = vrot.lane.b32.xlu0 %v1214, 64
        %v1217 = vpop.permute.xlu0 %1216
        %v1219 = vadd.f32 %v1213, %v1217
        %v1220 = vtanh.pop %v1219
        %v1222 = vrot.slane %v1206, 1
        %1225 = vrot.lane.b32.xlu0 %v1220, 64
        %v1226 = vpop.permute.xlu0 %1225
        %v1228 = vmul.f32 %v1222, %v1226
        %1229 = vst.msk [vmem:[#allocation5 + $0x6] sm:$0x1] %vm748, %v1228
        %s1230 = scalar_lea.vmem [#allocation4], 7
        %v1231 = vld [vmem:[%s1230] ss:$8 sm:$0x3]
        %v1232 = vpack.c.bf16 %v1228, %v1228
        %v1234 = vsel %vm670, %v1232, 0
        %1236 = vmatpush.bf16.msra.mxu0 0
        %1237 = vmatpush.bf16.msra.mxu0 0
        %1238 = vmatpush.bf16.msra.mxu0 0
        %1239 = vmatpush.bf16.msra.mxu0 0
        %1240 = vmatpush.bf16.msra.mxu0 %v660
        %1241 = vmatpush.bf16.msra.mxu0 %v658
        %1242 = vmatpush.bf16.msra.mxu0 %v656
        %1243 = vmatpush.bf16.msra.mxu0 %v654
        %1244 = vmatmul.bf16.gmra.mxu0 %v1234
        %v1245 = vpop.f32.mrf.mxu0
        %v1246 = vadd.f32 0.0, %v1245
        %v1247 = vpop.f32.mrf.mxu0
        %1248 = vdwg.mxu0
        %1249 = vmatpush.bf16.msra.mxu0 0
        %1250 = vmatpush.bf16.msra.mxu0 0
        %1251 = vmatpush.bf16.msra.mxu0 0
        %1252 = vmatpush.bf16.msra.mxu0 0
        %1253 = vmatpush.bf16.msra.mxu0 %v661
        %1254 = vmatpush.bf16.msra.mxu0 %v659
        %1255 = vmatpush.bf16.msra.mxu0 %v657
        %1256 = vmatpush.bf16.msra.mxu0 %v655
        %1257 = vmatmul.bf16.gmra.mxu0 %v1234
        %v1258 = vpop.f32.mrf.mxu0
        %v1259 = vadd.f32 0.0, %v1258
        %v1260 = vpop.f32.mrf.mxu0
        %1261 = vdwg.mxu0
        %v1264 = vrot.slane %v1259, 7
        %v1265 = vsel %vm703, %v1246, %v1264
        %v1267 = vadd.f32 %v1231, %v1265
        %v1268 = vxor.u32 %v1267, 2147483648
        %v1269 = vmul.f32 %v1268, 1.442695
        %v1270 = vpow.pop %v1269
        %v1271 = vadd.f32 %v1270, 1.0
        %v1272 = vrcp.pop %v1271
        %v1273 = vmul.f32 %v1271, %v1272
        %v1274 = vsub.f32 1.0, %v1273
        %v1275 = vmul.f32 %v1272, %v1274
        %v1276 = vadd.f32 %v1272, %v1275
        %vm1277 = vweird.f32 %v1271
        %vm1278 = vweird.f32 %v1272
        %vm1279 = vmor %vm1277, %vm1278
        %v1280 = vsel %vm1279, %v1272, %v1276
        %v1281 = vand.u32 2147483647, %v1271
        %vm1282 = vcmp.eq.f32.partialorder %v1281, 8.507059e+37
        %v1283 = vand.u32 %v1271, 2147483648
        %v1284 = vor.u32 1.1754944e-38, %v1283
        %v1285 = vsel %vm1282, %v1284, %v1280
        %v1286 = vmul.f32 1.0, %v1285
        %1288 = vrot.lane.b32.xlu0 %v1267, 64
        %v1289 = vpop.permute.xlu0 %1288
        %v1290 = vrot.slane %v1289, 1
        %v1292 = vtanh.pop %v1290
        %v1293 = vmul.f32 %v1286, %v1219
        %v1294 = vmul.f32 %v1286, %v1292
        %1296 = vrot.lane.b32.xlu0 %v1294, 64
        %v1297 = vpop.permute.xlu0 %1296
        %v1299 = vadd.f32 %v1293, %v1297
        %v1300 = vtanh.pop %v1299
        %v1302 = vrot.slane %v1286, 1
        %1305 = vrot.lane.b32.xlu0 %v1300, 64
        %v1306 = vpop.permute.xlu0 %1305
        %v1308 = vmul.f32 %v1302, %v1306
        %1309 = vst.msk [vmem:[#allocation5 + $0x7] sm:$0x1] %vm748, %v1308
        %s1310 = smul.u32 4, 8
        %s1311 = smul.u32 %s1310, 1
        %s1312 = smul.u32 %s1311, 1
        %s1313 = sshll.u32 %s1312, 4
        %1314 = dma.done [#allocation3], %s1313
        %v1315 = vld [vmem:[#allocation5] sm:$0xff]
        %v1316 = vpack.c.bf16 %v1315, %v1315
        %v1317 = vld [vmem:[#allocation2] sm:$0xf]
        %v1318 = vld [vmem:[#allocation2 + $0x4] sm:$0xf]
        %v1319 = vld [vmem:[#allocation2 + $0x8] sm:$0xf]
        %v1320 = vld [vmem:[#allocation2 + $0xc] sm:$0xf]
        %v1321 = vld [vmem:[#allocation2 + $0x10] sm:$0xf]
        %v1322 = vld [vmem:[#allocation2 + $0x14] sm:$0xf]
        %v1323 = vld [vmem:[#allocation2 + $0x18] sm:$0xf]
        %v1324 = vld [vmem:[#allocation2 + $0x1c] sm:$0xf]
        %v1325 = vld [vmem:[%s5] sm:$0xf]
        %v1326 = vld [vmem:[%s5 + $0x4] sm:$0xf]
        %v1327 = vld [vmem:[%s5 + $0x8] sm:$0xf]
        %v1328 = vld [vmem:[%s5 + $0xc] sm:$0xf]
        %v1329 = vld [vmem:[%s5 + $0x10] sm:$0xf]
        %v1330 = vld [vmem:[%s5 + $0x14] sm:$0xf]
        %v1331 = vld [vmem:[%s5 + $0x18] sm:$0xf]
        %v1332 = vld [vmem:[%s5 + $0x1c] sm:$0xf]
        %v1341 = vunpack.c.l.b16 %v1325
        %v1342 = vunpack.c.l.b16 %v1326
        %v1343 = vunpack.c.l.b16 %v1327
        %v1344 = vunpack.c.l.b16 %v1328
        %v1345 = vunpack.c.l.b16 %v1329
        %v1346 = vunpack.c.l.b16 %v1330
        %v1347 = vunpack.c.l.b16 %v1331
        %v1348 = vunpack.c.l.b16 %v1332
        %v1349 = vpack.c.b16 %v1342, %v1341
        %v1350 = vpack.c.b16 %v1344, %v1343
        %v1351 = vpack.c.b16 %v1346, %v1345
        %v1352 = vpack.c.b16 %v1348, %v1347
        %v1358 = vsel %vm670, %v1316, 0
        %1360 = vmatpush.bf16.msra.mxu0 0
        %1361 = vmatpush.bf16.msra.mxu0 0
        %1362 = vmatpush.bf16.msra.mxu0 0
        %1363 = vmatpush.bf16.msra.mxu0 0
        %1364 = vmatpush.bf16.msra.mxu0 %v1352
        %1365 = vmatpush.bf16.msra.mxu0 %v1351
        %1366 = vmatpush.bf16.msra.mxu0 %v1350
        %1367 = vmatpush.bf16.msra.mxu0 %v1349
        %1368 = vmatmul.bf16.gmra.mxu0 %v1358
        %v1369 = vpop.f32.mrf.mxu0
        %v1370 = vadd.f32 0.0, %v1369
        %v1371 = vpop.f32.mrf.mxu0
        %1372 = vdwg.mxu0
        %v1373 = vpack.c.bf16 %v1370, %v1370
        %v1375 = vrot.slane %v1373, 3
        %v1378 = vsel %vm703, %v1373, %v1375
        %vm1380 = vcmask 1041409
        %v1381 = vsel %vm1380, %v1373, %v1375
        %v1383 = vrot.slane %v1381, 1
        %vm1384 = vcmask 1042434
        %v1385 = vsel %vm1384, %v1373, %v1375
        %v1387 = vrot.slane %v1385, 2
        %vm1388 = vcmask 1043459
        %v1389 = vsel %vm1388, %v1373, %v1375
        %v1391 = vrot.slane %v1389, 3
        %v1392 = vunpack.i.l.s16 %v1378
        %v1393 = vunpack.i.h.s16 %v1378
        %v1394 = vunpack.i.l.s16 %v1383
        %v1395 = vunpack.i.h.s16 %v1383
        %v1396 = vunpack.i.l.s16 %v1387
        %v1397 = vunpack.i.h.s16 %v1387
        %v1398 = vunpack.i.l.s16 %v1391
        %v1399 = vunpack.i.h.s16 %v1391
        %v1400 = vpack.i.b16 %v1392, %v1392
        %v1401 = vperm.slane %v1400, 0
        %1403 = vmatpush.bf16.xpose.msra.mxu0 0
        %1404 = vmatpush.bf16.xpose.msra.mxu0 0
        %1405 = vmatpush.bf16.xpose.msra.mxu0 0
        %1406 = vmatpush.bf16.xpose.msra.mxu0 0
        %1407 = vmatpush.bf16.xpose.msra.mxu0 0
        %1408 = vmatpush.bf16.xpose.msra.mxu0 0
        %1409 = vmatpush.bf16.xpose.msra.mxu0 0
        %1410 = vmatpush.bf16.xpose.msra.mxu0 %v1317
        %1411 = vmatmul.bf16.gmra.mxu0 %v1401
        %v1412 = vpop.f32.mrf.mxu0
        %v1413 = vadd.f32 0.0, %v1412
        %v1414 = vpop.f32.mrf.mxu0
        %1415 = vdwg.mxu0
        %v1416 = vpack.i.b16 %v1393, %v1393
        %v1417 = vperm.slane %v1416, 0
        %1419 = vmatpush.bf16.xpose.msra.mxu0 0
        %1420 = vmatpush.bf16.xpose.msra.mxu0 0
        %1421 = vmatpush.bf16.xpose.msra.mxu0 0
        %1422 = vmatpush.bf16.xpose.msra.mxu0 0
        %1423 = vmatpush.bf16.xpose.msra.mxu0 0
        %1424 = vmatpush.bf16.xpose.msra.mxu0 0
        %1425 = vmatpush.bf16.xpose.msra.mxu0 0
        %1426 = vmatpush.bf16.xpose.msra.mxu0 %v1318
        %1427 = vmatmul.bf16.gmra.mxu0 %v1417
        %v1428 = vpop.f32.mrf.mxu0
        %v1429 = vadd.f32 0.0, %v1428
        %v1430 = vpop.f32.mrf.mxu0
        %1431 = vdwg.mxu0
        %v1432 = vpack.i.b16 %v1394, %v1394
        %v1433 = vperm.slane %v1432, 0
        %1435 = vmatpush.bf16.xpose.msra.mxu0 0
        %1436 = vmatpush.bf16.xpose.msra.mxu0 0
        %1437 = vmatpush.bf16.xpose.msra.mxu0 0
        %1438 = vmatpush.bf16.xpose.msra.mxu0 0
        %1439 = vmatpush.bf16.xpose.msra.mxu0 0
        %1440 = vmatpush.bf16.xpose.msra.mxu0 0
        %1441 = vmatpush.bf16.xpose.msra.mxu0 0
        %1442 = vmatpush.bf16.xpose.msra.mxu0 %v1319
        %1443 = vmatmul.bf16.gmra.mxu0 %v1433
        %v1444 = vpop.f32.mrf.mxu0
        %v1445 = vadd.f32 0.0, %v1444
        %v1446 = vpop.f32.mrf.mxu0
        %1447 = vdwg.mxu0
        %v1448 = vpack.i.b16 %v1395, %v1395
        %v1449 = vperm.slane %v1448, 0
        %1451 = vmatpush.bf16.xpose.msra.mxu0 0
        %1452 = vmatpush.bf16.xpose.msra.mxu0 0
        %1453 = vmatpush.bf16.xpose.msra.mxu0 0
        %1454 = vmatpush.bf16.xpose.msra.mxu0 0
        %1455 = vmatpush.bf16.xpose.msra.mxu0 0
        %1456 = vmatpush.bf16.xpose.msra.mxu0 0
        %1457 = vmatpush.bf16.xpose.msra.mxu0 0
        %1458 = vmatpush.bf16.xpose.msra.mxu0 %v1320
        %1459 = vmatmul.bf16.gmra.mxu0 %v1449
        %v1460 = vpop.f32.mrf.mxu0
        %v1461 = vadd.f32 0.0, %v1460
        %v1462 = vpop.f32.mrf.mxu0
        %1463 = vdwg.mxu0
        %v1464 = vpack.i.b16 %v1396, %v1396
        %v1465 = vperm.slane %v1464, 0
        %1467 = vmatpush.bf16.xpose.msra.mxu0 0
        %1468 = vmatpush.bf16.xpose.msra.mxu0 0
        %1469 = vmatpush.bf16.xpose.msra.mxu0 0
        %1470 = vmatpush.bf16.xpose.msra.mxu0 0
        %1471 = vmatpush.bf16.xpose.msra.mxu0 0
        %1472 = vmatpush.bf16.xpose.msra.mxu0 0
        %1473 = vmatpush.bf16.xpose.msra.mxu0 0
        %1474 = vmatpush.bf16.xpose.msra.mxu0 %v1321
        %1475 = vmatmul.bf16.gmra.mxu0 %v1465
        %v1476 = vpop.f32.mrf.mxu0
        %v1477 = vadd.f32 0.0, %v1476
        %v1478 = vpop.f32.mrf.mxu0
        %1479 = vdwg.mxu0
        %v1480 = vpack.i.b16 %v1397, %v1397
        %v1481 = vperm.slane %v1480, 0
        %1483 = vmatpush.bf16.xpose.msra.mxu0 0
        %1484 = vmatpush.bf16.xpose.msra.mxu0 0
        %1485 = vmatpush.bf16.xpose.msra.mxu0 0
        %1486 = vmatpush.bf16.xpose.msra.mxu0 0
        %1487 = vmatpush.bf16.xpose.msra.mxu0 0
        %1488 = vmatpush.bf16.xpose.msra.mxu0 0
        %1489 = vmatpush.bf16.xpose.msra.mxu0 0
        %1490 = vmatpush.bf16.xpose.msra.mxu0 %v1322
        %1491 = vmatmul.bf16.gmra.mxu0 %v1481
        %v1492 = vpop.f32.mrf.mxu0
        %v1493 = vadd.f32 0.0, %v1492
        %v1494 = vpop.f32.mrf.mxu0
        %1495 = vdwg.mxu0
        %v1496 = vpack.i.b16 %v1398, %v1398
        %v1497 = vperm.slane %v1496, 0
        %1499 = vmatpush.bf16.xpose.msra.mxu0 0
        %1500 = vmatpush.bf16.xpose.msra.mxu0 0
        %1501 = vmatpush.bf16.xpose.msra.mxu0 0
        %1502 = vmatpush.bf16.xpose.msra.mxu0 0
        %1503 = vmatpush.bf16.xpose.msra.mxu0 0
        %1504 = vmatpush.bf16.xpose.msra.mxu0 0
        %1505 = vmatpush.bf16.xpose.msra.mxu0 0
        %1506 = vmatpush.bf16.xpose.msra.mxu0 %v1323
        %1507 = vmatmul.bf16.gmra.mxu0 %v1497
        %v1508 = vpop.f32.mrf.mxu0
        %v1509 = vadd.f32 0.0, %v1508
        %v1510 = vpop.f32.mrf.mxu0
        %1511 = vdwg.mxu0
        %v1512 = vpack.i.b16 %v1399, %v1399
        %v1513 = vperm.slane %v1512, 0
        %1515 = vmatpush.bf16.xpose.msra.mxu0 0
        %1516 = vmatpush.bf16.xpose.msra.mxu0 0
        %1517 = vmatpush.bf16.xpose.msra.mxu0 0
        %1518 = vmatpush.bf16.xpose.msra.mxu0 0
        %1519 = vmatpush.bf16.xpose.msra.mxu0 0
        %1520 = vmatpush.bf16.xpose.msra.mxu0 0
        %1521 = vmatpush.bf16.xpose.msra.mxu0 0
        %1522 = vmatpush.bf16.xpose.msra.mxu0 %v1324
        %1523 = vmatmul.bf16.gmra.mxu0 %v1513
        %v1524 = vpop.f32.mrf.mxu0
        %v1525 = vadd.f32 0.0, %v1524
        %v1526 = vpop.f32.mrf.mxu0
        %1527 = vdwg.mxu0
        %vm1528 = vcmask 57344
        %v1529 = vsel %vm1528, %v1413, -inf
        %1530 = vmax.xlane.f32.xlu0 %v1529
        %v1531 = vpop.xlane.xlu0 %1530
        %v1532 = vsel %vm1528, %v1429, -inf
        %1533 = vmax.xlane.f32.xlu0 %v1532
        %v1534 = vpop.xlane.xlu0 %1533
        %v1535 = vsel %vm1528, %v1445, -inf
        %1536 = vmax.xlane.f32.xlu0 %v1535
        %v1537 = vpop.xlane.xlu0 %1536
        %v1538 = vsel %vm1528, %v1461, -inf
        %1539 = vmax.xlane.f32.xlu0 %v1538
        %v1540 = vpop.xlane.xlu0 %1539
        %v1541 = vsel %vm1528, %v1477, -inf
        %1542 = vmax.xlane.f32.xlu0 %v1541
        %v1543 = vpop.xlane.xlu0 %1542
        %v1544 = vsel %vm1528, %v1493, -inf
        %1545 = vmax.xlane.f32.xlu0 %v1544
        %v1546 = vpop.xlane.xlu0 %1545
        %v1547 = vsel %vm1528, %v1509, -inf
        %1548 = vmax.xlane.f32.xlu0 %v1547
        %v1549 = vpop.xlane.xlu0 %1548
        %v1550 = vsel %vm1528, %v1525, -inf
        %1551 = vmax.xlane.f32.xlu0 %v1550
        %v1552 = vpop.xlane.xlu0 %1551
        %v1553 = vsub.f32 %v1413, %v1531
        %v1554 = vsub.f32 %v1429, %v1534
        %v1555 = vsub.f32 %v1445, %v1537
        %v1556 = vsub.f32 %v1461, %v1540
        %v1557 = vsub.f32 %v1477, %v1543
        %v1558 = vsub.f32 %v1493, %v1546
        %v1559 = vsub.f32 %v1509, %v1549
        %v1560 = vsub.f32 %v1525, %v1552
        %v1561 = vmul.f32 %v1553, 1.442695
        %v1562 = vpow.pop %v1561
        %v1563 = vmul.f32 %v1554, 1.442695
        %v1564 = vpow.pop %v1563
        %v1565 = vmul.f32 %v1555, 1.442695
        %v1566 = vpow.pop %v1565
        %v1567 = vmul.f32 %v1556, 1.442695
        %v1568 = vpow.pop %v1567
        %v1569 = vmul.f32 %v1557, 1.442695
        %v1570 = vpow.pop %v1569
        %v1571 = vmul.f32 %v1558, 1.442695
        %v1572 = vpow.pop %v1571
        %v1573 = vmul.f32 %v1559, 1.442695
        %v1574 = vpow.pop %v1573
        %v1575 = vmul.f32 %v1560, 1.442695
        %v1576 = vpow.pop %v1575
        %v1577 = vsel %vm1528, %v1562, 0.0
        %1578 = vadd.xlane.f32.xlu0 %v1577
        %v1579 = vpop.xlane.xlu0 %1578
        %v1580 = vsel %vm1528, %v1564, 0.0
        %1581 = vadd.xlane.f32.xlu0 %v1580
        %v1582 = vpop.xlane.xlu0 %1581
        %v1583 = vsel %vm1528, %v1566, 0.0
        %1584 = vadd.xlane.f32.xlu0 %v1583
        %v1585 = vpop.xlane.xlu0 %1584
        %v1586 = vsel %vm1528, %v1568, 0.0
        %1587 = vadd.xlane.f32.xlu0 %v1586
        %v1588 = vpop.xlane.xlu0 %1587
        %v1589 = vsel %vm1528, %v1570, 0.0
        %1590 = vadd.xlane.f32.xlu0 %v1589
        %v1591 = vpop.xlane.xlu0 %1590
        %v1592 = vsel %vm1528, %v1572, 0.0
        %1593 = vadd.xlane.f32.xlu0 %v1592
        %v1594 = vpop.xlane.xlu0 %1593
        %v1595 = vsel %vm1528, %v1574, 0.0
        %1596 = vadd.xlane.f32.xlu0 %v1595
        %v1597 = vpop.xlane.xlu0 %1596
        %v1598 = vsel %vm1528, %v1576, 0.0
        %1599 = vadd.xlane.f32.xlu0 %v1598
        %v1600 = vpop.xlane.xlu0 %1599
        %v1601 = vrcp.pop %v1579
        %v1602 = vrcp.pop %v1582
        %v1603 = vrcp.pop %v1585
        %v1604 = vrcp.pop %v1588
        %v1605 = vrcp.pop %v1591
        %v1606 = vrcp.pop %v1594
        %v1607 = vrcp.pop %v1597
        %v1608 = vrcp.pop %v1600
        %v1609 = vmul.f32 %v1562, %v1601
        %v1610 = vmul.f32 %v1564, %v1602
        %v1611 = vmul.f32 %v1566, %v1603
        %v1612 = vmul.f32 %v1568, %v1604
        %v1613 = vmul.f32 %v1570, %v1605
        %v1614 = vmul.f32 %v1572, %v1606
        %v1615 = vmul.f32 %v1574, %v1607
        %v1616 = vmul.f32 %v1576, %v1608
        %v1617 = vpack.c.bf16 %v1609, %v1609
        %v1618 = vpack.c.bf16 %v1610, %v1610
        %v1619 = vpack.c.bf16 %v1611, %v1611
        %v1620 = vpack.c.bf16 %v1612, %v1612
        %v1621 = vpack.c.bf16 %v1613, %v1613
        %v1622 = vpack.c.bf16 %v1614, %v1614
        %v1623 = vpack.c.bf16 %v1615, %v1615
        %v1624 = vpack.c.bf16 %v1616, %v1616
        %vm1625 = vcmask 64512
        %v1627 = vsel %vm1625, %v1617, 0
        %vm1629 = vcmask 1043456
        %v1631 = vsel %vm1629, %v1317, 0
        %1633 = vmatpush.bf16.msra.mxu0 0
        %1634 = vmatpush.bf16.msra.mxu0 0
        %1635 = vmatpush.bf16.msra.mxu0 0
        %1636 = vmatpush.bf16.msra.mxu0 0
        %1637 = vmatpush.bf16.msra.mxu0 0
        %1638 = vmatpush.bf16.msra.mxu0 0
        %1639 = vmatpush.bf16.msra.mxu0 0
        %1640 = vmatpush.bf16.msra.mxu0 %v1631
        %1641 = vmatmul.bf16.gmra.mxu0 %v1627
        %v1642 = vpop.f32.mrf.mxu0
        %v1643 = vadd.f32 0.0, %v1642
        %v1644 = vpop.f32.mrf.mxu0
        %1645 = vdwg.mxu0
        %v1647 = vsel %vm1625, %v1618, 0
        %v1650 = vsel %vm1629, %v1318, 0
        %1652 = vmatpush.bf16.msra.mxu0 0
        %1653 = vmatpush.bf16.msra.mxu0 0
        %1654 = vmatpush.bf16.msra.mxu0 0
        %1655 = vmatpush.bf16.msra.mxu0 0
        %1656 = vmatpush.bf16.msra.mxu0 0
        %1657 = vmatpush.bf16.msra.mxu0 0
        %1658 = vmatpush.bf16.msra.mxu0 0
        %1659 = vmatpush.bf16.msra.mxu0 %v1650
        %1660 = vmatmul.bf16.gmra.mxu0 %v1647
        %v1661 = vpop.f32.mrf.mxu0
        %v1662 = vadd.f32 0.0, %v1661
        %v1663 = vpop.f32.mrf.mxu0
        %1664 = vdwg.mxu0
        %v1666 = vsel %vm1625, %v1619, 0
        %v1669 = vsel %vm1629, %v1319, 0
        %1671 = vmatpush.bf16.msra.mxu0 0
        %1672 = vmatpush.bf16.msra.mxu0 0
        %1673 = vmatpush.bf16.msra.mxu0 0
        %1674 = vmatpush.bf16.msra.mxu0 0
        %1675 = vmatpush.bf16.msra.mxu0 0
        %1676 = vmatpush.bf16.msra.mxu0 0
        %1677 = vmatpush.bf16.msra.mxu0 0
        %1678 = vmatpush.bf16.msra.mxu0 %v1669
        %1679 = vmatmul.bf16.gmra.mxu0 %v1666
        %v1680 = vpop.f32.mrf.mxu0
        %v1681 = vadd.f32 0.0, %v1680
        %v1682 = vpop.f32.mrf.mxu0
        %1683 = vdwg.mxu0
        %v1685 = vsel %vm1625, %v1620, 0
        %v1688 = vsel %vm1629, %v1320, 0
        %1690 = vmatpush.bf16.msra.mxu0 0
        %1691 = vmatpush.bf16.msra.mxu0 0
        %1692 = vmatpush.bf16.msra.mxu0 0
        %1693 = vmatpush.bf16.msra.mxu0 0
        %1694 = vmatpush.bf16.msra.mxu0 0
        %1695 = vmatpush.bf16.msra.mxu0 0
        %1696 = vmatpush.bf16.msra.mxu0 0
        %1697 = vmatpush.bf16.msra.mxu0 %v1688
        %1698 = vmatmul.bf16.gmra.mxu0 %v1685
        %v1699 = vpop.f32.mrf.mxu0
        %v1700 = vadd.f32 0.0, %v1699
        %v1701 = vpop.f32.mrf.mxu0
        %1702 = vdwg.mxu0
        %v1704 = vsel %vm1625, %v1621, 0
        %v1707 = vsel %vm1629, %v1321, 0
        %1709 = vmatpush.bf16.msra.mxu0 0
        %1710 = vmatpush.bf16.msra.mxu0 0
        %1711 = vmatpush.bf16.msra.mxu0 0
        %1712 = vmatpush.bf16.msra.mxu0 0
        %1713 = vmatpush.bf16.msra.mxu0 0
        %1714 = vmatpush.bf16.msra.mxu0 0
        %1715 = vmatpush.bf16.msra.mxu0 0
        %1716 = vmatpush.bf16.msra.mxu0 %v1707
        %1717 = vmatmul.bf16.gmra.mxu0 %v1704
        %v1718 = vpop.f32.mrf.mxu0
        %v1719 = vadd.f32 0.0, %v1718
        %v1720 = vpop.f32.mrf.mxu0
        %1721 = vdwg.mxu0
        %v1723 = vsel %vm1625, %v1622, 0
        %v1726 = vsel %vm1629, %v1322, 0
        %1728 = vmatpush.bf16.msra.mxu0 0
        %1729 = vmatpush.bf16.msra.mxu0 0
        %1730 = vmatpush.bf16.msra.mxu0 0
        %1731 = vmatpush.bf16.msra.mxu0 0
        %1732 = vmatpush.bf16.msra.mxu0 0
        %1733 = vmatpush.bf16.msra.mxu0 0
        %1734 = vmatpush.bf16.msra.mxu0 0
        %1735 = vmatpush.bf16.msra.mxu0 %v1726
        %1736 = vmatmul.bf16.gmra.mxu0 %v1723
        %v1737 = vpop.f32.mrf.mxu0
        %v1738 = vadd.f32 0.0, %v1737
        %v1739 = vpop.f32.mrf.mxu0
        %1740 = vdwg.mxu0
        %v1742 = vsel %vm1625, %v1623, 0
        %v1745 = vsel %vm1629, %v1323, 0
        %1747 = vmatpush.bf16.msra.mxu0 0
        %1748 = vmatpush.bf16.msra.mxu0 0
        %1749 = vmatpush.bf16.msra.mxu0 0
        %1750 = vmatpush.bf16.msra.mxu0 0
        %1751 = vmatpush.bf16.msra.mxu0 0
        %1752 = vmatpush.bf16.msra.mxu0 0
        %1753 = vmatpush.bf16.msra.mxu0 0
        %1754 = vmatpush.bf16.msra.mxu0 %v1745
        %1755 = vmatmul.bf16.gmra.mxu0 %v1742
        %v1756 = vpop.f32.mrf.mxu0
        %v1757 = vadd.f32 0.0, %v1756
        %v1758 = vpop.f32.mrf.mxu0
        %1759 = vdwg.mxu0
        %v1761 = vsel %vm1625, %v1624, 0
        %v1764 = vsel %vm1629, %v1324, 0
        %1766 = vmatpush.bf16.msra.mxu0 0
        %1767 = vmatpush.bf16.msra.mxu0 0
        %1768 = vmatpush.bf16.msra.mxu0 0
        %1769 = vmatpush.bf16.msra.mxu0 0
        %1770 = vmatpush.bf16.msra.mxu0 0
        %1771 = vmatpush.bf16.msra.mxu0 0
        %1772 = vmatpush.bf16.msra.mxu0 0
        %1773 = vmatpush.bf16.msra.mxu0 %v1764
        %1774 = vmatmul.bf16.gmra.mxu0 %v1761
        %v1775 = vpop.f32.mrf.mxu0
        %v1776 = vadd.f32 0.0, %v1775
        %v1777 = vpop.f32.mrf.mxu0
        %1778 = vdwg.mxu0
        %v1779 = vpack.c.bf16 %v1643, %v1643
        %v1780 = vpack.c.bf16 %v1662, %v1662
        %v1781 = vpack.c.bf16 %v1681, %v1681
        %v1782 = vpack.c.bf16 %v1700, %v1700
        %v1783 = vpack.c.bf16 %v1719, %v1719
        %v1784 = vpack.c.bf16 %v1738, %v1738
        %v1785 = vpack.c.bf16 %v1757, %v1757
        %v1786 = vpack.c.bf16 %v1776, %v1776
        %v1787 = vld [vmem:[%s6] sm:$0xf]
        %v1788 = vld [vmem:[%s6 + $0x4] sm:$0xf]
        %v1789 = vld [vmem:[%s6 + $0x8] sm:$0xf]
        %v1790 = vld [vmem:[%s6 + $0xc] sm:$0xf]
        %v1791 = vld [vmem:[%s6 + $0x10] sm:$0xf]
        %v1792 = vld [vmem:[%s6 + $0x14] sm:$0xf]
        %v1793 = vld [vmem:[%s6 + $0x18] sm:$0xf]
        %v1794 = vld [vmem:[%s6 + $0x1c] sm:$0xf]
        %v1795 = vld [vmem:[%s6 + $0x20] sm:$0xf]
        %v1796 = vld [vmem:[%s6 + $0x24] sm:$0xf]
        %v1797 = vld [vmem:[%s6 + $0x28] sm:$0xf]
        %v1798 = vld [vmem:[%s6 + $0x2c] sm:$0xf]
        %v1799 = vld [vmem:[%s6 + $0x30] sm:$0xf]
        %v1800 = vld [vmem:[%s6 + $0x34] sm:$0xf]
        %v1801 = vld [vmem:[%s6 + $0x38] sm:$0xf]
        %v1802 = vld [vmem:[%s6 + $0x3c] sm:$0xf]
        %v1803 = vld [vmem:[#allocation12] sm:$0xf]
        %v1804 = vld [vmem:[#allocation12 + $0x4] sm:$0xf]
        %v1805 = vld [vmem:[#allocation12 + $0x8] sm:$0xf]
        %v1806 = vld [vmem:[#allocation12 + $0xc] sm:$0xf]
        %v1807 = vld [vmem:[#allocation12 + $0x10] sm:$0xf]
        %v1808 = vld [vmem:[#allocation12 + $0x14] sm:$0xf]
        %v1809 = vld [vmem:[#allocation12 + $0x18] sm:$0xf]
        %v1810 = vld [vmem:[#allocation12 + $0x1c] sm:$0xf]
        %v1819 = vunpack.c.l.b16 %v1803
        %v1820 = vunpack.c.l.b16 %v1804
        %v1821 = vunpack.c.l.b16 %v1805
        %v1822 = vunpack.c.l.b16 %v1806
        %v1823 = vunpack.c.l.b16 %v1807
        %v1824 = vunpack.c.l.b16 %v1808
        %v1825 = vunpack.c.l.b16 %v1809
        %v1826 = vunpack.c.l.b16 %v1810
        %v1827 = vpack.c.b16 %v1820, %v1819
        %v1828 = vpack.c.b16 %v1822, %v1821
        %v1829 = vpack.c.b16 %v1824, %v1823
        %v1830 = vpack.c.b16 %v1826, %v1825
        %1835 = vmatpush.bf16.msra.mxu0 0
        %1836 = vmatpush.bf16.msra.mxu0 0
        %1837 = vmatpush.bf16.msra.mxu0 0
        %1838 = vmatpush.bf16.msra.mxu0 0
        %1839 = vmatpush.bf16.msra.mxu0 %v1830
        %1840 = vmatpush.bf16.msra.mxu0 %v1829
        %1841 = vmatpush.bf16.msra.mxu0 %v1828
        %1842 = vmatpush.bf16.msra.mxu0 %v1827
        %1843 = vmatmul.bf16.gmra.mxu0 %v1358
        %v1844 = vpop.f32.mrf.mxu0
        %v1845 = vadd.f32 0.0, %v1844
        %v1846 = vpop.f32.mrf.mxu0
        %1847 = vdwg.mxu0
        %v1856 = vunpack.c.l.b16 %v1779
        %v1857 = vunpack.c.l.b16 %v1780
        %v1858 = vunpack.c.l.b16 %v1781
        %v1859 = vunpack.c.l.b16 %v1782
        %v1860 = vunpack.c.l.b16 %v1783
        %v1861 = vunpack.c.l.b16 %v1784
        %v1862 = vunpack.c.l.b16 %v1785
        %v1863 = vunpack.c.l.b16 %v1786
        %v1864 = vrot.slane %v1857, 7
        %v1865 = vsel %vm1380, %v1864, %v1856
        %v1866 = vrot.slane %v1858, 6
        %v1867 = vsel %vm1384, %v1866, %v1865
        %v1868 = vrot.slane %v1859, 5
        %v1869 = vsel %vm1388, %v1868, %v1867
        %v1870 = vrot.slane %v1860, 4
        %vm1871 = vcmask 1044484
        %v1872 = vsel %vm1871, %v1870, %v1869
        %v1873 = vrot.slane %v1861, 3
        %vm1874 = vcmask 1045509
        %v1875 = vsel %vm1874, %v1873, %v1872
        %v1876 = vrot.slane %v1862, 2
        %vm1877 = vcmask 1046534
        %v1878 = vsel %vm1877, %v1876, %v1875
        %v1879 = vrot.slane %v1863, 1
        %vm1880 = vcmask 1047559
        %v1881 = vsel %vm1880, %v1879, %v1878
        %v1882 = vpack.c.b16 %v1881, %v1881
        %v1900 = vunpack.c.l.b16 %v1787
        %v1901 = vunpack.c.l.b16 %v1788
        %v1902 = vunpack.c.l.b16 %v1789
        %v1903 = vunpack.c.l.b16 %v1790
        %v1904 = vunpack.c.l.b16 %v1791
        %v1905 = vunpack.c.l.b16 %v1792
        %v1906 = vunpack.c.l.b16 %v1793
        %v1907 = vunpack.c.l.b16 %v1794
        %v1908 = vunpack.c.l.b16 %v1795
        %v1909 = vunpack.c.l.b16 %v1796
        %v1910 = vunpack.c.l.b16 %v1797
        %v1911 = vunpack.c.l.b16 %v1798
        %v1912 = vunpack.c.l.b16 %v1799
        %v1913 = vunpack.c.l.b16 %v1800
        %v1914 = vunpack.c.l.b16 %v1801
        %v1915 = vunpack.c.l.b16 %v1802
        %v1916 = vpack.c.b16 %v1901, %v1900
        %v1917 = vpack.c.b16 %v1903, %v1902
        %v1918 = vpack.c.b16 %v1905, %v1904
        %v1919 = vpack.c.b16 %v1907, %v1906
        %v1920 = vpack.c.b16 %v1909, %v1908
        %v1921 = vpack.c.b16 %v1911, %v1910
        %v1922 = vpack.c.b16 %v1913, %v1912
        %v1923 = vpack.c.b16 %v1915, %v1914
        %1932 = vmatpush.bf16.msra.mxu0 %v1923
        %1933 = vmatpush.bf16.msra.mxu0 %v1922
        %1934 = vmatpush.bf16.msra.mxu0 %v1921
        %1935 = vmatpush.bf16.msra.mxu0 %v1920
        %1936 = vmatpush.bf16.msra.mxu0 %v1919
        %1937 = vmatpush.bf16.msra.mxu0 %v1918
        %1938 = vmatpush.bf16.msra.mxu0 %v1917
        %1939 = vmatpush.bf16.msra.mxu0 %v1916
        %1940 = vmatmul.bf16.gmra.mxu0 %v1882
        %v1941 = vpop.f32.mrf.mxu0
        %v1942 = vadd.f32 %v1845, %v1941
        %v1943 = vpop.f32.mrf.mxu0
        %1944 = vdwg.mxu0
        %v1945 = vtanh.pop %v1942
        %v1946 = vpack.c.bf16 %v1945, %v1945
        %v1947 = vld [vmem:[#allocation14] sm:$0xff]
        %v1948 = vld [vmem:[#allocation14 + $0x8] sm:$0xff]
        %v1949 = vld [vmem:[#allocation14 + $0x10] sm:$0xff]
        %v1950 = vld [vmem:[#allocation14 + $0x18] sm:$0xff]
        %v1951 = vld [vmem:[#allocation14 + $0x20] sm:$0xff]
        %v1952 = vld [vmem:[#allocation14 + $0x28] sm:$0xff]
        %v1953 = vld [vmem:[#allocation14 + $0x30] sm:$0xff]
        %v1954 = vld [vmem:[#allocation14 + $0x38] sm:$0xff]
        %v1955 = vld [vmem:[%s10] sm:$0x3]
        %v1957 = vperm.slane %v1955, 0
        %v1958 = vperm.slane %v1955, 1
        %v1969 = vunpack.c.l.b16 %v1947
        %v1970 = vunpack.c.h.b16 %v1947
        %v1971 = vunpack.c.l.b16 %v1948
        %v1972 = vunpack.c.h.b16 %v1948
        %v1973 = vunpack.c.l.b16 %v1949
        %v1974 = vunpack.c.h.b16 %v1949
        %v1975 = vunpack.c.l.b16 %v1950
        %v1976 = vunpack.c.h.b16 %v1950
        %v1977 = vunpack.c.l.b16 %v1951
        %v1978 = vunpack.c.h.b16 %v1951
        %v1979 = vunpack.c.l.b16 %v1952
        %v1980 = vunpack.c.h.b16 %v1952
        %v1981 = vunpack.c.l.b16 %v1953
        %v1982 = vunpack.c.h.b16 %v1953
        %v1983 = vunpack.c.l.b16 %v1954
        %v1984 = vunpack.c.h.b16 %v1954
        %v1985 = vpack.c.b16 %v1971, %v1969
        %v1986 = vpack.c.b16 %v1972, %v1970
        %v1987 = vpack.c.b16 %v1975, %v1973
        %v1988 = vpack.c.b16 %v1976, %v1974
        %v1989 = vpack.c.b16 %v1979, %v1977
        %v1990 = vpack.c.b16 %v1980, %v1978
        %v1991 = vpack.c.b16 %v1983, %v1981
        %v1992 = vpack.c.b16 %v1984, %v1982
        %v2002 = vsel %vm670, %v1946, 0
        %2004 = vmatpush.bf16.msra.mxu0 0
        %2005 = vmatpush.bf16.msra.mxu0 0
        %2006 = vmatpush.bf16.msra.mxu0 0
        %2007 = vmatpush.bf16.msra.mxu0 0
        %2008 = vmatpush.bf16.msra.mxu0 %v1991
        %2009 = vmatpush.bf16.msra.mxu0 %v1989
        %2010 = vmatpush.bf16.msra.mxu0 %v1987
        %2011 = vmatpush.bf16.msra.mxu0 %v1985
        %2012 = vmatmul.bf16.gmra.mxu0 %v2002
        %v2013 = vpop.f32.mrf.mxu0
        %v2014 = vadd.f32 %v1957, %v2013
        %v2015 = vpop.f32.mrf.mxu0
        %2016 = vdwg.mxu0
        %2017 = vmatpush.bf16.msra.mxu0 0
        %2018 = vmatpush.bf16.msra.mxu0 0
        %2019 = vmatpush.bf16.msra.mxu0 0
        %2020 = vmatpush.bf16.msra.mxu0 0
        %2021 = vmatpush.bf16.msra.mxu0 %v1992
        %2022 = vmatpush.bf16.msra.mxu0 %v1990
        %2023 = vmatpush.bf16.msra.mxu0 %v1988
        %2024 = vmatpush.bf16.msra.mxu0 %v1986
        %2025 = vmatmul.bf16.gmra.mxu0 %v2002
        %v2026 = vpop.f32.mrf.mxu0
        %v2027 = vadd.f32 %v1958, %v2026
        %v2028 = vpop.f32.mrf.mxu0
        %2029 = vdwg.mxu0
        %2030 = vst [vmem:[#allocation4] sm:$0xff] %v2014
        %2031 = vst [vmem:[#allocation4 + $0x8] sm:$0xff] %v2027
        %v2032 = vld [vmem:[#allocation15] sm:$0xff]
        %v2033 = vld [vmem:[#allocation15 + $0x8] sm:$0xff]
        %v2034 = vld [vmem:[#allocation15 + $0x10] sm:$0xff]
        %v2035 = vld [vmem:[#allocation15 + $0x18] sm:$0xff]
        %v2036 = vld [vmem:[#allocation15 + $0x20] sm:$0xff]
        %v2037 = vld [vmem:[#allocation15 + $0x28] sm:$0xff]
        %v2038 = vld [vmem:[#allocation15 + $0x30] sm:$0xff]
        %v2039 = vld [vmem:[#allocation15 + $0x38] sm:$0xff]
        %v2040 = vld [vmem:[#allocation4] ss:$8 sm:$0x3]
        %v2049 = vunpack.c.l.b16 %v2032
        %v2050 = vunpack.c.h.b16 %v2032
        %v2051 = vunpack.c.l.b16 %v2033
        %v2052 = vunpack.c.h.b16 %v2033
        %v2053 = vunpack.c.l.b16 %v2034
        %v2054 = vunpack.c.h.b16 %v2034
        %v2055 = vunpack.c.l.b16 %v2035
        %v2056 = vunpack.c.h.b16 %v2035
        %v2057 = vunpack.c.l.b16 %v2036
        %v2058 = vunpack.c.h.b16 %v2036
        %v2059 = vunpack.c.l.b16 %v2037
        %v2060 = vunpack.c.h.b16 %v2037
        %v2061 = vunpack.c.l.b16 %v2038
        %v2062 = vunpack.c.h.b16 %v2038
        %v2063 = vunpack.c.l.b16 %v2039
        %v2064 = vunpack.c.h.b16 %v2039
        %v2065 = vpack.c.b16 %v2051, %v2049
        %v2066 = vpack.c.b16 %v2052, %v2050
        %v2067 = vpack.c.b16 %v2055, %v2053
        %v2068 = vpack.c.b16 %v2056, %v2054
        %v2069 = vpack.c.b16 %v2059, %v2057
        %v2070 = vpack.c.b16 %v2060, %v2058
        %v2071 = vpack.c.b16 %v2063, %v2061
        %v2072 = vpack.c.b16 %v2064, %v2062
        %2081 = vmatpush.bf16.msra.mxu0 0
        %2082 = vmatpush.bf16.msra.mxu0 0
        %2083 = vmatpush.bf16.msra.mxu0 0
        %2084 = vmatpush.bf16.msra.mxu0 0
        %2085 = vmatpush.bf16.msra.mxu0 %v2071
        %2086 = vmatpush.bf16.msra.mxu0 %v2069
        %2087 = vmatpush.bf16.msra.mxu0 %v2067
        %2088 = vmatpush.bf16.msra.mxu0 %v2065
        %2089 = vmatmul.bf16.gmra.mxu0 %v672
        %v2090 = vpop.f32.mrf.mxu0
        %v2091 = vadd.f32 0.0, %v2090
        %v2092 = vpop.f32.mrf.mxu0
        %2093 = vdwg.mxu0
        %2094 = vmatpush.bf16.msra.mxu0 0
        %2095 = vmatpush.bf16.msra.mxu0 0
        %2096 = vmatpush.bf16.msra.mxu0 0
        %2097 = vmatpush.bf16.msra.mxu0 0
        %2098 = vmatpush.bf16.msra.mxu0 %v2072
        %2099 = vmatpush.bf16.msra.mxu0 %v2070
        %2100 = vmatpush.bf16.msra.mxu0 %v2068
        %2101 = vmatpush.bf16.msra.mxu0 %v2066
        %2102 = vmatmul.bf16.gmra.mxu0 %v672
        %v2103 = vpop.f32.mrf.mxu0
        %v2104 = vadd.f32 0.0, %v2103
        %v2105 = vpop.f32.mrf.mxu0
        %2106 = vdwg.mxu0
        %v2109 = vrot.slane %v2104, 7
        %v2110 = vsel %vm703, %v2091, %v2109
        %v2112 = vadd.f32 %v2040, %v2110
        %v2113 = vxor.u32 %v2112, 2147483648
        %v2114 = vmul.f32 %v2113, 1.442695
        %v2115 = vpow.pop %v2114
        %v2116 = vadd.f32 %v2115, 1.0
        %v2117 = vrcp.pop %v2116
        %v2118 = vmul.f32 %v2116, %v2117
        %v2119 = vsub.f32 1.0, %v2118
        %v2120 = vmul.f32 %v2117, %v2119
        %v2121 = vadd.f32 %v2117, %v2120
        %vm2122 = vweird.f32 %v2116
        %vm2123 = vweird.f32 %v2117
        %vm2124 = vmor %vm2122, %vm2123
        %v2125 = vsel %vm2124, %v2117, %v2121
        %v2126 = vand.u32 2147483647, %v2116
        %vm2127 = vcmp.eq.f32.partialorder %v2126, 8.507059e+37
        %v2128 = vand.u32 %v2116, 2147483648
        %v2129 = vor.u32 1.1754944e-38, %v2128
        %v2130 = vsel %vm2127, %v2129, %v2125
        %v2131 = vmul.f32 1.0, %v2130
        %2133 = vrot.lane.b32.xlu0 %v2112, 64
        %v2134 = vpop.permute.xlu0 %2133
        %v2135 = vrot.slane %v2134, 1
        %v2137 = vtanh.pop %v2135
        %v2138 = vmul.f32 %v2131, 0.0
        %v2139 = vmul.f32 %v2131, %v2137
        %2141 = vrot.lane.b32.xlu0 %v2139, 64
        %v2142 = vpop.permute.xlu0 %2141
        %v2144 = vadd.f32 %v2138, %v2142
        %v2145 = vtanh.pop %v2144
        %v2147 = vrot.slane %v2131, 1
        %2150 = vrot.lane.b32.xlu0 %v2145, 64
        %v2151 = vpop.permute.xlu0 %2150
        %v2153 = vmul.f32 %v2147, %v2151
        %2154 = vst.msk [vmem:[%s460] sm:$0x1] %vm748, %v2153
        %v2155 = vld [vmem:[%s750] ss:$8 sm:$0x3]
        %v2156 = vpack.c.bf16 %v2153, %v2153
        %v2158 = vsel %vm670, %v2156, 0
        %2160 = vmatpush.bf16.msra.mxu0 0
        %2161 = vmatpush.bf16.msra.mxu0 0
        %2162 = vmatpush.bf16.msra.mxu0 0
        %2163 = vmatpush.bf16.msra.mxu0 0
        %2164 = vmatpush.bf16.msra.mxu0 %v2071
        %2165 = vmatpush.bf16.msra.mxu0 %v2069
        %2166 = vmatpush.bf16.msra.mxu0 %v2067
        %2167 = vmatpush.bf16.msra.mxu0 %v2065
        %2168 = vmatmul.bf16.gmra.mxu0 %v2158
        %v2169 = vpop.f32.mrf.mxu0
        %v2170 = vadd.f32 0.0, %v2169
        %v2171 = vpop.f32.mrf.mxu0
        %2172 = vdwg.mxu0
        %2173 = vmatpush.bf16.msra.mxu0 0
        %2174 = vmatpush.bf16.msra.mxu0 0
        %2175 = vmatpush.bf16.msra.mxu0 0
        %2176 = vmatpush.bf16.msra.mxu0 0
        %2177 = vmatpush.bf16.msra.mxu0 %v2072
        %2178 = vmatpush.bf16.msra.mxu0 %v2070
        %2179 = vmatpush.bf16.msra.mxu0 %v2068
        %2180 = vmatpush.bf16.msra.mxu0 %v2066
        %2181 = vmatmul.bf16.gmra.mxu0 %v2158
        %v2182 = vpop.f32.mrf.mxu0
        %v2183 = vadd.f32 0.0, %v2182
        %v2184 = vpop.f32.mrf.mxu0
        %2185 = vdwg.mxu0
        %v2188 = vrot.slane %v2183, 7
        %v2189 = vsel %vm703, %v2170, %v2188
        %v2191 = vadd.f32 %v2155, %v2189
        %v2192 = vxor.u32 %v2191, 2147483648
        %v2193 = vmul.f32 %v2192, 1.442695
        %v2194 = vpow.pop %v2193
        %v2195 = vadd.f32 %v2194, 1.0
        %v2196 = vrcp.pop %v2195
        %v2197 = vmul.f32 %v2195, %v2196
        %v2198 = vsub.f32 1.0, %v2197
        %v2199 = vmul.f32 %v2196, %v2198
        %v2200 = vadd.f32 %v2196, %v2199
        %vm2201 = vweird.f32 %v2195
        %vm2202 = vweird.f32 %v2196
        %vm2203 = vmor %vm2201, %vm2202
        %v2204 = vsel %vm2203, %v2196, %v2200
        %v2205 = vand.u32 2147483647, %v2195
        %vm2206 = vcmp.eq.f32.partialorder %v2205, 8.507059e+37
        %v2207 = vand.u32 %v2195, 2147483648
        %v2208 = vor.u32 1.1754944e-38, %v2207
        %v2209 = vsel %vm2206, %v2208, %v2204
        %v2210 = vmul.f32 1.0, %v2209
        %2212 = vrot.lane.b32.xlu0 %v2191, 64
        %v2213 = vpop.permute.xlu0 %2212
        %v2214 = vrot.slane %v2213, 1
        %v2216 = vtanh.pop %v2214
        %v2217 = vmul.f32 %v2210, %v2144
        %v2218 = vmul.f32 %v2210, %v2216
        %2220 = vrot.lane.b32.xlu0 %v2218, 64
        %v2221 = vpop.permute.xlu0 %2220
        %v2223 = vadd.f32 %v2217, %v2221
        %v2224 = vtanh.pop %v2223
        %v2226 = vrot.slane %v2210, 1
        %2229 = vrot.lane.b32.xlu0 %v2224, 64
        %v2230 = vpop.permute.xlu0 %2229
        %v2232 = vmul.f32 %v2226, %v2230
        %2233 = vst.msk [vmem:[%s460 + $0x1] sm:$0x1] %vm748, %v2232
        %v2234 = vld [vmem:[%s830] ss:$8 sm:$0x3]
        %v2235 = vpack.c.bf16 %v2232, %v2232
        %v2237 = vsel %vm670, %v2235, 0
        %2239 = vmatpush.bf16.msra.mxu0 0
        %2240 = vmatpush.bf16.msra.mxu0 0
        %2241 = vmatpush.bf16.msra.mxu0 0
        %2242 = vmatpush.bf16.msra.mxu0 0
        %2243 = vmatpush.bf16.msra.mxu0 %v2071
        %2244 = vmatpush.bf16.msra.mxu0 %v2069
        %2245 = vmatpush.bf16.msra.mxu0 %v2067
        %2246 = vmatpush.bf16.msra.mxu0 %v2065
        %2247 = vmatmul.bf16.gmra.mxu0 %v2237
        %v2248 = vpop.f32.mrf.mxu0
        %v2249 = vadd.f32 0.0, %v2248
        %v2250 = vpop.f32.mrf.mxu0
        %2251 = vdwg.mxu0
        %2252 = vmatpush.bf16.msra.mxu0 0
        %2253 = vmatpush.bf16.msra.mxu0 0
        %2254 = vmatpush.bf16.msra.mxu0 0
        %2255 = vmatpush.bf16.msra.mxu0 0
        %2256 = vmatpush.bf16.msra.mxu0 %v2072
        %2257 = vmatpush.bf16.msra.mxu0 %v2070
        %2258 = vmatpush.bf16.msra.mxu0 %v2068
        %2259 = vmatpush.bf16.msra.mxu0 %v2066
        %2260 = vmatmul.bf16.gmra.mxu0 %v2237
        %v2261 = vpop.f32.mrf.mxu0
        %v2262 = vadd.f32 0.0, %v2261
        %v2263 = vpop.f32.mrf.mxu0
        %2264 = vdwg.mxu0
        %v2267 = vrot.slane %v2262, 7
        %v2268 = vsel %vm703, %v2249, %v2267
        %v2270 = vadd.f32 %v2234, %v2268
        %v2271 = vxor.u32 %v2270, 2147483648
        %v2272 = vmul.f32 %v2271, 1.442695
        %v2273 = vpow.pop %v2272
        %v2274 = vadd.f32 %v2273, 1.0
        %v2275 = vrcp.pop %v2274
        %v2276 = vmul.f32 %v2274, %v2275
        %v2277 = vsub.f32 1.0, %v2276
        %v2278 = vmul.f32 %v2275, %v2277
        %v2279 = vadd.f32 %v2275, %v2278
        %vm2280 = vweird.f32 %v2274
        %vm2281 = vweird.f32 %v2275
        %vm2282 = vmor %vm2280, %vm2281
        %v2283 = vsel %vm2282, %v2275, %v2279
        %v2284 = vand.u32 2147483647, %v2274
        %vm2285 = vcmp.eq.f32.partialorder %v2284, 8.507059e+37
        %v2286 = vand.u32 %v2274, 2147483648
        %v2287 = vor.u32 1.1754944e-38, %v2286
        %v2288 = vsel %vm2285, %v2287, %v2283
        %v2289 = vmul.f32 1.0, %v2288
        %2291 = vrot.lane.b32.xlu0 %v2270, 64
        %v2292 = vpop.permute.xlu0 %2291
        %v2293 = vrot.slane %v2292, 1
        %v2295 = vtanh.pop %v2293
        %v2296 = vmul.f32 %v2289, %v2223
        %v2297 = vmul.f32 %v2289, %v2295
        %2299 = vrot.lane.b32.xlu0 %v2297, 64
        %v2300 = vpop.permute.xlu0 %2299
        %v2302 = vadd.f32 %v2296, %v2300
        %v2303 = vtanh.pop %v2302
        %v2305 = vrot.slane %v2289, 1
        %2308 = vrot.lane.b32.xlu0 %v2303, 64
        %v2309 = vpop.permute.xlu0 %2308
        %v2311 = vmul.f32 %v2305, %v2309
        %2312 = vst.msk [vmem:[%s460 + $0x2] sm:$0x1] %vm748, %v2311
        %v2313 = vld [vmem:[%s910] ss:$8 sm:$0x3]
        %v2314 = vpack.c.bf16 %v2311, %v2311
        %v2316 = vsel %vm670, %v2314, 0
        %2318 = vmatpush.bf16.msra.mxu0 0
        %2319 = vmatpush.bf16.msra.mxu0 0
        %2320 = vmatpush.bf16.msra.mxu0 0
        %2321 = vmatpush.bf16.msra.mxu0 0
        %2322 = vmatpush.bf16.msra.mxu0 %v2071
        %2323 = vmatpush.bf16.msra.mxu0 %v2069
        %2324 = vmatpush.bf16.msra.mxu0 %v2067
        %2325 = vmatpush.bf16.msra.mxu0 %v2065
        %2326 = vmatmul.bf16.gmra.mxu0 %v2316
        %v2327 = vpop.f32.mrf.mxu0
        %v2328 = vadd.f32 0.0, %v2327
        %v2329 = vpop.f32.mrf.mxu0
        %2330 = vdwg.mxu0
        %2331 = vmatpush.bf16.msra.mxu0 0
        %2332 = vmatpush.bf16.msra.mxu0 0
        %2333 = vmatpush.bf16.msra.mxu0 0
        %2334 = vmatpush.bf16.msra.mxu0 0
        %2335 = vmatpush.bf16.msra.mxu0 %v2072
        %2336 = vmatpush.bf16.msra.mxu0 %v2070
        %2337 = vmatpush.bf16.msra.mxu0 %v2068
        %2338 = vmatpush.bf16.msra.mxu0 %v2066
        %2339 = vmatmul.bf16.gmra.mxu0 %v2316
        %v2340 = vpop.f32.mrf.mxu0
        %v2341 = vadd.f32 0.0, %v2340
        %v2342 = vpop.f32.mrf.mxu0
        %2343 = vdwg.mxu0
        %v2346 = vrot.slane %v2341, 7
        %v2347 = vsel %vm703, %v2328, %v2346
        %v2349 = vadd.f32 %v2313, %v2347
        %v2350 = vxor.u32 %v2349, 2147483648
        %v2351 = vmul.f32 %v2350, 1.442695
        %v2352 = vpow.pop %v2351
        %v2353 = vadd.f32 %v2352, 1.0
        %v2354 = vrcp.pop %v2353
        %v2355 = vmul.f32 %v2353, %v2354
        %v2356 = vsub.f32 1.0, %v2355
        %v2357 = vmul.f32 %v2354, %v2356
        %v2358 = vadd.f32 %v2354, %v2357
        %vm2359 = vweird.f32 %v2353
        %vm2360 = vweird.f32 %v2354
        %vm2361 = vmor %vm2359, %vm2360
        %v2362 = vsel %vm2361, %v2354, %v2358
        %v2363 = vand.u32 2147483647, %v2353
        %vm2364 = vcmp.eq.f32.partialorder %v2363, 8.507059e+37
        %v2365 = vand.u32 %v2353, 2147483648
        %v2366 = vor.u32 1.1754944e-38, %v2365
        %v2367 = vsel %vm2364, %v2366, %v2362
        %v2368 = vmul.f32 1.0, %v2367
        %2370 = vrot.lane.b32.xlu0 %v2349, 64
        %v2371 = vpop.permute.xlu0 %2370
        %v2372 = vrot.slane %v2371, 1
        %v2374 = vtanh.pop %v2372
        %v2375 = vmul.f32 %v2368, %v2302
        %v2376 = vmul.f32 %v2368, %v2374
        %2378 = vrot.lane.b32.xlu0 %v2376, 64
        %v2379 = vpop.permute.xlu0 %2378
        %v2381 = vadd.f32 %v2375, %v2379
        %v2382 = vtanh.pop %v2381
        %v2384 = vrot.slane %v2368, 1
        %2387 = vrot.lane.b32.xlu0 %v2382, 64
        %v2388 = vpop.permute.xlu0 %2387
        %v2390 = vmul.f32 %v2384, %v2388
        %2391 = vst.msk [vmem:[%s460 + $0x3] sm:$0x1] %vm748, %v2390
        %v2392 = vld [vmem:[%s990] ss:$8 sm:$0x3]
        %v2393 = vpack.c.bf16 %v2390, %v2390
        %v2395 = vsel %vm670, %v2393, 0
        %2397 = vmatpush.bf16.msra.mxu0 0
        %2398 = vmatpush.bf16.msra.mxu0 0
        %2399 = vmatpush.bf16.msra.mxu0 0
        %2400 = vmatpush.bf16.msra.mxu0 0
        %2401 = vmatpush.bf16.msra.mxu0 %v2071
        %2402 = vmatpush.bf16.msra.mxu0 %v2069
        %2403 = vmatpush.bf16.msra.mxu0 %v2067
        %2404 = vmatpush.bf16.msra.mxu0 %v2065
        %2405 = vmatmul.bf16.gmra.mxu0 %v2395
        %v2406 = vpop.f32.mrf.mxu0
        %v2407 = vadd.f32 0.0, %v2406
        %v2408 = vpop.f32.mrf.mxu0
        %2409 = vdwg.mxu0
        %2410 = vmatpush.bf16.msra.mxu0 0
        %2411 = vmatpush.bf16.msra.mxu0 0
        %2412 = vmatpush.bf16.msra.mxu0 0
        %2413 = vmatpush.bf16.msra.mxu0 0
        %2414 = vmatpush.bf16.msra.mxu0 %v2072
        %2415 = vmatpush.bf16.msra.mxu0 %v2070
        %2416 = vmatpush.bf16.msra.mxu0 %v2068
        %2417 = vmatpush.bf16.msra.mxu0 %v2066
        %2418 = vmatmul.bf16.gmra.mxu0 %v2395
        %v2419 = vpop.f32.mrf.mxu0
        %v2420 = vadd.f32 0.0, %v2419
        %v2421 = vpop.f32.mrf.mxu0
        %2422 = vdwg.mxu0
        %v2425 = vrot.slane %v2420, 7
        %v2426 = vsel %vm703, %v2407, %v2425
        %v2428 = vadd.f32 %v2392, %v2426
        %v2429 = vxor.u32 %v2428, 2147483648
        %v2430 = vmul.f32 %v2429, 1.442695
        %v2431 = vpow.pop %v2430
        %v2432 = vadd.f32 %v2431, 1.0
        %v2433 = vrcp.pop %v2432
        %v2434 = vmul.f32 %v2432, %v2433
        %v2435 = vsub.f32 1.0, %v2434
        %v2436 = vmul.f32 %v2433, %v2435
        %v2437 = vadd.f32 %v2433, %v2436
        %vm2438 = vweird.f32 %v2432
        %vm2439 = vweird.f32 %v2433
        %vm2440 = vmor %vm2438, %vm2439
        %v2441 = vsel %vm2440, %v2433, %v2437
        %v2442 = vand.u32 2147483647, %v2432
        %vm2443 = vcmp.eq.f32.partialorder %v2442, 8.507059e+37
        %v2444 = vand.u32 %v2432, 2147483648
        %v2445 = vor.u32 1.1754944e-38, %v2444
        %v2446 = vsel %vm2443, %v2445, %v2441
        %v2447 = vmul.f32 1.0, %v2446
        %2449 = vrot.lane.b32.xlu0 %v2428, 64
        %v2450 = vpop.permute.xlu0 %2449
        %v2451 = vrot.slane %v2450, 1
        %v2453 = vtanh.pop %v2451
        %v2454 = vmul.f32 %v2447, %v2381
        %v2455 = vmul.f32 %v2447, %v2453
        %2457 = vrot.lane.b32.xlu0 %v2455, 64
        %v2458 = vpop.permute.xlu0 %2457
        %v2460 = vadd.f32 %v2454, %v2458
        %v2461 = vtanh.pop %v2460
        %v2463 = vrot.slane %v2447, 1
        %2466 = vrot.lane.b32.xlu0 %v2461, 64
        %v2467 = vpop.permute.xlu0 %2466
        %v2469 = vmul.f32 %v2463, %v2467
        %2470 = vst.msk [vmem:[%s460 + $0x4] sm:$0x1] %vm748, %v2469
        %v2471 = vld [vmem:[%s1070] ss:$8 sm:$0x3]
        %v2472 = vpack.c.bf16 %v2469, %v2469
        %v2474 = vsel %vm670, %v2472, 0
        %2476 = vmatpush.bf16.msra.mxu0 0
        %2477 = vmatpush.bf16.msra.mxu0 0
        %2478 = vmatpush.bf16.msra.mxu0 0
        %2479 = vmatpush.bf16.msra.mxu0 0
        %2480 = vmatpush.bf16.msra.mxu0 %v2071
        %2481 = vmatpush.bf16.msra.mxu0 %v2069
        %2482 = vmatpush.bf16.msra.mxu0 %v2067
        %2483 = vmatpush.bf16.msra.mxu0 %v2065
        %2484 = vmatmul.bf16.gmra.mxu0 %v2474
        %v2485 = vpop.f32.mrf.mxu0
        %v2486 = vadd.f32 0.0, %v2485
        %v2487 = vpop.f32.mrf.mxu0
        %2488 = vdwg.mxu0
        %2489 = vmatpush.bf16.msra.mxu0 0
        %2490 = vmatpush.bf16.msra.mxu0 0
        %2491 = vmatpush.bf16.msra.mxu0 0
        %2492 = vmatpush.bf16.msra.mxu0 0
        %2493 = vmatpush.bf16.msra.mxu0 %v2072
        %2494 = vmatpush.bf16.msra.mxu0 %v2070
        %2495 = vmatpush.bf16.msra.mxu0 %v2068
        %2496 = vmatpush.bf16.msra.mxu0 %v2066
        %2497 = vmatmul.bf16.gmra.mxu0 %v2474
        %v2498 = vpop.f32.mrf.mxu0
        %v2499 = vadd.f32 0.0, %v2498
        %v2500 = vpop.f32.mrf.mxu0
        %2501 = vdwg.mxu0
        %v2504 = vrot.slane %v2499, 7
        %v2505 = vsel %vm703, %v2486, %v2504
        %v2507 = vadd.f32 %v2471, %v2505
        %v2508 = vxor.u32 %v2507, 2147483648
        %v2509 = vmul.f32 %v2508, 1.442695
        %v2510 = vpow.pop %v2509
        %v2511 = vadd.f32 %v2510, 1.0
        %v2512 = vrcp.pop %v2511
        %v2513 = vmul.f32 %v2511, %v2512
        %v2514 = vsub.f32 1.0, %v2513
        %v2515 = vmul.f32 %v2512, %v2514
        %v2516 = vadd.f32 %v2512, %v2515
        %vm2517 = vweird.f32 %v2511
        %vm2518 = vweird.f32 %v2512
        %vm2519 = vmor %vm2517, %vm2518
        %v2520 = vsel %vm2519, %v2512, %v2516
        %v2521 = vand.u32 2147483647, %v2511
        %vm2522 = vcmp.eq.f32.partialorder %v2521, 8.507059e+37
        %v2523 = vand.u32 %v2511, 2147483648
        %v2524 = vor.u32 1.1754944e-38, %v2523
        %v2525 = vsel %vm2522, %v2524, %v2520
        %v2526 = vmul.f32 1.0, %v2525
        %2528 = vrot.lane.b32.xlu0 %v2507, 64
        %v2529 = vpop.permute.xlu0 %2528
        %v2530 = vrot.slane %v2529, 1
        %v2532 = vtanh.pop %v2530
        %v2533 = vmul.f32 %v2526, %v2460
        %v2534 = vmul.f32 %v2526, %v2532
        %2536 = vrot.lane.b32.xlu0 %v2534, 64
        %v2537 = vpop.permute.xlu0 %2536
        %v2539 = vadd.f32 %v2533, %v2537
        %v2540 = vtanh.pop %v2539
        %v2542 = vrot.slane %v2526, 1
        %2545 = vrot.lane.b32.xlu0 %v2540, 64
        %v2546 = vpop.permute.xlu0 %2545
        %v2548 = vmul.f32 %v2542, %v2546
        %2549 = vst.msk [vmem:[%s460 + $0x5] sm:$0x1] %vm748, %v2548
        %v2550 = vld [vmem:[%s1150] ss:$8 sm:$0x3]
        %v2551 = vpack.c.bf16 %v2548, %v2548
        %v2553 = vsel %vm670, %v2551, 0
        %2555 = vmatpush.bf16.msra.mxu0 0
        %2556 = vmatpush.bf16.msra.mxu0 0
        %2557 = vmatpush.bf16.msra.mxu0 0
        %2558 = vmatpush.bf16.msra.mxu0 0
        %2559 = vmatpush.bf16.msra.mxu0 %v2071
        %2560 = vmatpush.bf16.msra.mxu0 %v2069
        %2561 = vmatpush.bf16.msra.mxu0 %v2067
        %2562 = vmatpush.bf16.msra.mxu0 %v2065
        %2563 = vmatmul.bf16.gmra.mxu0 %v2553
        %v2564 = vpop.f32.mrf.mxu0
        %v2565 = vadd.f32 0.0, %v2564
        %v2566 = vpop.f32.mrf.mxu0
        %2567 = vdwg.mxu0
        %2568 = vmatpush.bf16.msra.mxu0 0
        %2569 = vmatpush.bf16.msra.mxu0 0
        %2570 = vmatpush.bf16.msra.mxu0 0
        %2571 = vmatpush.bf16.msra.mxu0 0
        %2572 = vmatpush.bf16.msra.mxu0 %v2072
        %2573 = vmatpush.bf16.msra.mxu0 %v2070
        %2574 = vmatpush.bf16.msra.mxu0 %v2068
        %2575 = vmatpush.bf16.msra.mxu0 %v2066
        %2576 = vmatmul.bf16.gmra.mxu0 %v2553
        %v2577 = vpop.f32.mrf.mxu0
        %v2578 = vadd.f32 0.0, %v2577
        %v2579 = vpop.f32.mrf.mxu0
        %2580 = vdwg.mxu0
        %v2583 = vrot.slane %v2578, 7
        %v2584 = vsel %vm703, %v2565, %v2583
        %v2586 = vadd.f32 %v2550, %v2584
        %v2587 = vxor.u32 %v2586, 2147483648
        %v2588 = vmul.f32 %v2587, 1.442695
        %v2589 = vpow.pop %v2588
        %v2590 = vadd.f32 %v2589, 1.0
        %v2591 = vrcp.pop %v2590
        %v2592 = vmul.f32 %v2590, %v2591
        %v2593 = vsub.f32 1.0, %v2592
        %v2594 = vmul.f32 %v2591, %v2593
        %v2595 = vadd.f32 %v2591, %v2594
        %vm2596 = vweird.f32 %v2590
        %vm2597 = vweird.f32 %v2591
        %vm2598 = vmor %vm2596, %vm2597
        %v2599 = vsel %vm2598, %v2591, %v2595
        %v2600 = vand.u32 2147483647, %v2590
        %vm2601 = vcmp.eq.f32.partialorder %v2600, 8.507059e+37
        %v2602 = vand.u32 %v2590, 2147483648
        %v2603 = vor.u32 1.1754944e-38, %v2602
        %v2604 = vsel %vm2601, %v2603, %v2599
        %v2605 = vmul.f32 1.0, %v2604
        %2607 = vrot.lane.b32.xlu0 %v2586, 64
        %v2608 = vpop.permute.xlu0 %2607
        %v2609 = vrot.slane %v2608, 1
        %v2611 = vtanh.pop %v2609
        %v2612 = vmul.f32 %v2605, %v2539
        %v2613 = vmul.f32 %v2605, %v2611
        %2615 = vrot.lane.b32.xlu0 %v2613, 64
        %v2616 = vpop.permute.xlu0 %2615
        %v2618 = vadd.f32 %v2612, %v2616
        %v2619 = vtanh.pop %v2618
        %v2621 = vrot.slane %v2605, 1
        %2624 = vrot.lane.b32.xlu0 %v2619, 64
        %v2625 = vpop.permute.xlu0 %2624
        %v2627 = vmul.f32 %v2621, %v2625
        %2628 = vst.msk [vmem:[%s460 + $0x6] sm:$0x1] %vm748, %v2627
        %v2629 = vld [vmem:[%s1230] ss:$8 sm:$0x3]
        %v2630 = vpack.c.bf16 %v2627, %v2627
        %v2632 = vsel %vm670, %v2630, 0
        %2634 = vmatpush.bf16.msra.mxu0 0
        %2635 = vmatpush.bf16.msra.mxu0 0
        %2636 = vmatpush.bf16.msra.mxu0 0
        %2637 = vmatpush.bf16.msra.mxu0 0
        %2638 = vmatpush.bf16.msra.mxu0 %v2071
        %2639 = vmatpush.bf16.msra.mxu0 %v2069
        %2640 = vmatpush.bf16.msra.mxu0 %v2067
        %2641 = vmatpush.bf16.msra.mxu0 %v2065
        %2642 = vmatmul.bf16.gmra.mxu0 %v2632
        %v2643 = vpop.f32.mrf.mxu0
        %v2644 = vadd.f32 0.0, %v2643
        %v2645 = vpop.f32.mrf.mxu0
        %2646 = vdwg.mxu0
        %2647 = vmatpush.bf16.msra.mxu0 0
        %2648 = vmatpush.bf16.msra.mxu0 0
        %2649 = vmatpush.bf16.msra.mxu0 0
        %2650 = vmatpush.bf16.msra.mxu0 0
        %2651 = vmatpush.bf16.msra.mxu0 %v2072
        %2652 = vmatpush.bf16.msra.mxu0 %v2070
        %2653 = vmatpush.bf16.msra.mxu0 %v2068
        %2654 = vmatpush.bf16.msra.mxu0 %v2066
        %2655 = vmatmul.bf16.gmra.mxu0 %v2632
        %v2656 = vpop.f32.mrf.mxu0
        %v2657 = vadd.f32 0.0, %v2656
        %v2658 = vpop.f32.mrf.mxu0
        %2659 = vdwg.mxu0
        %v2662 = vrot.slane %v2657, 7
        %v2663 = vsel %vm703, %v2644, %v2662
        %v2665 = vadd.f32 %v2629, %v2663
        %v2666 = vxor.u32 %v2665, 2147483648
        %v2667 = vmul.f32 %v2666, 1.442695
        %v2668 = vpow.pop %v2667
        %v2669 = vadd.f32 %v2668, 1.0
        %v2670 = vrcp.pop %v2669
        %v2671 = vmul.f32 %v2669, %v2670
        %v2672 = vsub.f32 1.0, %v2671
        %v2673 = vmul.f32 %v2670, %v2672
        %v2674 = vadd.f32 %v2670, %v2673
        %vm2675 = vweird.f32 %v2669
        %vm2676 = vweird.f32 %v2670
        %vm2677 = vmor %vm2675, %vm2676
        %v2678 = vsel %vm2677, %v2670, %v2674
        %v2679 = vand.u32 2147483647, %v2669
        %vm2680 = vcmp.eq.f32.partialorder %v2679, 8.507059e+37
        %v2681 = vand.u32 %v2669, 2147483648
        %v2682 = vor.u32 1.1754944e-38, %v2681
        %v2683 = vsel %vm2680, %v2682, %v2678
        %v2684 = vmul.f32 1.0, %v2683
        %2686 = vrot.lane.b32.xlu0 %v2665, 64
        %v2687 = vpop.permute.xlu0 %2686
        %v2688 = vrot.slane %v2687, 1
        %v2690 = vtanh.pop %v2688
        %v2691 = vmul.f32 %v2684, %v2618
        %v2692 = vmul.f32 %v2684, %v2690
        %2694 = vrot.lane.b32.xlu0 %v2692, 64
        %v2695 = vpop.permute.xlu0 %2694
        %v2697 = vadd.f32 %v2691, %v2695
        %v2698 = vtanh.pop %v2697
        %v2700 = vrot.slane %v2684, 1
        %2703 = vrot.lane.b32.xlu0 %v2698, 64
        %v2704 = vpop.permute.xlu0 %2703
        %v2706 = vmul.f32 %v2700, %v2704
        %2707 = vst.msk [vmem:[%s460 + $0x7] sm:$0x1] %vm748, %v2706
        %s2708 = sand.u32 %s254, 1
        %s2709 = scalar_lea.sflag [#allocation8], %s2708
        %s2710 = sand.u32 %s254, 1
        %s2711 = smul.addr %s2710, 8
        %s2712 = scalar_lea.vmem [#allocation17], %s2711
        // Predicated region
        $region104: #{tpu_custom_call.1} parent=59 // pred_check
          %p2713 = pneg %p264
        $region105: #{tpu_custom_call.1} parent=59 // pred_check_branch
          %2715 = sbr.rel (%p2713) target = $region107
        $region106: #{tpu_custom_call.1} parent=59 // pred_region
          %2717 = vsyncadd %s2709, 0
          %s2718 = smul.addr %s31, 8
          %s2719 = scalar_lea.hbm %s11, %s2718
          %s2721 = sshll.u32 %s2712, 4
          %s2722 = int_to_ptr.vmem [resolvable:$true] %s2721
          %s2723 = sshll.u32 %s2719, 4
          %s2724 = int_to_ptr.hbm [resolvable:$true] %s2723
          %2726 = dma.vmem_to_hbm [thread:$0]  %s2722, 128, %s2724, %s2709
        $region107: #{tpu_custom_call.1} parent=59 // pred_fallthru
          _
      $region60: #{tpu_custom_call.1} parent=5 // pred_fallthru
        _
      %p2727 = scmp.le.s32.totalorder 2, %s26
      // Predicated region
      $region108: #{tpu_custom_call.1} parent=5 // pred_check
        %p2728 = pneg %p2727
      $region109: #{tpu_custom_call.1} parent=5 // pred_check_branch
        %2730 = sbr.rel (%p2728) target = $region111
      $region110: #{tpu_custom_call.1} parent=5 // pred_region
        %s2731 = ssub.s32 %s26, 2
        // Predicated region
        $region112: #{tpu_custom_call.1} parent=110 // pred_check
          %p2732 = pneg %p270
        $region113: #{tpu_custom_call.1} parent=110 // pred_check_branch
          %2734 = sbr.rel (%p2732) target = $region115
        $region114: #{tpu_custom_call.1} parent=110 // pred_region
          %s2735 = sand.u32 %s255, 1
          %s2736 = scalar_lea.sflag [#allocation8], %s2735
          %s2737 = sand.u32 %s255, 1
          %s2738 = smul.addr %s2737, 8
          %s2739 = scalar_lea.vmem [#allocation17], %s2738
          %2741 = dma.done %s2736, 128
        $region115: #{tpu_custom_call.1} parent=110 // pred_fallthru
          _
      $region111: #{tpu_custom_call.1} parent=5 // pred_fallthru
        _
    $region6: #{tpu_custom_call.1} parent=1 // loop_footer
      %s30 = sadd.s32 1, %s26
    $region7: #{tpu_custom_call.1} parent=1 // loop_footer_branch
      %25 = sbr.rel target = $region3
    $region8: #{tpu_custom_call.1} parent=1 // loop_exit
      _
    %2742 = vsyncpa [#allocation7], 1
    %s2743 = scalar_lea.sflag [#allocation7], 1
    %2744 = vsyncpa %s2743, 1
    %2745 = vsyncpa [#allocation10], 1
    %2746 = vsyncpa [#allocation13], 1
    %2747 = vsyncpa [#allocation16], 1
    %2748 = vsyncpa [#allocation8], 1
    %s2749 = scalar_lea.sflag [#allocation8], 1
    %2750 = vsyncpa %s2749, 1
  %2751 = vsyncmov [#allocation3]
  %s2752 = vpop.sfrf %2751
  %p2753 = scmp.eq.s32.totalorder %s2752, 0
  %p2754 = pneg %p2753
  %2756 = shalt.err (%p2754)

</llo_original>
